<compile_context>
chip_gen: v5e
topology: v5e:2x2
jax: 0.10.0
libtpu: 0.0.40
codegen_flags: <defaults>
</compile_context>

<pallas_src>
import numpy as np
import jax
import jax.numpy as jnp
from jax import lax
from jax.experimental import pallas as pl
from jax.experimental.pallas import tpu as pltpu


def _full_spec(shape):
    n = len(shape)
    return pl.BlockSpec(shape, lambda i, _n=n: (0,) * _n)


# --------------------------------------------------------------------------
# Kernel 1: bidirectional LSTM recurrence (input projection pre-computed).
#   projf/projb: (T, B, 4H)  = x @ W_ih_dir + (b_ih + b_hh)_dir, gate order [i|f|g|o]
#   out_f/out_b: (T, B, H)   zero at padded timesteps (pack_padded semantics)
# --------------------------------------------------------------------------
def _bilstm_recurrent_kernel(projf_ref, projb_ref, len_ref, whh_f_ref, whh_b_ref,
                             out_f_ref, out_b_ref):
    T, B, _ = projf_ref.shape
    H = whh_f_ref.shape[0]
    lens = len_ref[...]                      # (B, 1) int32
    whh_f = whh_f_ref[...]                   # (H, 4H) resident in vregs/VMEM
    whh_b = whh_b_ref[...]
    h0 = jnp.zeros((B, H), jnp.float32)
    c0 = jnp.zeros((B, H), jnp.float32)

    def gate_step(gates, h, c):
        i_g = jax.nn.sigmoid(gates[:, 0 * H:1 * H])
        f_g = jax.nn.sigmoid(gates[:, 1 * H:2 * H])
        g_g = jnp.tanh(gates[:, 2 * H:3 * H])
        o_g = jax.nn.sigmoid(gates[:, 3 * H:4 * H])
        c_new = f_g * c + i_g * g_g
        h_new = o_g * jnp.tanh(c_new)
        return h_new, c_new

    def body(s, carry):
        h_f, c_f, h_b, c_b = carry
        tf = s                               # forward walks t = 0..T-1
        tb = T - 1 - s                       # backward walks t = T-1..0
        gates_f = projf_ref[tf] + jnp.dot(h_f, whh_f,
                                          preferred_element_type=jnp.float32)
        gates_b = projb_ref[tb] + jnp.dot(h_b, whh_b,
                                          preferred_element_type=jnp.float32)
        hf_new, cf_new = gate_step(gates_f, h_f, c_f)
        hb_new, cb_new = gate_step(gates_b, h_b, c_b)
        vf = lens > tf                       # (B,1) packed-sequence masks
        vb = lens > tb
        out_f_ref[tf] = jnp.where(vf, hf_new, 0.0)   # padded steps -> zeros
        out_b_ref[tb] = jnp.where(vb, hb_new, 0.0)
        return (jnp.where(vf, hf_new, h_f), jnp.where(vf, cf_new, c_f),
                jnp.where(vb, hb_new, h_b), jnp.where(vb, cb_new, c_b))

    # Short fixed trip count -> unroll for LLO scheduler visibility.
    lax.fori_loop(0, T, body, (h0, c0, h0, c0), unroll=True)


def _bilstm_layer_tm(x_tm, lens2, fwd_params, bwd_params):
    """One BiLSTM layer on time-major input. (T,B,Din) -> (T,B,2H)."""
    T, B, _ = x_tm.shape
    wih_f, whh_f, b_f = fwd_params
    wih_b, whh_b, b_b = bwd_params
    H = whh_f.shape[0]

    # Hoisted input projection: ONE big GEMM over all timesteps & both
    # directions (XLA/MXU), instead of 2*T tiny matmuls inside the recurrence.
    wih = jnp.concatenate([wih_f, wih_b], axis=1)       # (Din, 8H)
    bias = jnp.concatenate([b_f, b_b], axis=1)          # (1, 8H)
    proj = jnp.einsum('tbd,dg->tbg', x_tm, wih) + bias  # (T, B, 8H)
    proj_f = proj[..., :4 * H]
    proj_b = proj[..., 4 * H:]

    out_f, out_b = pl.pallas_call(
        _bilstm_recurrent_kernel,
        out_shape=(jax.ShapeDtypeStruct((T, B, H), jnp.float32),
                   jax.ShapeDtypeStruct((T, B, H), jnp.float32)),
        grid=(1,),
        in_specs=[
            _full_spec((T, B, 4 * H)), _full_spec((T, B, 4 * H)),
            _full_spec((B, 1)),
            _full_spec((H, 4 * H)), _full_spec((H, 4 * H)),
        ],
        out_specs=(_full_spec((T, B, H)), _full_spec((T, B, H))),
        compiler_params=pltpu.CompilerParams(dimension_semantics=("arbitrary",)),
    )(proj_f, proj_b, lens2, whh_f, whh_b)
    return jnp.concatenate([out_f, out_b], axis=-1)      # (T, B, 2H)


def _bilstm_stack(x_btd, lens, layers):
    """(B,T,D) -> (B,T,2H); time-major internally (one transpose in/out)."""
    B = x_btd.shape[0]
    lens2 = lens.reshape(B, 1).astype(jnp.int32)
    x = jnp.transpose(x_btd, (1, 0, 2))
    for fwd_params, bwd_params in layers:
        # TODO(synk): nn.LSTM inter-layer dropout(0.3) is train-only; identity at inference.
        x = _bilstm_layer_tm(x, lens2, fwd_params, bwd_params)
    return jnp.transpose(x, (1, 0, 2))


# --------------------------------------------------------------------------
# Kernel 2: column attention + output MLP for all batches in one invocation
# --------------------------------------------------------------------------
def _agg_attention_kernel(h_ref, ce_ref, len_ref,
                          watt_ref, batt_ref, wk_ref, bk_ref,
                          wcol_ref, bcol_ref, wo1_ref, bo1_ref,
                          wo2_ref, bo2_ref, out_ref, k_sc):
    """h_ref:(B*T,Nh), ce_ref:(B*4,Nh), len_ref:(B,1) -> out_ref:(B*4,6)."""
    BT, Nh = h_ref.shape
    B4 = ce_ref.shape[0]
    B = B4 // 4
    T = BT // B

    h_all = h_ref[...]                    # (B*T, Nh)
    ce_all = ce_ref[...]                  # (B*4, Nh)
    lens = len_ref[...]                   # (B, 1)

    # Shared agg_att projection hoisted across the whole batch: one MXU matmul.
    att_proj = (jnp.dot(h_all, watt_ref[...], preferred_element_type=jnp.float32)
                + batt_ref[...])                                       # (B*T, Nh)

    for b in range(B):                    # static unroll; all matmuls stay 2-D
        ap_b = att_proj[b * T:(b + 1) * T, :]                          # (T, Nh)
        h_b = h_all[b * T:(b + 1) * T, :]                              # (T, Nh)
        ce_b = ce_all[b * 4:(b + 1) * 4, :]                            # (4, Nh)
        # att_val[j, t] = <agg_att(h_enc)[t, :], col_emb[j, :]>
        att_val = lax.dot_general(ce_b, ap_b, (((1,), (1,)), ((), ())),
                                  preferred_element_type=jnp.float32)  # (4, T)
        t_idx = lax.broadcasted_iota(jnp.int32, (4, T), 1)
        att_val = jnp.where(t_idx < lens[b:b + 1, 0:1], att_val, -100.0)
        m = jnp.max(att_val, axis=-1, keepdims=True)
        e = jnp.exp(att_val - m)
        att = e / jnp.sum(e, axis=-1, keepdims=True)                   # softmax
        k_sc[b * 4:(b + 1) * 4, :] = jnp.dot(att, h_b,
                                             preferred_element_type=jnp.float32)

    # Output MLP batched over all B*4 rows, weights resident.
    k_agg = k_sc[...]                                                  # (B*4, Nh)
    hid = (jnp.dot(k_agg, wk_ref[...], preferred_element_type=jnp.float32) + bk_ref[...]
           + jnp.dot(ce_all, wcol_ref[...], preferred_element_type=jnp.float32) + bcol_ref[...])
    hid = jnp.tanh(jnp.dot(hid, wo1_ref[...], preferred_element_type=jnp.float32) + bo1_ref[...])
    out_ref[...] = (jnp.dot(hid, wo2_ref[...], preferred_element_type=jnp.float32)
                    + bo2_ref[...])


def _agg_attention(x_len, h_enc, col_emb, lin_params):
    B, T, Nh = h_enc.shape
    (w_att, b_att, w_k, b_k, w_col, b_col, w_o1, b_o1, w_o2, b_o2) = lin_params
    h2 = h_enc.reshape(B * T, Nh)          # reshapes done by XLA, outside kernel
    ce2 = col_emb.reshape(B * 4, Nh)
    lens2 = x_len.reshape(B, 1).astype(jnp.int32)
    out = pl.pallas_call(
        _agg_attention_kernel,
        out_shape=jax.ShapeDtypeStruct((B * 4, 6), jnp.float32),
        grid=(1,),
        in_specs=[
            _full_spec((B * T, Nh)), _full_spec((B * 4, Nh)), _full_spec((B, 1)),
            _full_spec((Nh, Nh)), _full_spec((1, Nh)),
            _full_spec((Nh, Nh)), _full_spec((1, Nh)),
            _full_spec((Nh, Nh)), _full_spec((1, Nh)),
            _full_spec((Nh, Nh)), _full_spec((1, Nh)),
            _full_spec((Nh, 6)), _full_spec((1, 6)),
        ],
        out_specs=_full_spec((B * 4, 6)),
        scratch_shapes=[pltpu.VMEM((B * 4, Nh), jnp.float32)],
        compiler_params=pltpu.CompilerParams(dimension_semantics=("arbitrary",)),
    )(h2, ce2, lens2,
      w_att, b_att.reshape(1, Nh), w_k, b_k.reshape(1, Nh),
      w_col, b_col.reshape(1, Nh), w_o1, b_o1.reshape(1, Nh),
      w_o2, b_o2.reshape(1, 6))
    return out.reshape(B, 4, 6)


# --------------------------------------------------------------------------
# Parameter initialization (deterministic, synthetic)
# --------------------------------------------------------------------------
def _init_linear(key, fan_in, fan_out, scale=0.1):
    kw, kb = jax.random.split(key)
    w = jax.random.normal(kw, (fan_in, fan_out), jnp.float32) * scale
    b = jax.random.normal(kb, (fan_out,), jnp.float32) * scale
    return w, b


def _init_bilstm(key, input_size, hidden_size, num_layers, scale=0.1):
    """Fused gate layout: W_ih:(D,4H), W_hh:(H,4H), b:(1,4H) with PyTorch gate
    order [i|f|g|o] packed along the 4H axis. The single bias plays the role of
    b_ih + b_hh (sum them when importing real nn.LSTM weights)."""
    layers = []
    for layer in range(num_layers):
        d_in = input_size if layer == 0 else 2 * hidden_size
        dirs = []
        for _ in range(2):  # forward, backward
            key, k1, k2, k3 = jax.random.split(key, 4)
            w_ih = jax.random.normal(k1, (d_in, 4 * hidden_size), jnp.float32) * scale
            w_hh = jax.random.normal(k2, (hidden_size, 4 * hidden_size), jnp.float32) * scale
            b = jax.random.normal(k3, (1, 4 * hidden_size), jnp.float32) * scale
            dirs.append((w_ih, w_hh, b))
        layers.append(tuple(dirs))
    return layers


# --------------------------------------------------------------------------
# AggPredictor module (use_ca=True path)
# --------------------------------------------------------------------------
class AggPredictorPallas:
    def __init__(self, N_word, N_h, N_depth, key):
        self.N_h = N_h
        keys = jax.random.split(key, 7)
        self.agg_lstm = _init_bilstm(keys[0], N_word, N_h // 2, N_depth)
        self.agg_col_name_enc = _init_bilstm(keys[1], N_word, N_h // 2, N_depth)
        self.agg_att = _init_linear(keys[2], N_h, N_h)       # Linear(N_h, N_h)
        self.agg_out_0 = _init_linear(keys[3], N_h, N_h)     # agg_out[0]
        self.agg_out_2 = _init_linear(keys[4], N_h, 6)       # agg_out[2]
        self.agg_out_K = _init_linear(keys[5], N_h, N_h)
        self.col_out_col = _init_linear(keys[6], N_h, N_h)

    def __call__(self, x_emb_var, x_len, col_inp_var, col_name_len, col_len, gt_sel):
        B = x_emb_var.shape[0]
        total_names = col_inp_var.shape[0]

        # ---- col_name_encode: encode each column name, take state at len-1 ----
        name_hidden = _bilstm_stack(col_inp_var, col_name_len, self.agg_col_name_enc)
        name_out = name_hidden[jnp.arange(total_names), col_name_len - 1]   # (Tot, N_h)

        # ---- gather ground-truth-selected columns (pad to 4 with column 0) ----
        # col_len / gt_sel are static Python structure -> one static-index gather.
        offsets = np.concatenate([[0], np.cumsum(col_len)[:-1]]).astype(np.int32)
        sel_idx = np.zeros((B, 4), np.int32)
        for b in range(B):
            sel = (list(gt_sel[b]) + [0] * 4)[:4]
            sel_idx[b] = offsets[b] + np.asarray(sel, np.int32)
        col_emb = name_out[jnp.asarray(sel_idx)]                            # (B, 4, N_h)

        # ---- run_lstm: question encoding ----
        h_enc = _bilstm_stack(x_emb_var, x_len, self.agg_lstm)              # (B, T, N_h)

        # ---- attention + output MLP (single Pallas kernel) ----
        lin = (*self.agg_att, *self.agg_out_K, *self.col_out_col,
               *self.agg_out_0, *self.agg_out_2)
        return _agg_attention(x_len, h_enc, col_emb, lin)                   # (B, 4, 6)


if __name__ == "__main__":
    key = jax.random.PRNGKey(0)
    N_word, N_h, N_depth = 16, 32, 2
    B, max_x_len = 2, 8

    x_len = jnp.array([8, 6], jnp.int32)
    col_len = [3, 4]                              # columns per example (static)
    total_names = sum(col_len)                    # 7 flattened column names
    max_name_len = 4
    col_name_len = jnp.array([2, 3, 4, 1, 2, 3, 4], jnp.int32)
    gt_sel = [[0, 2], [1, 3, 0]]                  # selected columns (<= 4 each)

    k1, k2, k3 = jax.random.split(key, 3)
    x_emb_var = jax.random.normal(k1, (B, max_x_len, N_word), jnp.float32)
    col_inp_var = jax.random.normal(k2, (total_names, max_name_len, N_word), jnp.float32)

    model = AggPredictorPallas(N_word, N_h, N_depth, k3)

    # One jitted forward; col_len / gt_sel are static Python structure.
    fwd = jax.jit(lambda xe, xl, ci, cnl: model(xe, xl, ci, cnl, col_len, gt_sel))
    agg_score = jax.block_until_ready(fwd(x_emb_var, x_len, col_inp_var, col_name_len))

    assert agg_score.shape == (B, 4, 6), agg_score.shape
    assert bool(jnp.all(jnp.isfinite(agg_score)))
    print("KERNEL_OK")
</pallas_src>

<mosaic_0001>
module attributes {stable_mosaic.version = 11 : i64} {
  func.func @_bilstm_recurrent_kernel(%arg0: i32, %arg1: memref<8x2x64xf32, #tpu.memory_space<vmem>>, %arg2: memref<8x2x64xf32, #tpu.memory_space<vmem>>, %arg3: memref<2x1xi32, #tpu.memory_space<vmem>>, %arg4: memref<16x64xf32, #tpu.memory_space<vmem>>, %arg5: memref<16x64xf32, #tpu.memory_space<vmem>>, %arg6: memref<8x2x16xf32, #tpu.memory_space<vmem>>, %arg7: memref<8x2x16xf32, #tpu.memory_space<vmem>>) attributes {dimension_semantics = [#tpu.dimension_semantics<arbitrary>], iteration_bounds = array<i64: 1>, scalar_prefetch = 0 : i64, scratch_operands = 0 : i64, tpu.core_type = #tpu.core_type<tc>, window_params = [{pipeline_mode = #tpu.pipeline_mode<synchronous>, transform_indices = @transform_0, window_bounds = array<i64: 8, 2, 64>}, {pipeline_mode = #tpu.pipeline_mode<synchronous>, transform_indices = @transform_1, window_bounds = array<i64: 8, 2, 64>}, {pipeline_mode = #tpu.pipeline_mode<synchronous>, transform_indices = @transform_2, window_bounds = array<i64: 2, 1>}, {pipeline_mode = #tpu.pipeline_mode<synchronous>, transform_indices = @transform_3, window_bounds = array<i64: 16, 64>}, {pipeline_mode = #tpu.pipeline_mode<synchronous>, transform_indices = @transform_4, window_bounds = array<i64: 16, 64>}, {pipeline_mode = #tpu.pipeline_mode<synchronous>, transform_indices = @transform_5, window_bounds = array<i64: 8, 2, 16>}, {pipeline_mode = #tpu.pipeline_mode<synchronous>, transform_indices = @transform_6, window_bounds = array<i64: 8, 2, 16>}]} {
    %c0 = arith.constant 0 : index
    %c0_0 = arith.constant 0 : index
    %0 = vector.load %arg3[%c0, %c0_0] : memref<2x1xi32, #tpu.memory_space<vmem>>, vector<2x1xi32>
    %c0_1 = arith.constant 0 : index
    %c0_2 = arith.constant 0 : index
    %1 = vector.load %arg4[%c0_1, %c0_2] : memref<16x64xf32, #tpu.memory_space<vmem>>, vector<16x64xf32>
    %c0_3 = arith.constant 0 : index
    %c0_4 = arith.constant 0 : index
    %2 = vector.load %arg5[%c0_3, %c0_4] : memref<16x64xf32, #tpu.memory_space<vmem>>, vector<16x64xf32>
    %cst = arith.constant 0.000000e+00 : f32
    %3 = vector.broadcast %cst : f32 to vector<2x16xf32>
    %cst_5 = arith.constant 0.000000e+00 : f32
    %4 = vector.broadcast %cst_5 : f32 to vector<2x16xf32>
    %c0_i32 = arith.constant 0 : i32
    %c7_i32 = arith.constant 7 : i32
    %5 = arith.subi %c7_i32, %c0_i32 : i32
    %6 = arith.index_cast %c0_i32 : i32 to index
    %c0_6 = arith.constant 0 : index
    %c0_7 = arith.constant 0 : index
    %7 = vector.load %arg1[%6, %c0_6, %c0_7] : memref<8x2x64xf32, #tpu.memory_space<vmem>>, vector<1x2x64xf32>
    %8 = vector.shape_cast %7 : vector<1x2x64xf32> to vector<2x64xf32>
    %cst_8 = arith.constant dense<0.000000e+00> : vector<2x64xf32>
    %9 = tpu.matmul %3, %1, %cst_8 {dimension_numbers = #tpu.dot_dimension_numbers<[1], [0], [0], [1], [0, 0, 1, 1], [], []>} : vector<2x16xf32>, vector<16x64xf32>, vector<2x64xf32> -> vector<2x64xf32>
    %10 = arith.addf %8, %9 : vector<2x64xf32>
    %11 = arith.index_cast %5 : i32 to index
    %c0_9 = arith.constant 0 : index
    %c0_10 = arith.constant 0 : index
    %12 = vector.load %arg2[%11, %c0_9, %c0_10] : memref<8x2x64xf32, #tpu.memory_space<vmem>>, vector<1x2x64xf32>
    %13 = vector.shape_cast %12 : vector<1x2x64xf32> to vector<2x64xf32>
    %cst_11 = arith.constant dense<0.000000e+00> : vector<2x64xf32>
    %14 = tpu.matmul %3, %2, %cst_11 {dimension_numbers = #tpu.dot_dimension_numbers<[1], [0], [0], [1], [0, 0, 1, 1], [], []>} : vector<2x16xf32>, vector<16x64xf32>, vector<2x64xf32> -> vector<2x64xf32>
    %15 = arith.addf %13, %14 : vector<2x64xf32>
    %16 = vector.extract_strided_slice %10 {offsets = [0, 0], sizes = [2, 16], strides = [1, 1]} : vector<2x64xf32> to vector<2x16xf32>
    %17 = arith.negf %16 : vector<2x16xf32>
    %18 = math.exp %17 : vector<2x16xf32>
    %cst_12 = arith.constant 1.000000e+00 : f32
    %19 = vector.broadcast %cst_12 : f32 to vector<2x16xf32>
    %20 = arith.addf %19, %18 : vector<2x16xf32>
    %21 = arith.divf %19, %20 : vector<2x16xf32>
    %22 = vector.extract_strided_slice %10 {offsets = [0, 16], sizes = [2, 16], strides = [1, 1]} : vector<2x64xf32> to vector<2x16xf32>
    %23 = arith.negf %22 : vector<2x16xf32>
    %24 = math.exp %23 : vector<2x16xf32>
    %cst_13 = arith.constant 1.000000e+00 : f32
    %25 = vector.broadcast %cst_13 : f32 to vector<2x16xf32>
    %26 = arith.addf %25, %24 : vector<2x16xf32>
    %27 = arith.divf %25, %26 : vector<2x16xf32>
    %28 = vector.extract_strided_slice %10 {offsets = [0, 32], sizes = [2, 16], strides = [1, 1]} : vector<2x64xf32> to vector<2x16xf32>
    %29 = math.tanh %28 : vector<2x16xf32>
    %30 = vector.extract_strided_slice %10 {offsets = [0, 48], sizes = [2, 16], strides = [1, 1]} : vector<2x64xf32> to vector<2x16xf32>
    %31 = arith.negf %30 : vector<2x16xf32>
    %32 = math.exp %31 : vector<2x16xf32>
    %cst_14 = arith.constant 1.000000e+00 : f32
    %33 = vector.broadcast %cst_14 : f32 to vector<2x16xf32>
    %34 = arith.addf %33, %32 : vector<2x16xf32>
    %35 = arith.divf %33, %34 : vector<2x16xf32>
    %36 = arith.mulf %27, %4 : vector<2x16xf32>
    %37 = arith.mulf %21, %29 : vector<2x16xf32>
    %38 = arith.addf %36, %37 : vector<2x16xf32>
    %39 = math.tanh %38 : vector<2x16xf32>
    %40 = arith.mulf %35, %39 : vector<2x16xf32>
    %41 = vector.extract_strided_slice %15 {offsets = [0, 0], sizes = [2, 16], strides = [1, 1]} : vector<2x64xf32> to vector<2x16xf32>
    %42 = arith.negf %41 : vector<2x16xf32>
    %43 = math.exp %42 : vector<2x16xf32>
    %cst_15 = arith.constant 1.000000e+00 : f32
    %44 = vector.broadcast %cst_15 : f32 to vector<2x16xf32>
    %45 = arith.addf %44, %43 : vector<2x16xf32>
    %46 = arith.divf %44, %45 : vector<2x16xf32>
    %47 = vector.extract_strided_slice %15 {offsets = [0, 16], sizes = [2, 16], strides = [1, 1]} : vector<2x64xf32> to vector<2x16xf32>
    %48 = arith.negf %47 : vector<2x16xf32>
    %49 = math.exp %48 : vector<2x16xf32>
    %cst_16 = arith.constant 1.000000e+00 : f32
    %50 = vector.broadcast %cst_16 : f32 to vector<2x16xf32>
    %51 = arith.addf %50, %49 : vector<2x16xf32>
    %52 = arith.divf %50, %51 : vector<2x16xf32>
    %53 = vector.extract_strided_slice %15 {offsets = [0, 32], sizes = [2, 16], strides = [1, 1]} : vector<2x64xf32> to vector<2x16xf32>
    %54 = math.tanh %53 : vector<2x16xf32>
    %55 = vector.extract_strided_slice %15 {offsets = [0, 48], sizes = [2, 16], strides = [1, 1]} : vector<2x64xf32> to vector<2x16xf32>
    %56 = arith.negf %55 : vector<2x16xf32>
    %57 = math.exp %56 : vector<2x16xf32>
    %cst_17 = arith.constant 1.000000e+00 : f32
    %58 = vector.broadcast %cst_17 : f32 to vector<2x16xf32>
    %59 = arith.addf %58, %57 : vector<2x16xf32>
    %60 = arith.divf %58, %59 : vector<2x16xf32>
    %61 = arith.mulf %52, %4 : vector<2x16xf32>
    %62 = arith.mulf %46, %54 : vector<2x16xf32>
    %63 = arith.addf %61, %62 : vector<2x16xf32>
    %64 = math.tanh %63 : vector<2x16xf32>
    %65 = arith.mulf %60, %64 : vector<2x16xf32>
    %66 = vector.broadcast %c0_i32 : i32 to vector<2x1xi32>
    %67 = arith.cmpi sgt, %0, %66 : vector<2x1xi32>
    %68 = vector.broadcast %5 : i32 to vector<2x1xi32>
    %69 = arith.cmpi sgt, %0, %68 : vector<2x1xi32>
    %cst_18 = arith.constant 0.000000e+00 : f32
    %70 = vector.shape_cast %67 : vector<2x1xi1> to vector<2x1xi1>
    %71 = vector.broadcast %70 : vector<2x1xi1> to vector<2x16xi1>
    %72 = vector.broadcast %cst_18 : f32 to vector<2x16xf32>
    %73 = arith.select %71, %40, %72 : vector<2x16xi1>, vector<2x16xf32>
    %74 = arith.index_cast %c0_i32 : i32 to index
    %c0_19 = arith.constant 0 : index
    %c0_20 = arith.constant 0 : index
    %75 = vector.load %arg6[%74, %c0_19, %c0_20] : memref<8x2x16xf32, #tpu.memory_space<vmem>>, vector<1x2x16xf32>
    %76 = vector.shape_cast %75 : vector<1x2x16xf32> to vector<2x16xf32>
    %77 = vector.shape_cast %73 : vector<2x16xf32> to vector<1x2x16xf32>
    tpu.vector_store %arg6[%74, %c0_19, %c0_20], %77 {strides = array<i32>} : memref<8x2x16xf32, #tpu.memory_space<vmem>>, vector<1x2x16xf32>,
    %cst_21 = arith.constant 0.000000e+00 : f32
    %78 = vector.shape_cast %69 : vector<2x1xi1> to vector<2x1xi1>
    %79 = vector.broadcast %78 : vector<2x1xi1> to vector<2x16xi1>
    %80 = vector.broadcast %cst_21 : f32 to vector<2x16xf32>
    %81 = arith.select %79, %65, %80 : vector<2x16xi1>, vector<2x16xf32>
    %82 = arith.index_cast %5 : i32 to index
    %c0_22 = arith.constant 0 : index
    %c0_23 = arith.constant 0 : index
    %83 = vector.load %arg7[%82, %c0_22, %c0_23] : memref<8x2x16xf32, #tpu.memory_space<vmem>>, vector<1x2x16xf32>
    %84 = vector.shape_cast %83 : vector<1x2x16xf32> to vector<2x16xf32>
    %85 = vector.shape_cast %81 : vector<2x16xf32> to vector<1x2x16xf32>
    tpu.vector_store %arg7[%82, %c0_22, %c0_23], %85 {strides = array<i32>} : memref<8x2x16xf32, #tpu.memory_space<vmem>>, vector<1x2x16xf32>,
    %86 = vector.shape_cast %67 : vector<2x1xi1> to vector<2x1xi1>
    %87 = vector.broadcast %86 : vector<2x1xi1> to vector<2x16xi1>
    %88 = arith.select %87, %40, %3 : vector<2x16xi1>, vector<2x16xf32>
    %89 = vector.shape_cast %67 : vector<2x1xi1> to vector<2x1xi1>
    %90 = vector.broadcast %89 : vector<2x1xi1> to vector<2x16xi1>
    %91 = arith.select %90, %38, %4 : vector<2x16xi1>, vector<2x16xf32>
    %92 = vector.shape_cast %69 : vector<2x1xi1> to vector<2x1xi1>
    %93 = vector.broadcast %92 : vector<2x1xi1> to vector<2x16xi1>
    %94 = arith.select %93, %65, %3 : vector<2x16xi1>, vector<2x16xf32>
    %95 = vector.shape_cast %69 : vector<2x1xi1> to vector<2x1xi1>
    %96 = vector.broadcast %95 : vector<2x1xi1> to vector<2x16xi1>
    %97 = arith.select %96, %63, %4 : vector<2x16xi1>, vector<2x16xf32>
    %c1_i32 = arith.constant 1 : i32
    %c7_i32_24 = arith.constant 7 : i32
    %98 = arith.subi %c7_i32_24, %c1_i32 : i32
    %99 = arith.index_cast %c1_i32 : i32 to index
    %c0_25 = arith.constant 0 : index
    %c0_26 = arith.constant 0 : index
    %100 = vector.load %arg1[%99, %c0_25, %c0_26] : memref<8x2x64xf32, #tpu.memory_space<vmem>>, vector<1x2x64xf32>
    %101 = vector.shape_cast %100 : vector<1x2x64xf32> to vector<2x64xf32>
    %cst_27 = arith.constant dense<0.000000e+00> : vector<2x64xf32>
    %102 = tpu.matmul %88, %1, %cst_27 {dimension_numbers = #tpu.dot_dimension_numbers<[1], [0], [0], [1], [0, 0, 1, 1], [], []>} : vector<2x16xf32>, vector<16x64xf32>, vector<2x64xf32> -> vector<2x64xf32>
    %103 = arith.addf %101, %102 : vector<2x64xf32>
    %104 = arith.index_cast %98 : i32 to index
    %c0_28 = arith.constant 0 : index
    %c0_29 = arith.constant 0 : index
    %105 = vector.load %arg2[%104, %c0_28, %c0_29] : memref<8x2x64xf32, #tpu.memory_space<vmem>>, vector<1x2x64xf32>
    %106 = vector.shape_cast %105 : vector<1x2x64xf32> to vector<2x64xf32>
    %cst_30 = arith.constant dense<0.000000e+00> : vector<2x64xf32>
    %107 = tpu.matmul %94, %2, %cst_30 {dimension_numbers = #tpu.dot_dimension_numbers<[1], [0], [0], [1], [0, 0, 1, 1], [], []>} : vector<2x16xf32>, vector<16x64xf32>, vector<2x64xf32> -> vector<2x64xf32>
    %108 = arith.addf %106, %107 : vector<2x64xf32>
    %109 = vector.extract_strided_slice %103 {offsets = [0, 0], sizes = [2, 16], strides = [1, 1]} : vector<2x64xf32> to vector<2x16xf32>
    %110 = arith.negf %109 : vector<2x16xf32>
    %111 = math.exp %110 : vector<2x16xf32>
    %cst_31 = arith.constant 1.000000e+00 : f32
    %112 = vector.broadcast %cst_31 : f32 to vector<2x16xf32>
    %113 = arith.addf %112, %111 : vector<2x16xf32>
    %114 = arith.divf %112, %113 : vector<2x16xf32>
    %115 = vector.extract_strided_slice %103 {offsets = [0, 16], sizes = [2, 16], strides = [1, 1]} : vector<2x64xf32> to vector<2x16xf32>
    %116 = arith.negf %115 : vector<2x16xf32>
    %117 = math.exp %116 : vector<2x16xf32>
    %cst_32 = arith.constant 1.000000e+00 : f32
    %118 = vector.broadcast %cst_32 : f32 to vector<2x16xf32>
    %119 = arith.addf %118, %117 : vector<2x16xf32>
    %120 = arith.divf %118, %119 : vector<2x16xf32>
    %121 = vector.extract_strided_slice %103 {offsets = [0, 32], sizes = [2, 16], strides = [1, 1]} : vector<2x64xf32> to vector<2x16xf32>
    %122 = math.tanh %121 : vector<2x16xf32>
    %123 = vector.extract_strided_slice %103 {offsets = [0, 48], sizes = [2, 16], strides = [1, 1]} : vector<2x64xf32> to vector<2x16xf32>
    %124 = arith.negf %123 : vector<2x16xf32>
    %125 = math.exp %124 : vector<2x16xf32>
    %cst_33 = arith.constant 1.000000e+00 : f32
    %126 = vector.broadcast %cst_33 : f32 to vector<2x16xf32>
    %127 = arith.addf %126, %125 : vector<2x16xf32>
    %128 = arith.divf %126, %127 : vector<2x16xf32>
    %129 = arith.mulf %120, %91 : vector<2x16xf32>
    %130 = arith.mulf %114, %122 : vector<2x16xf32>
    %131 = arith.addf %129, %130 : vector<2x16xf32>
    %132 = math.tanh %131 : vector<2x16xf32>
    %133 = arith.mulf %128, %132 : vector<2x16xf32>
    %134 = vector.extract_strided_slice %108 {offsets = [0, 0], sizes = [2, 16], strides = [1, 1]} : vector<2x64xf32> to vector<2x16xf32>
    %135 = arith.negf %134 : vector<2x16xf32>
    %136 = math.exp %135 : vector<2x16xf32>
    %cst_34 = arith.constant 1.000000e+00 : f32
    %137 = vector.broadcast %cst_34 : f32 to vector<2x16xf32>
    %138 = arith.addf %137, %136 : vector<2x16xf32>
    %139 = arith.divf %137, %138 : vector<2x16xf32>
    %140 = vector.extract_strided_slice %108 {offsets = [0, 16], sizes = [2, 16], strides = [1, 1]} : vector<2x64xf32> to vector<2x16xf32>
    %141 = arith.negf %140 : vector<2x16xf32>
    %142 = math.exp %141 : vector<2x16xf32>
    %cst_35 = arith.constant 1.000000e+00 : f32
    %143 = vector.broadcast %cst_35 : f32 to vector<2x16xf32>
    %144 = arith.addf %143, %142 : vector<2x16xf32>
    %145 = arith.divf %143, %144 : vector<2x16xf32>
    %146 = vector.extract_strided_slice %108 {offsets = [0, 32], sizes = [2, 16], strides = [1, 1]} : vector<2x64xf32> to vector<2x16xf32>
    %147 = math.tanh %146 : vector<2x16xf32>
    %148 = vector.extract_strided_slice %108 {offsets = [0, 48], sizes = [2, 16], strides = [1, 1]} : vector<2x64xf32> to vector<2x16xf32>
    %149 = arith.negf %148 : vector<2x16xf32>
    %150 = math.exp %149 : vector<2x16xf32>
    %cst_36 = arith.constant 1.000000e+00 : f32
    %151 = vector.broadcast %cst_36 : f32 to vector<2x16xf32>
    %152 = arith.addf %151, %150 : vector<2x16xf32>
    %153 = arith.divf %151, %152 : vector<2x16xf32>
    %154 = arith.mulf %145, %97 : vector<2x16xf32>
    %155 = arith.mulf %139, %147 : vector<2x16xf32>
    %156 = arith.addf %154, %155 : vector<2x16xf32>
    %157 = math.tanh %156 : vector<2x16xf32>
    %158 = arith.mulf %153, %157 : vector<2x16xf32>
    %159 = vector.broadcast %c1_i32 : i32 to vector<2x1xi32>
    %160 = arith.cmpi sgt, %0, %159 : vector<2x1xi32>
    %161 = vector.broadcast %98 : i32 to vector<2x1xi32>
    %162 = arith.cmpi sgt, %0, %161 : vector<2x1xi32>
    %cst_37 = arith.constant 0.000000e+00 : f32
    %163 = vector.shape_cast %160 : vector<2x1xi1> to vector<2x1xi1>
    %164 = vector.broadcast %163 : vector<2x1xi1> to vector<2x16xi1>
    %165 = vector.broadcast %cst_37 : f32 to vector<2x16xf32>
    %166 = arith.select %164, %133, %165 : vector<2x16xi1>, vector<2x16xf32>
    %167 = arith.index_cast %c1_i32 : i32 to index
    %c0_38 = arith.constant 0 : index
    %c0_39 = arith.constant 0 : index
    %168 = vector.load %arg6[%167, %c0_38, %c0_39] : memref<8x2x16xf32, #tpu.memory_space<vmem>>, vector<1x2x16xf32>
    %169 = vector.shape_cast %168 : vector<1x2x16xf32> to vector<2x16xf32>
    %170 = vector.shape_cast %166 : vector<2x16xf32> to vector<1x2x16xf32>
    tpu.vector_store %arg6[%167, %c0_38, %c0_39], %170 {strides = array<i32>} : memref<8x2x16xf32, #tpu.memory_space<vmem>>, vector<1x2x16xf32>,
    %cst_40 = arith.constant 0.000000e+00 : f32
    %171 = vector.shape_cast %162 : vector<2x1xi1> to vector<2x1xi1>
    %172 = vector.broadcast %171 : vector<2x1xi1> to vector<2x16xi1>
    %173 = vector.broadcast %cst_40 : f32 to vector<2x16xf32>
    %174 = arith.select %172, %158, %173 : vector<2x16xi1>, vector<2x16xf32>
    %175 = arith.index_cast %98 : i32 to index
    %c0_41 = arith.constant 0 : index
    %c0_42 = arith.constant 0 : index
    %176 = vector.load %arg7[%175, %c0_41, %c0_42] : memref<8x2x16xf32, #tpu.memory_space<vmem>>, vector<1x2x16xf32>
    %177 = vector.shape_cast %176 : vector<1x2x16xf32> to vector<2x16xf32>
    %178 = vector.shape_cast %174 : vector<2x16xf32> to vector<1x2x16xf32>
    tpu.vector_store %arg7[%175, %c0_41, %c0_42], %178 {strides = array<i32>} : memref<8x2x16xf32, #tpu.memory_space<vmem>>, vector<1x2x16xf32>,
    %179 = vector.shape_cast %160 : vector<2x1xi1> to vector<2x1xi1>
    %180 = vector.broadcast %179 : vector<2x1xi1> to vector<2x16xi1>
    %181 = arith.select %180, %133, %88 : vector<2x16xi1>, vector<2x16xf32>
    %182 = vector.shape_cast %160 : vector<2x1xi1> to vector<2x1xi1>
    %183 = vector.broadcast %182 : vector<2x1xi1> to vector<2x16xi1>
    %184 = arith.select %183, %131, %91 : vector<2x16xi1>, vector<2x16xf32>
    %185 = vector.shape_cast %162 : vector<2x1xi1> to vector<2x1xi1>
    %186 = vector.broadcast %185 : vector<2x1xi1> to vector<2x16xi1>
    %187 = arith.select %186, %158, %94 : vector<2x16xi1>, vector<2x16xf32>
    %188 = vector.shape_cast %162 : vector<2x1xi1> to vector<2x1xi1>
    %189 = vector.broadcast %188 : vector<2x1xi1> to vector<2x16xi1>
    %190 = arith.select %189, %156, %97 : vector<2x16xi1>, vector<2x16xf32>
    %c2_i32 = arith.constant 2 : i32
    %c7_i32_43 = arith.constant 7 : i32
    %191 = arith.subi %c7_i32_43, %c2_i32 : i32
    %192 = arith.index_cast %c2_i32 : i32 to index
    %c0_44 = arith.constant 0 : index
    %c0_45 = arith.constant 0 : index
    %193 = vector.load %arg1[%192, %c0_44, %c0_45] : memref<8x2x64xf32, #tpu.memory_space<vmem>>, vector<1x2x64xf32>
    %194 = vector.shape_cast %193 : vector<1x2x64xf32> to vector<2x64xf32>
    %cst_46 = arith.constant dense<0.000000e+00> : vector<2x64xf32>
    %195 = tpu.matmul %181, %1, %cst_46 {dimension_numbers = #tpu.dot_dimension_numbers<[1], [0], [0], [1], [0, 0, 1, 1], [], []>} : vector<2x16xf32>, vector<16x64xf32>, vector<2x64xf32> -> vector<2x64xf32>
    %196 = arith.addf %194, %195 : vector<2x64xf32>
    %197 = arith.index_cast %191 : i32 to index
    %c0_47 = arith.constant 0 : index
    %c0_48 = arith.constant 0 : index
    %198 = vector.load %arg2[%197, %c0_47, %c0_48] : memref<8x2x64xf32, #tpu.memory_space<vmem>>, vector<1x2x64xf32>
    %199 = vector.shape_cast %198 : vector<1x2x64xf32> to vector<2x64xf32>
    %cst_49 = arith.constant dense<0.000000e+00> : vector<2x64xf32>
    %200 = tpu.matmul %187, %2, %cst_49 {dimension_numbers = #tpu.dot_dimension_numbers<[1], [0], [0], [1], [0, 0, 1, 1], [], []>} : vector<2x16xf32>, vector<16x64xf32>, vector<2x64xf32> -> vector<2x64xf32>
    %201 = arith.addf %199, %200 : vector<2x64xf32>
    %202 = vector.extract_strided_slice %196 {offsets = [0, 0], sizes = [2, 16], strides = [1, 1]} : vector<2x64xf32> to vector<2x16xf32>
    %203 = arith.negf %202 : vector<2x16xf32>
    %204 = math.exp %203 : vector<2x16xf32>
    %cst_50 = arith.constant 1.000000e+00 : f32
    %205 = vector.broadcast %cst_50 : f32 to vector<2x16xf32>
    %206 = arith.addf %205, %204 : vector<2x16xf32>
    %207 = arith.divf %205, %206 : vector<2x16xf32>
    %208 = vector.extract_strided_slice %196 {offsets = [0, 16], sizes = [2, 16], strides = [1, 1]} : vector<2x64xf32> to vector<2x16xf32>
    %209 = arith.negf %208 : vector<2x16xf32>
    %210 = math.exp %209 : vector<2x16xf32>
    %cst_51 = arith.constant 1.000000e+00 : f32
    %211 = vector.broadcast %cst_51 : f32 to vector<2x16xf32>
    %212 = arith.addf %211, %210 : vector<2x16xf32>
    %213 = arith.divf %211, %212 : vector<2x16xf32>
    %214 = vector.extract_strided_slice %196 {offsets = [0, 32], sizes = [2, 16], strides = [1, 1]} : vector<2x64xf32> to vector<2x16xf32>
    %215 = math.tanh %214 : vector<2x16xf32>
    %216 = vector.extract_strided_slice %196 {offsets = [0, 48], sizes = [2, 16], strides = [1, 1]} : vector<2x64xf32> to vector<2x16xf32>
    %217 = arith.negf %216 : vector<2x16xf32>
    %218 = math.exp %217 : vector<2x16xf32>
    %cst_52 = arith.constant 1.000000e+00 : f32
    %219 = vector.broadcast %cst_52 : f32 to vector<2x16xf32>
    %220 = arith.addf %219, %218 : vector<2x16xf32>
    %221 = arith.divf %219, %220 : vector<2x16xf32>
    %222 = arith.mulf %213, %184 : vector<2x16xf32>
    %223 = arith.mulf %207, %215 : vector<2x16xf32>
    %224 = arith.addf %222, %223 : vector<2x16xf32>
    %225 = math.tanh %224 : vector<2x16xf32>
    %226 = arith.mulf %221, %225 : vector<2x16xf32>
    %227 = vector.extract_strided_slice %201 {offsets = [0, 0], sizes = [2, 16], strides = [1, 1]} : vector<2x64xf32> to vector<2x16xf32>
    %228 = arith.negf %227 : vector<2x16xf32>
    %229 = math.exp %228 : vector<2x16xf32>
    %cst_53 = arith.constant 1.000000e+00 : f32
    %230 = vector.broadcast %cst_53 : f32 to vector<2x16xf32>
    %231 = arith.addf %230, %229 : vector<2x16xf32>
    %232 = arith.divf %230, %231 : vector<2x16xf32>
    %233 = vector.extract_strided_slice %201 {offsets = [0, 16], sizes = [2, 16], strides = [1, 1]} : vector<2x64xf32> to vector<2x16xf32>
    %234 = arith.negf %233 : vector<2x16xf32>
    %235 = math.exp %234 : vector<2x16xf32>
    %cst_54 = arith.constant 1.000000e+00 : f32
    %236 = vector.broadcast %cst_54 : f32 to vector<2x16xf32>
    %237 = arith.addf %236, %235 : vector<2x16xf32>
    %238 = arith.divf %236, %237 : vector<2x16xf32>
    %239 = vector.extract_strided_slice %201 {offsets = [0, 32], sizes = [2, 16], strides = [1, 1]} : vector<2x64xf32> to vector<2x16xf32>
    %240 = math.tanh %239 : vector<2x16xf32>
    %241 = vector.extract_strided_slice %201 {offsets = [0, 48], sizes = [2, 16], strides = [1, 1]} : vector<2x64xf32> to vector<2x16xf32>
    %242 = arith.negf %241 : vector<2x16xf32>
    %243 = math.exp %242 : vector<2x16xf32>
    %cst_55 = arith.constant 1.000000e+00 : f32
    %244 = vector.broadcast %cst_55 : f32 to vector<2x16xf32>
    %245 = arith.addf %244, %243 : vector<2x16xf32>
    %246 = arith.divf %244, %245 : vector<2x16xf32>
    %247 = arith.mulf %238, %190 : vector<2x16xf32>
    %248 = arith.mulf %232, %240 : vector<2x16xf32>
    %249 = arith.addf %247, %248 : vector<2x16xf32>
    %250 = math.tanh %249 : vector<2x16xf32>
    %251 = arith.mulf %246, %250 : vector<2x16xf32>
    %252 = vector.broadcast %c2_i32 : i32 to vector<2x1xi32>
    %253 = arith.cmpi sgt, %0, %252 : vector<2x1xi32>
    %254 = vector.broadcast %191 : i32 to vector<2x1xi32>
    %255 = arith.cmpi sgt, %0, %254 : vector<2x1xi32>
    %cst_56 = arith.constant 0.000000e+00 : f32
    %256 = vector.shape_cast %253 : vector<2x1xi1> to vector<2x1xi1>
    %257 = vector.broadcast %256 : vector<2x1xi1> to vector<2x16xi1>
    %258 = vector.broadcast %cst_56 : f32 to vector<2x16xf32>
    %259 = arith.select %257, %226, %258 : vector<2x16xi1>, vector<2x16xf32>
    %260 = arith.index_cast %c2_i32 : i32 to index
    %c0_57 = arith.constant 0 : index
    %c0_58 = arith.constant 0 : index
    %261 = vector.load %arg6[%260, %c0_57, %c0_58] : memref<8x2x16xf32, #tpu.memory_space<vmem>>, vector<1x2x16xf32>
    %262 = vector.shape_cast %261 : vector<1x2x16xf32> to vector<2x16xf32>
    %263 = vector.shape_cast %259 : vector<2x16xf32> to vector<1x2x16xf32>
    tpu.vector_store %arg6[%260, %c0_57, %c0_58], %263 {strides = array<i32>} : memref<8x2x16xf32, #tpu.memory_space<vmem>>, vector<1x2x16xf32>,
    %cst_59 = arith.constant 0.000000e+00 : f32
    %264 = vector.shape_cast %255 : vector<2x1xi1> to vector<2x1xi1>
    %265 = vector.broadcast %264 : vector<2x1xi1> to vector<2x16xi1>
    %266 = vector.broadcast %cst_59 : f32 to vector<2x16xf32>
    %267 = arith.select %265, %251, %266 : vector<2x16xi1>, vector<2x16xf32>
    %268 = arith.index_cast %191 : i32 to index
    %c0_60 = arith.constant 0 : index
    %c0_61 = arith.constant 0 : index
    %269 = vector.load %arg7[%268, %c0_60, %c0_61] : memref<8x2x16xf32, #tpu.memory_space<vmem>>, vector<1x2x16xf32>
    %270 = vector.shape_cast %269 : vector<1x2x16xf32> to vector<2x16xf32>
    %271 = vector.shape_cast %267 : vector<2x16xf32> to vector<1x2x16xf32>
    tpu.vector_store %arg7[%268, %c0_60, %c0_61], %271 {strides = array<i32>} : memref<8x2x16xf32, #tpu.memory_space<vmem>>, vector<1x2x16xf32>,
    %272 = vector.shape_cast %253 : vector<2x1xi1> to vector<2x1xi1>
    %273 = vector.broadcast %272 : vector<2x1xi1> to vector<2x16xi1>
    %274 = arith.select %273, %226, %181 : vector<2x16xi1>, vector<2x16xf32>
    %275 = vector.shape_cast %253 : vector<2x1xi1> to vector<2x1xi1>
    %276 = vector.broadcast %275 : vector<2x1xi1> to vector<2x16xi1>
    %277 = arith.select %276, %224, %184 : vector<2x16xi1>, vector<2x16xf32>
    %278 = vector.shape_cast %255 : vector<2x1xi1> to vector<2x1xi1>
    %279 = vector.broadcast %278 : vector<2x1xi1> to vector<2x16xi1>
    %280 = arith.select %279, %251, %187 : vector<2x16xi1>, vector<2x16xf32>
    %281 = vector.shape_cast %255 : vector<2x1xi1> to vector<2x1xi1>
    %282 = vector.broadcast %281 : vector<2x1xi1> to vector<2x16xi1>
    %283 = arith.select %282, %249, %190 : vector<2x16xi1>, vector<2x16xf32>
    %c3_i32 = arith.constant 3 : i32
    %c7_i32_62 = arith.constant 7 : i32
    %284 = arith.subi %c7_i32_62, %c3_i32 : i32
    %285 = arith.index_cast %c3_i32 : i32 to index
    %c0_63 = arith.constant 0 : index
    %c0_64 = arith.constant 0 : index
    %286 = vector.load %arg1[%285, %c0_63, %c0_64] : memref<8x2x64xf32, #tpu.memory_space<vmem>>, vector<1x2x64xf32>
    %287 = vector.shape_cast %286 : vector<1x2x64xf32> to vector<2x64xf32>
    %cst_65 = arith.constant dense<0.000000e+00> : vector<2x64xf32>
    %288 = tpu.matmul %274, %1, %cst_65 {dimension_numbers = #tpu.dot_dimension_numbers<[1], [0], [0], [1], [0, 0, 1, 1], [], []>} : vector<2x16xf32>, vector<16x64xf32>, vector<2x64xf32> -> vector<2x64xf32>
    %289 = arith.addf %287, %288 : vector<2x64xf32>
    %290 = arith.index_cast %284 : i32 to index
    %c0_66 = arith.constant 0 : index
    %c0_67 = arith.constant 0 : index
    %291 = vector.load %arg2[%290, %c0_66, %c0_67] : memref<8x2x64xf32, #tpu.memory_space<vmem>>, vector<1x2x64xf32>
    %292 = vector.shape_cast %291 : vector<1x2x64xf32> to vector<2x64xf32>
    %cst_68 = arith.constant dense<0.000000e+00> : vector<2x64xf32>
    %293 = tpu.matmul %280, %2, %cst_68 {dimension_numbers = #tpu.dot_dimension_numbers<[1], [0], [0], [1], [0, 0, 1, 1], [], []>} : vector<2x16xf32>, vector<16x64xf32>, vector<2x64xf32> -> vector<2x64xf32>
    %294 = arith.addf %292, %293 : vector<2x64xf32>
    %295 = vector.extract_strided_slice %289 {offsets = [0, 0], sizes = [2, 16], strides = [1, 1]} : vector<2x64xf32> to vector<2x16xf32>
    %296 = arith.negf %295 : vector<2x16xf32>
    %297 = math.exp %296 : vector<2x16xf32>
    %cst_69 = arith.constant 1.000000e+00 : f32
    %298 = vector.broadcast %cst_69 : f32 to vector<2x16xf32>
    %299 = arith.addf %298, %297 : vector<2x16xf32>
    %300 = arith.divf %298, %299 : vector<2x16xf32>
    %301 = vector.extract_strided_slice %289 {offsets = [0, 16], sizes = [2, 16], strides = [1, 1]} : vector<2x64xf32> to vector<2x16xf32>
    %302 = arith.negf %301 : vector<2x16xf32>
    %303 = math.exp %302 : vector<2x16xf32>
    %cst_70 = arith.constant 1.000000e+00 : f32
    %304 = vector.broadcast %cst_70 : f32 to vector<2x16xf32>
    %305 = arith.addf %304, %303 : vector<2x16xf32>
    %306 = arith.divf %304, %305 : vector<2x16xf32>
    %307 = vector.extract_strided_slice %289 {offsets = [0, 32], sizes = [2, 16], strides = [1, 1]} : vector<2x64xf32> to vector<2x16xf32>
    %308 = math.tanh %307 : vector<2x16xf32>
    %309 = vector.extract_strided_slice %289 {offsets = [0, 48], sizes = [2, 16], strides = [1, 1]} : vector<2x64xf32> to vector<2x16xf32>
    %310 = arith.negf %309 : vector<2x16xf32>
    %311 = math.exp %310 : vector<2x16xf32>
    %cst_71 = arith.constant 1.000000e+00 : f32
    %312 = vector.broadcast %cst_71 : f32 to vector<2x16xf32>
    %313 = arith.addf %312, %311 : vector<2x16xf32>
    %314 = arith.divf %312, %313 : vector<2x16xf32>
    %315 = arith.mulf %306, %277 : vector<2x16xf32>
    %316 = arith.mulf %300, %308 : vector<2x16xf32>
    %317 = arith.addf %315, %316 : vector<2x16xf32>
    %318 = math.tanh %317 : vector<2x16xf32>
    %319 = arith.mulf %314, %318 : vector<2x16xf32>
    %320 = vector.extract_strided_slice %294 {offsets = [0, 0], sizes = [2, 16], strides = [1, 1]} : vector<2x64xf32> to vector<2x16xf32>
    %321 = arith.negf %320 : vector<2x16xf32>
    %322 = math.exp %321 : vector<2x16xf32>
    %cst_72 = arith.constant 1.000000e+00 : f32
    %323 = vector.broadcast %cst_72 : f32 to vector<2x16xf32>
    %324 = arith.addf %323, %322 : vector<2x16xf32>
    %325 = arith.divf %323, %324 : vector<2x16xf32>
    %326 = vector.extract_strided_slice %294 {offsets = [0, 16], sizes = [2, 16], strides = [1, 1]} : vector<2x64xf32> to vector<2x16xf32>
    %327 = arith.negf %326 : vector<2x16xf32>
    %328 = math.exp %327 : vector<2x16xf32>
    %cst_73 = arith.constant 1.000000e+00 : f32
    %329 = vector.broadcast %cst_73 : f32 to vector<2x16xf32>
    %330 = arith.addf %329, %328 : vector<2x16xf32>
    %331 = arith.divf %329, %330 : vector<2x16xf32>
    %332 = vector.extract_strided_slice %294 {offsets = [0, 32], sizes = [2, 16], strides = [1, 1]} : vector<2x64xf32> to vector<2x16xf32>
    %333 = math.tanh %332 : vector<2x16xf32>
    %334 = vector.extract_strided_slice %294 {offsets = [0, 48], sizes = [2, 16], strides = [1, 1]} : vector<2x64xf32> to vector<2x16xf32>
    %335 = arith.negf %334 : vector<2x16xf32>
    %336 = math.exp %335 : vector<2x16xf32>
    %cst_74 = arith.constant 1.000000e+00 : f32
    %337 = vector.broadcast %cst_74 : f32 to vector<2x16xf32>
    %338 = arith.addf %337, %336 : vector<2x16xf32>
    %339 = arith.divf %337, %338 : vector<2x16xf32>
    %340 = arith.mulf %331, %283 : vector<2x16xf32>
    %341 = arith.mulf %325, %333 : vector<2x16xf32>
    %342 = arith.addf %340, %341 : vector<2x16xf32>
    %343 = math.tanh %342 : vector<2x16xf32>
    %344 = arith.mulf %339, %343 : vector<2x16xf32>
    %345 = vector.broadcast %c3_i32 : i32 to vector<2x1xi32>
    %346 = arith.cmpi sgt, %0, %345 : vector<2x1xi32>
    %347 = vector.broadcast %284 : i32 to vector<2x1xi32>
    %348 = arith.cmpi sgt, %0, %347 : vector<2x1xi32>
    %cst_75 = arith.constant 0.000000e+00 : f32
    %349 = vector.shape_cast %346 : vector<2x1xi1> to vector<2x1xi1>
    %350 = vector.broadcast %349 : vector<2x1xi1> to vector<2x16xi1>
    %351 = vector.broadcast %cst_75 : f32 to vector<2x16xf32>
    %352 = arith.select %350, %319, %351 : vector<2x16xi1>, vector<2x16xf32>
    %353 = arith.index_cast %c3_i32 : i32 to index
    %c0_76 = arith.constant 0 : index
    %c0_77 = arith.constant 0 : index
    %354 = vector.load %arg6[%353, %c0_76, %c0_77] : memref<8x2x16xf32, #tpu.memory_space<vmem>>, vector<1x2x16xf32>
    %355 = vector.shape_cast %354 : vector<1x2x16xf32> to vector<2x16xf32>
    %356 = vector.shape_cast %352 : vector<2x16xf32> to vector<1x2x16xf32>
    tpu.vector_store %arg6[%353, %c0_76, %c0_77], %356 {strides = array<i32>} : memref<8x2x16xf32, #tpu.memory_space<vmem>>, vector<1x2x16xf32>,
    %cst_78 = arith.constant 0.000000e+00 : f32
    %357 = vector.shape_cast %348 : vector<2x1xi1> to vector<2x1xi1>
    %358 = vector.broadcast %357 : vector<2x1xi1> to vector<2x16xi1>
    %359 = vector.broadcast %cst_78 : f32 to vector<2x16xf32>
    %360 = arith.select %358, %344, %359 : vector<2x16xi1>, vector<2x16xf32>
    %361 = arith.index_cast %284 : i32 to index
    %c0_79 = arith.constant 0 : index
    %c0_80 = arith.constant 0 : index
    %362 = vector.load %arg7[%361, %c0_79, %c0_80] : memref<8x2x16xf32, #tpu.memory_space<vmem>>, vector<1x2x16xf32>
    %363 = vector.shape_cast %362 : vector<1x2x16xf32> to vector<2x16xf32>
    %364 = vector.shape_cast %360 : vector<2x16xf32> to vector<1x2x16xf32>
    tpu.vector_store %arg7[%361, %c0_79, %c0_80], %364 {strides = array<i32>} : memref<8x2x16xf32, #tpu.memory_space<vmem>>, vector<1x2x16xf32>,
    %365 = vector.shape_cast %346 : vector<2x1xi1> to vector<2x1xi1>
    %366 = vector.broadcast %365 : vector<2x1xi1> to vector<2x16xi1>
    %367 = arith.select %366, %319, %274 : vector<2x16xi1>, vector<2x16xf32>
    %368 = vector.shape_cast %346 : vector<2x1xi1> to vector<2x1xi1>
    %369 = vector.broadcast %368 : vector<2x1xi1> to vector<2x16xi1>
    %370 = arith.select %369, %317, %277 : vector<2x16xi1>, vector<2x16xf32>
    %371 = vector.shape_cast %348 : vector<2x1xi1> to vector<2x1xi1>
    %372 = vector.broadcast %371 : vector<2x1xi1> to vector<2x16xi1>
    %373 = arith.select %372, %344, %280 : vector<2x16xi1>, vector<2x16xf32>
    %374 = vector.shape_cast %348 : vector<2x1xi1> to vector<2x1xi1>
    %375 = vector.broadcast %374 : vector<2x1xi1> to vector<2x16xi1>
    %376 = arith.select %375, %342, %283 : vector<2x16xi1>, vector<2x16xf32>
    %c4_i32 = arith.constant 4 : i32
    %c7_i32_81 = arith.constant 7 : i32
    %377 = arith.subi %c7_i32_81, %c4_i32 : i32
    %378 = arith.index_cast %c4_i32 : i32 to index
    %c0_82 = arith.constant 0 : index
    %c0_83 = arith.constant 0 : index
    %379 = vector.load %arg1[%378, %c0_82, %c0_83] : memref<8x2x64xf32, #tpu.memory_space<vmem>>, vector<1x2x64xf32>
    %380 = vector.shape_cast %379 : vector<1x2x64xf32> to vector<2x64xf32>
    %cst_84 = arith.constant dense<0.000000e+00> : vector<2x64xf32>
    %381 = tpu.matmul %367, %1, %cst_84 {dimension_numbers = #tpu.dot_dimension_numbers<[1], [0], [0], [1], [0, 0, 1, 1], [], []>} : vector<2x16xf32>, vector<16x64xf32>, vector<2x64xf32> -> vector<2x64xf32>
    %382 = arith.addf %380, %381 : vector<2x64xf32>
    %383 = arith.index_cast %377 : i32 to index
    %c0_85 = arith.constant 0 : index
    %c0_86 = arith.constant 0 : index
    %384 = vector.load %arg2[%383, %c0_85, %c0_86] : memref<8x2x64xf32, #tpu.memory_space<vmem>>, vector<1x2x64xf32>
    %385 = vector.shape_cast %384 : vector<1x2x64xf32> to vector<2x64xf32>
    %cst_87 = arith.constant dense<0.000000e+00> : vector<2x64xf32>
    %386 = tpu.matmul %373, %2, %cst_87 {dimension_numbers = #tpu.dot_dimension_numbers<[1], [0], [0], [1], [0, 0, 1, 1], [], []>} : vector<2x16xf32>, vector<16x64xf32>, vector<2x64xf32> -> vector<2x64xf32>
    %387 = arith.addf %385, %386 : vector<2x64xf32>
    %388 = vector.extract_strided_slice %382 {offsets = [0, 0], sizes = [2, 16], strides = [1, 1]} : vector<2x64xf32> to vector<2x16xf32>
    %389 = arith.negf %388 : vector<2x16xf32>
    %390 = math.exp %389 : vector<2x16xf32>
    %cst_88 = arith.constant 1.000000e+00 : f32
    %391 = vector.broadcast %cst_88 : f32 to vector<2x16xf32>
    %392 = arith.addf %391, %390 : vector<2x16xf32>
    %393 = arith.divf %391, %392 : vector<2x16xf32>
    %394 = vector.extract_strided_slice %382 {offsets = [0, 16], sizes = [2, 16], strides = [1, 1]} : vector<2x64xf32> to vector<2x16xf32>
    %395 = arith.negf %394 : vector<2x16xf32>
    %396 = math.exp %395 : vector<2x16xf32>
    %cst_89 = arith.constant 1.000000e+00 : f32
    %397 = vector.broadcast %cst_89 : f32 to vector<2x16xf32>
    %398 = arith.addf %397, %396 : vector<2x16xf32>
    %399 = arith.divf %397, %398 : vector<2x16xf32>
    %400 = vector.extract_strided_slice %382 {offsets = [0, 32], sizes = [2, 16], strides = [1, 1]} : vector<2x64xf32> to vector<2x16xf32>
    %401 = math.tanh %400 : vector<2x16xf32>
    %402 = vector.extract_strided_slice %382 {offsets = [0, 48], sizes = [2, 16], strides = [1, 1]} : vector<2x64xf32> to vector<2x16xf32>
    %403 = arith.negf %402 : vector<2x16xf32>
    %404 = math.exp %403 : vector<2x16xf32>
    %cst_90 = arith.constant 1.000000e+00 : f32
    %405 = vector.broadcast %cst_90 : f32 to vector<2x16xf32>
    %406 = arith.addf %405, %404 : vector<2x16xf32>
    %407 = arith.divf %405, %406 : vector<2x16xf32>
    %408 = arith.mulf %399, %370 : vector<2x16xf32>
    %409 = arith.mulf %393, %401 : vector<2x16xf32>
    %410 = arith.addf %408, %409 : vector<2x16xf32>
    %411 = math.tanh %410 : vector<2x16xf32>
    %412 = arith.mulf %407, %411 : vector<2x16xf32>
    %413 = vector.extract_strided_slice %387 {offsets = [0, 0], sizes = [2, 16], strides = [1, 1]} : vector<2x64xf32> to vector<2x16xf32>
    %414 = arith.negf %413 : vector<2x16xf32>
    %415 = math.exp %414 : vector<2x16xf32>
    %cst_91 = arith.constant 1.000000e+00 : f32
    %416 = vector.broadcast %cst_91 : f32 to vector<2x16xf32>
    %417 = arith.addf %416, %415 : vector<2x16xf32>
    %418 = arith.divf %416, %417 : vector<2x16xf32>
    %419 = vector.extract_strided_slice %387 {offsets = [0, 16], sizes = [2, 16], strides = [1, 1]} : vector<2x64xf32> to vector<2x16xf32>
    %420 = arith.negf %419 : vector<2x16xf32>
    %421 = math.exp %420 : vector<2x16xf32>
    %cst_92 = arith.constant 1.000000e+00 : f32
    %422 = vector.broadcast %cst_92 : f32 to vector<2x16xf32>
    %423 = arith.addf %422, %421 : vector<2x16xf32>
    %424 = arith.divf %422, %423 : vector<2x16xf32>
    %425 = vector.extract_strided_slice %387 {offsets = [0, 32], sizes = [2, 16], strides = [1, 1]} : vector<2x64xf32> to vector<2x16xf32>
    %426 = math.tanh %425 : vector<2x16xf32>
    %427 = vector.extract_strided_slice %387 {offsets = [0, 48], sizes = [2, 16], strides = [1, 1]} : vector<2x64xf32> to vector<2x16xf32>
    %428 = arith.negf %427 : vector<2x16xf32>
    %429 = math.exp %428 : vector<2x16xf32>
    %cst_93 = arith.constant 1.000000e+00 : f32
    %430 = vector.broadcast %cst_93 : f32 to vector<2x16xf32>
    %431 = arith.addf %430, %429 : vector<2x16xf32>
    %432 = arith.divf %430, %431 : vector<2x16xf32>
    %433 = arith.mulf %424, %376 : vector<2x16xf32>
    %434 = arith.mulf %418, %426 : vector<2x16xf32>
    %435 = arith.addf %433, %434 : vector<2x16xf32>
    %436 = math.tanh %435 : vector<2x16xf32>
    %437 = arith.mulf %432, %436 : vector<2x16xf32>
    %438 = vector.broadcast %c4_i32 : i32 to vector<2x1xi32>
    %439 = arith.cmpi sgt, %0, %438 : vector<2x1xi32>
    %440 = vector.broadcast %377 : i32 to vector<2x1xi32>
    %441 = arith.cmpi sgt, %0, %440 : vector<2x1xi32>
    %cst_94 = arith.constant 0.000000e+00 : f32
    %442 = vector.shape_cast %439 : vector<2x1xi1> to vector<2x1xi1>
    %443 = vector.broadcast %442 : vector<2x1xi1> to vector<2x16xi1>
    %444 = vector.broadcast %cst_94 : f32 to vector<2x16xf32>
    %445 = arith.select %443, %412, %444 : vector<2x16xi1>, vector<2x16xf32>
    %446 = arith.index_cast %c4_i32 : i32 to index
    %c0_95 = arith.constant 0 : index
    %c0_96 = arith.constant 0 : index
    %447 = vector.load %arg6[%446, %c0_95, %c0_96] : memref<8x2x16xf32, #tpu.memory_space<vmem>>, vector<1x2x16xf32>
    %448 = vector.shape_cast %447 : vector<1x2x16xf32> to vector<2x16xf32>
    %449 = vector.shape_cast %445 : vector<2x16xf32> to vector<1x2x16xf32>
    tpu.vector_store %arg6[%446, %c0_95, %c0_96], %449 {strides = array<i32>} : memref<8x2x16xf32, #tpu.memory_space<vmem>>, vector<1x2x16xf32>,
    %cst_97 = arith.constant 0.000000e+00 : f32
    %450 = vector.shape_cast %441 : vector<2x1xi1> to vector<2x1xi1>
    %451 = vector.broadcast %450 : vector<2x1xi1> to vector<2x16xi1>
    %452 = vector.broadcast %cst_97 : f32 to vector<2x16xf32>
    %453 = arith.select %451, %437, %452 : vector<2x16xi1>, vector<2x16xf32>
    %454 = arith.index_cast %377 : i32 to index
    %c0_98 = arith.constant 0 : index
    %c0_99 = arith.constant 0 : index
    %455 = vector.load %arg7[%454, %c0_98, %c0_99] : memref<8x2x16xf32, #tpu.memory_space<vmem>>, vector<1x2x16xf32>
    %456 = vector.shape_cast %455 : vector<1x2x16xf32> to vector<2x16xf32>
    %457 = vector.shape_cast %453 : vector<2x16xf32> to vector<1x2x16xf32>
    tpu.vector_store %arg7[%454, %c0_98, %c0_99], %457 {strides = array<i32>} : memref<8x2x16xf32, #tpu.memory_space<vmem>>, vector<1x2x16xf32>,
    %458 = vector.shape_cast %439 : vector<2x1xi1> to vector<2x1xi1>
    %459 = vector.broadcast %458 : vector<2x1xi1> to vector<2x16xi1>
    %460 = arith.select %459, %412, %367 : vector<2x16xi1>, vector<2x16xf32>
    %461 = vector.shape_cast %439 : vector<2x1xi1> to vector<2x1xi1>
    %462 = vector.broadcast %461 : vector<2x1xi1> to vector<2x16xi1>
    %463 = arith.select %462, %410, %370 : vector<2x16xi1>, vector<2x16xf32>
    %464 = vector.shape_cast %441 : vector<2x1xi1> to vector<2x1xi1>
    %465 = vector.broadcast %464 : vector<2x1xi1> to vector<2x16xi1>
    %466 = arith.select %465, %437, %373 : vector<2x16xi1>, vector<2x16xf32>
    %467 = vector.shape_cast %441 : vector<2x1xi1> to vector<2x1xi1>
    %468 = vector.broadcast %467 : vector<2x1xi1> to vector<2x16xi1>
    %469 = arith.select %468, %435, %376 : vector<2x16xi1>, vector<2x16xf32>
    %c5_i32 = arith.constant 5 : i32
    %c7_i32_100 = arith.constant 7 : i32
    %470 = arith.subi %c7_i32_100, %c5_i32 : i32
    %471 = arith.index_cast %c5_i32 : i32 to index
    %c0_101 = arith.constant 0 : index
    %c0_102 = arith.constant 0 : index
    %472 = vector.load %arg1[%471, %c0_101, %c0_102] : memref<8x2x64xf32, #tpu.memory_space<vmem>>, vector<1x2x64xf32>
    %473 = vector.shape_cast %472 : vector<1x2x64xf32> to vector<2x64xf32>
    %cst_103 = arith.constant dense<0.000000e+00> : vector<2x64xf32>
    %474 = tpu.matmul %460, %1, %cst_103 {dimension_numbers = #tpu.dot_dimension_numbers<[1], [0], [0], [1], [0, 0, 1, 1], [], []>} : vector<2x16xf32>, vector<16x64xf32>, vector<2x64xf32> -> vector<2x64xf32>
    %475 = arith.addf %473, %474 : vector<2x64xf32>
    %476 = arith.index_cast %470 : i32 to index
    %c0_104 = arith.constant 0 : index
    %c0_105 = arith.constant 0 : index
    %477 = vector.load %arg2[%476, %c0_104, %c0_105] : memref<8x2x64xf32, #tpu.memory_space<vmem>>, vector<1x2x64xf32>
    %478 = vector.shape_cast %477 : vector<1x2x64xf32> to vector<2x64xf32>
    %cst_106 = arith.constant dense<0.000000e+00> : vector<2x64xf32>
    %479 = tpu.matmul %466, %2, %cst_106 {dimension_numbers = #tpu.dot_dimension_numbers<[1], [0], [0], [1], [0, 0, 1, 1], [], []>} : vector<2x16xf32>, vector<16x64xf32>, vector<2x64xf32> -> vector<2x64xf32>
    %480 = arith.addf %478, %479 : vector<2x64xf32>
    %481 = vector.extract_strided_slice %475 {offsets = [0, 0], sizes = [2, 16], strides = [1, 1]} : vector<2x64xf32> to vector<2x16xf32>
    %482 = arith.negf %481 : vector<2x16xf32>
    %483 = math.exp %482 : vector<2x16xf32>
    %cst_107 = arith.constant 1.000000e+00 : f32
    %484 = vector.broadcast %cst_107 : f32 to vector<2x16xf32>
    %485 = arith.addf %484, %483 : vector<2x16xf32>
    %486 = arith.divf %484, %485 : vector<2x16xf32>
    %487 = vector.extract_strided_slice %475 {offsets = [0, 16], sizes = [2, 16], strides = [1, 1]} : vector<2x64xf32> to vector<2x16xf32>
    %488 = arith.negf %487 : vector<2x16xf32>
    %489 = math.exp %488 : vector<2x16xf32>
    %cst_108 = arith.constant 1.000000e+00 : f32
    %490 = vector.broadcast %cst_108 : f32 to vector<2x16xf32>
    %491 = arith.addf %490, %489 : vector<2x16xf32>
    %492 = arith.divf %490, %491 : vector<2x16xf32>
    %493 = vector.extract_strided_slice %475 {offsets = [0, 32], sizes = [2, 16], strides = [1, 1]} : vector<2x64xf32> to vector<2x16xf32>
    %494 = math.tanh %493 : vector<2x16xf32>
    %495 = vector.extract_strided_slice %475 {offsets = [0, 48], sizes = [2, 16], strides = [1, 1]} : vector<2x64xf32> to vector<2x16xf32>
    %496 = arith.negf %495 : vector<2x16xf32>
    %497 = math.exp %496 : vector<2x16xf32>
    %cst_109 = arith.constant 1.000000e+00 : f32
    %498 = vector.broadcast %cst_109 : f32 to vector<2x16xf32>
    %499 = arith.addf %498, %497 : vector<2x16xf32>
    %500 = arith.divf %498, %499 : vector<2x16xf32>
    %501 = arith.mulf %492, %463 : vector<2x16xf32>
    %502 = arith.mulf %486, %494 : vector<2x16xf32>
    %503 = arith.addf %501, %502 : vector<2x16xf32>
    %504 = math.tanh %503 : vector<2x16xf32>
    %505 = arith.mulf %500, %504 : vector<2x16xf32>
    %506 = vector.extract_strided_slice %480 {offsets = [0, 0], sizes = [2, 16], strides = [1, 1]} : vector<2x64xf32> to vector<2x16xf32>
    %507 = arith.negf %506 : vector<2x16xf32>
    %508 = math.exp %507 : vector<2x16xf32>
    %cst_110 = arith.constant 1.000000e+00 : f32
    %509 = vector.broadcast %cst_110 : f32 to vector<2x16xf32>
    %510 = arith.addf %509, %508 : vector<2x16xf32>
    %511 = arith.divf %509, %510 : vector<2x16xf32>
    %512 = vector.extract_strided_slice %480 {offsets = [0, 16], sizes = [2, 16], strides = [1, 1]} : vector<2x64xf32> to vector<2x16xf32>
    %513 = arith.negf %512 : vector<2x16xf32>
    %514 = math.exp %513 : vector<2x16xf32>
    %cst_111 = arith.constant 1.000000e+00 : f32
    %515 = vector.broadcast %cst_111 : f32 to vector<2x16xf32>
    %516 = arith.addf %515, %514 : vector<2x16xf32>
    %517 = arith.divf %515, %516 : vector<2x16xf32>
    %518 = vector.extract_strided_slice %480 {offsets = [0, 32], sizes = [2, 16], strides = [1, 1]} : vector<2x64xf32> to vector<2x16xf32>
    %519 = math.tanh %518 : vector<2x16xf32>
    %520 = vector.extract_strided_slice %480 {offsets = [0, 48], sizes = [2, 16], strides = [1, 1]} : vector<2x64xf32> to vector<2x16xf32>
    %521 = arith.negf %520 : vector<2x16xf32>
    %522 = math.exp %521 : vector<2x16xf32>
    %cst_112 = arith.constant 1.000000e+00 : f32
    %523 = vector.broadcast %cst_112 : f32 to vector<2x16xf32>
    %524 = arith.addf %523, %522 : vector<2x16xf32>
    %525 = arith.divf %523, %524 : vector<2x16xf32>
    %526 = arith.mulf %517, %469 : vector<2x16xf32>
    %527 = arith.mulf %511, %519 : vector<2x16xf32>
    %528 = arith.addf %526, %527 : vector<2x16xf32>
    %529 = math.tanh %528 : vector<2x16xf32>
    %530 = arith.mulf %525, %529 : vector<2x16xf32>
    %531 = vector.broadcast %c5_i32 : i32 to vector<2x1xi32>
    %532 = arith.cmpi sgt, %0, %531 : vector<2x1xi32>
    %533 = vector.broadcast %470 : i32 to vector<2x1xi32>
    %534 = arith.cmpi sgt, %0, %533 : vector<2x1xi32>
    %cst_113 = arith.constant 0.000000e+00 : f32
    %535 = vector.shape_cast %532 : vector<2x1xi1> to vector<2x1xi1>
    %536 = vector.broadcast %535 : vector<2x1xi1> to vector<2x16xi1>
    %537 = vector.broadcast %cst_113 : f32 to vector<2x16xf32>
    %538 = arith.select %536, %505, %537 : vector<2x16xi1>, vector<2x16xf32>
    %539 = arith.index_cast %c5_i32 : i32 to index
    %c0_114 = arith.constant 0 : index
    %c0_115 = arith.constant 0 : index
    %540 = vector.load %arg6[%539, %c0_114, %c0_115] : memref<8x2x16xf32, #tpu.memory_space<vmem>>, vector<1x2x16xf32>
    %541 = vector.shape_cast %540 : vector<1x2x16xf32> to vector<2x16xf32>
    %542 = vector.shape_cast %538 : vector<2x16xf32> to vector<1x2x16xf32>
    tpu.vector_store %arg6[%539, %c0_114, %c0_115], %542 {strides = array<i32>} : memref<8x2x16xf32, #tpu.memory_space<vmem>>, vector<1x2x16xf32>,
    %cst_116 = arith.constant 0.000000e+00 : f32
    %543 = vector.shape_cast %534 : vector<2x1xi1> to vector<2x1xi1>
    %544 = vector.broadcast %543 : vector<2x1xi1> to vector<2x16xi1>
    %545 = vector.broadcast %cst_116 : f32 to vector<2x16xf32>
    %546 = arith.select %544, %530, %545 : vector<2x16xi1>, vector<2x16xf32>
    %547 = arith.index_cast %470 : i32 to index
    %c0_117 = arith.constant 0 : index
    %c0_118 = arith.constant 0 : index
    %548 = vector.load %arg7[%547, %c0_117, %c0_118] : memref<8x2x16xf32, #tpu.memory_space<vmem>>, vector<1x2x16xf32>
    %549 = vector.shape_cast %548 : vector<1x2x16xf32> to vector<2x16xf32>
    %550 = vector.shape_cast %546 : vector<2x16xf32> to vector<1x2x16xf32>
    tpu.vector_store %arg7[%547, %c0_117, %c0_118], %550 {strides = array<i32>} : memref<8x2x16xf32, #tpu.memory_space<vmem>>, vector<1x2x16xf32>,
    %551 = vector.shape_cast %532 : vector<2x1xi1> to vector<2x1xi1>
    %552 = vector.broadcast %551 : vector<2x1xi1> to vector<2x16xi1>
    %553 = arith.select %552, %505, %460 : vector<2x16xi1>, vector<2x16xf32>
    %554 = vector.shape_cast %532 : vector<2x1xi1> to vector<2x1xi1>
    %555 = vector.broadcast %554 : vector<2x1xi1> to vector<2x16xi1>
    %556 = arith.select %555, %503, %463 : vector<2x16xi1>, vector<2x16xf32>
    %557 = vector.shape_cast %534 : vector<2x1xi1> to vector<2x1xi1>
    %558 = vector.broadcast %557 : vector<2x1xi1> to vector<2x16xi1>
    %559 = arith.select %558, %530, %466 : vector<2x16xi1>, vector<2x16xf32>
    %560 = vector.shape_cast %534 : vector<2x1xi1> to vector<2x1xi1>
    %561 = vector.broadcast %560 : vector<2x1xi1> to vector<2x16xi1>
    %562 = arith.select %561, %528, %469 : vector<2x16xi1>, vector<2x16xf32>
    %c6_i32 = arith.constant 6 : i32
    %c7_i32_119 = arith.constant 7 : i32
    %563 = arith.subi %c7_i32_119, %c6_i32 : i32
    %564 = arith.index_cast %c6_i32 : i32 to index
    %c0_120 = arith.constant 0 : index
    %c0_121 = arith.constant 0 : index
    %565 = vector.load %arg1[%564, %c0_120, %c0_121] : memref<8x2x64xf32, #tpu.memory_space<vmem>>, vector<1x2x64xf32>
    %566 = vector.shape_cast %565 : vector<1x2x64xf32> to vector<2x64xf32>
    %cst_122 = arith.constant dense<0.000000e+00> : vector<2x64xf32>
    %567 = tpu.matmul %553, %1, %cst_122 {dimension_numbers = #tpu.dot_dimension_numbers<[1], [0], [0], [1], [0, 0, 1, 1], [], []>} : vector<2x16xf32>, vector<16x64xf32>, vector<2x64xf32> -> vector<2x64xf32>
    %568 = arith.addf %566, %567 : vector<2x64xf32>
    %569 = arith.index_cast %563 : i32 to index
    %c0_123 = arith.constant 0 : index
    %c0_124 = arith.constant 0 : index
    %570 = vector.load %arg2[%569, %c0_123, %c0_124] : memref<8x2x64xf32, #tpu.memory_space<vmem>>, vector<1x2x64xf32>
    %571 = vector.shape_cast %570 : vector<1x2x64xf32> to vector<2x64xf32>
    %cst_125 = arith.constant dense<0.000000e+00> : vector<2x64xf32>
    %572 = tpu.matmul %559, %2, %cst_125 {dimension_numbers = #tpu.dot_dimension_numbers<[1], [0], [0], [1], [0, 0, 1, 1], [], []>} : vector<2x16xf32>, vector<16x64xf32>, vector<2x64xf32> -> vector<2x64xf32>
    %573 = arith.addf %571, %572 : vector<2x64xf32>
    %574 = vector.extract_strided_slice %568 {offsets = [0, 0], sizes = [2, 16], strides = [1, 1]} : vector<2x64xf32> to vector<2x16xf32>
    %575 = arith.negf %574 : vector<2x16xf32>
    %576 = math.exp %575 : vector<2x16xf32>
    %cst_126 = arith.constant 1.000000e+00 : f32
    %577 = vector.broadcast %cst_126 : f32 to vector<2x16xf32>
    %578 = arith.addf %577, %576 : vector<2x16xf32>
    %579 = arith.divf %577, %578 : vector<2x16xf32>
    %580 = vector.extract_strided_slice %568 {offsets = [0, 16], sizes = [2, 16], strides = [1, 1]} : vector<2x64xf32> to vector<2x16xf32>
    %581 = arith.negf %580 : vector<2x16xf32>
    %582 = math.exp %581 : vector<2x16xf32>
    %cst_127 = arith.constant 1.000000e+00 : f32
    %583 = vector.broadcast %cst_127 : f32 to vector<2x16xf32>
    %584 = arith.addf %583, %582 : vector<2x16xf32>
    %585 = arith.divf %583, %584 : vector<2x16xf32>
    %586 = vector.extract_strided_slice %568 {offsets = [0, 32], sizes = [2, 16], strides = [1, 1]} : vector<2x64xf32> to vector<2x16xf32>
    %587 = math.tanh %586 : vector<2x16xf32>
    %588 = vector.extract_strided_slice %568 {offsets = [0, 48], sizes = [2, 16], strides = [1, 1]} : vector<2x64xf32> to vector<2x16xf32>
    %589 = arith.negf %588 : vector<2x16xf32>
    %590 = math.exp %589 : vector<2x16xf32>
    %cst_128 = arith.constant 1.000000e+00 : f32
    %591 = vector.broadcast %cst_128 : f32 to vector<2x16xf32>
    %592 = arith.addf %591, %590 : vector<2x16xf32>
    %593 = arith.divf %591, %592 : vector<2x16xf32>
    %594 = arith.mulf %585, %556 : vector<2x16xf32>
    %595 = arith.mulf %579, %587 : vector<2x16xf32>
    %596 = arith.addf %594, %595 : vector<2x16xf32>
    %597 = math.tanh %596 : vector<2x16xf32>
    %598 = arith.mulf %593, %597 : vector<2x16xf32>
    %599 = vector.extract_strided_slice %573 {offsets = [0, 0], sizes = [2, 16], strides = [1, 1]} : vector<2x64xf32> to vector<2x16xf32>
    %600 = arith.negf %599 : vector<2x16xf32>
    %601 = math.exp %600 : vector<2x16xf32>
    %cst_129 = arith.constant 1.000000e+00 : f32
    %602 = vector.broadcast %cst_129 : f32 to vector<2x16xf32>
    %603 = arith.addf %602, %601 : vector<2x16xf32>
    %604 = arith.divf %602, %603 : vector<2x16xf32>
    %605 = vector.extract_strided_slice %573 {offsets = [0, 16], sizes = [2, 16], strides = [1, 1]} : vector<2x64xf32> to vector<2x16xf32>
    %606 = arith.negf %605 : vector<2x16xf32>
    %607 = math.exp %606 : vector<2x16xf32>
    %cst_130 = arith.constant 1.000000e+00 : f32
    %608 = vector.broadcast %cst_130 : f32 to vector<2x16xf32>
    %609 = arith.addf %608, %607 : vector<2x16xf32>
    %610 = arith.divf %608, %609 : vector<2x16xf32>
    %611 = vector.extract_strided_slice %573 {offsets = [0, 32], sizes = [2, 16], strides = [1, 1]} : vector<2x64xf32> to vector<2x16xf32>
    %612 = math.tanh %611 : vector<2x16xf32>
    %613 = vector.extract_strided_slice %573 {offsets = [0, 48], sizes = [2, 16], strides = [1, 1]} : vector<2x64xf32> to vector<2x16xf32>
    %614 = arith.negf %613 : vector<2x16xf32>
    %615 = math.exp %614 : vector<2x16xf32>
    %cst_131 = arith.constant 1.000000e+00 : f32
    %616 = vector.broadcast %cst_131 : f32 to vector<2x16xf32>
    %617 = arith.addf %616, %615 : vector<2x16xf32>
    %618 = arith.divf %616, %617 : vector<2x16xf32>
    %619 = arith.mulf %610, %562 : vector<2x16xf32>
    %620 = arith.mulf %604, %612 : vector<2x16xf32>
    %621 = arith.addf %619, %620 : vector<2x16xf32>
    %622 = math.tanh %621 : vector<2x16xf32>
    %623 = arith.mulf %618, %622 : vector<2x16xf32>
    %624 = vector.broadcast %c6_i32 : i32 to vector<2x1xi32>
    %625 = arith.cmpi sgt, %0, %624 : vector<2x1xi32>
    %626 = vector.broadcast %563 : i32 to vector<2x1xi32>
    %627 = arith.cmpi sgt, %0, %626 : vector<2x1xi32>
    %cst_132 = arith.constant 0.000000e+00 : f32
    %628 = vector.shape_cast %625 : vector<2x1xi1> to vector<2x1xi1>
    %629 = vector.broadcast %628 : vector<2x1xi1> to vector<2x16xi1>
    %630 = vector.broadcast %cst_132 : f32 to vector<2x16xf32>
    %631 = arith.select %629, %598, %630 : vector<2x16xi1>, vector<2x16xf32>
    %632 = arith.index_cast %c6_i32 : i32 to index
    %c0_133 = arith.constant 0 : index
    %c0_134 = arith.constant 0 : index
    %633 = vector.load %arg6[%632, %c0_133, %c0_134] : memref<8x2x16xf32, #tpu.memory_space<vmem>>, vector<1x2x16xf32>
    %634 = vector.shape_cast %633 : vector<1x2x16xf32> to vector<2x16xf32>
    %635 = vector.shape_cast %631 : vector<2x16xf32> to vector<1x2x16xf32>
    tpu.vector_store %arg6[%632, %c0_133, %c0_134], %635 {strides = array<i32>} : memref<8x2x16xf32, #tpu.memory_space<vmem>>, vector<1x2x16xf32>,
    %cst_135 = arith.constant 0.000000e+00 : f32
    %636 = vector.shape_cast %627 : vector<2x1xi1> to vector<2x1xi1>
    %637 = vector.broadcast %636 : vector<2x1xi1> to vector<2x16xi1>
    %638 = vector.broadcast %cst_135 : f32 to vector<2x16xf32>
    %639 = arith.select %637, %623, %638 : vector<2x16xi1>, vector<2x16xf32>
    %640 = arith.index_cast %563 : i32 to index
    %c0_136 = arith.constant 0 : index
    %c0_137 = arith.constant 0 : index
    %641 = vector.load %arg7[%640, %c0_136, %c0_137] : memref<8x2x16xf32, #tpu.memory_space<vmem>>, vector<1x2x16xf32>
    %642 = vector.shape_cast %641 : vector<1x2x16xf32> to vector<2x16xf32>
    %643 = vector.shape_cast %639 : vector<2x16xf32> to vector<1x2x16xf32>
    tpu.vector_store %arg7[%640, %c0_136, %c0_137], %643 {strides = array<i32>} : memref<8x2x16xf32, #tpu.memory_space<vmem>>, vector<1x2x16xf32>,
    %644 = vector.shape_cast %625 : vector<2x1xi1> to vector<2x1xi1>
    %645 = vector.broadcast %644 : vector<2x1xi1> to vector<2x16xi1>
    %646 = arith.select %645, %598, %553 : vector<2x16xi1>, vector<2x16xf32>
    %647 = vector.shape_cast %625 : vector<2x1xi1> to vector<2x1xi1>
    %648 = vector.broadcast %647 : vector<2x1xi1> to vector<2x16xi1>
    %649 = arith.select %648, %596, %556 : vector<2x16xi1>, vector<2x16xf32>
    %650 = vector.shape_cast %627 : vector<2x1xi1> to vector<2x1xi1>
    %651 = vector.broadcast %650 : vector<2x1xi1> to vector<2x16xi1>
    %652 = arith.select %651, %623, %559 : vector<2x16xi1>, vector<2x16xf32>
    %653 = vector.shape_cast %627 : vector<2x1xi1> to vector<2x1xi1>
    %654 = vector.broadcast %653 : vector<2x1xi1> to vector<2x16xi1>
    %655 = arith.select %654, %621, %562 : vector<2x16xi1>, vector<2x16xf32>
    %c7_i32_138 = arith.constant 7 : i32
    %c7_i32_139 = arith.constant 7 : i32
    %656 = arith.subi %c7_i32_139, %c7_i32_138 : i32
    %657 = arith.index_cast %c7_i32_138 : i32 to index
    %c0_140 = arith.constant 0 : index
    %c0_141 = arith.constant 0 : index
    %658 = vector.load %arg1[%657, %c0_140, %c0_141] : memref<8x2x64xf32, #tpu.memory_space<vmem>>, vector<1x2x64xf32>
    %659 = vector.shape_cast %658 : vector<1x2x64xf32> to vector<2x64xf32>
    %cst_142 = arith.constant dense<0.000000e+00> : vector<2x64xf32>
    %660 = tpu.matmul %646, %1, %cst_142 {dimension_numbers = #tpu.dot_dimension_numbers<[1], [0], [0], [1], [0, 0, 1, 1], [], []>} : vector<2x16xf32>, vector<16x64xf32>, vector<2x64xf32> -> vector<2x64xf32>
    %661 = arith.addf %659, %660 : vector<2x64xf32>
    %662 = arith.index_cast %656 : i32 to index
    %c0_143 = arith.constant 0 : index
    %c0_144 = arith.constant 0 : index
    %663 = vector.load %arg2[%662, %c0_143, %c0_144] : memref<8x2x64xf32, #tpu.memory_space<vmem>>, vector<1x2x64xf32>
    %664 = vector.shape_cast %663 : vector<1x2x64xf32> to vector<2x64xf32>
    %cst_145 = arith.constant dense<0.000000e+00> : vector<2x64xf32>
    %665 = tpu.matmul %652, %2, %cst_145 {dimension_numbers = #tpu.dot_dimension_numbers<[1], [0], [0], [1], [0, 0, 1, 1], [], []>} : vector<2x16xf32>, vector<16x64xf32>, vector<2x64xf32> -> vector<2x64xf32>
    %666 = arith.addf %664, %665 : vector<2x64xf32>
    %667 = vector.extract_strided_slice %661 {offsets = [0, 0], sizes = [2, 16], strides = [1, 1]} : vector<2x64xf32> to vector<2x16xf32>
    %668 = arith.negf %667 : vector<2x16xf32>
    %669 = math.exp %668 : vector<2x16xf32>
    %cst_146 = arith.constant 1.000000e+00 : f32
    %670 = vector.broadcast %cst_146 : f32 to vector<2x16xf32>
    %671 = arith.addf %670, %669 : vector<2x16xf32>
    %672 = arith.divf %670, %671 : vector<2x16xf32>
    %673 = vector.extract_strided_slice %661 {offsets = [0, 16], sizes = [2, 16], strides = [1, 1]} : vector<2x64xf32> to vector<2x16xf32>
    %674 = arith.negf %673 : vector<2x16xf32>
    %675 = math.exp %674 : vector<2x16xf32>
    %cst_147 = arith.constant 1.000000e+00 : f32
    %676 = vector.broadcast %cst_147 : f32 to vector<2x16xf32>
    %677 = arith.addf %676, %675 : vector<2x16xf32>
    %678 = arith.divf %676, %677 : vector<2x16xf32>
    %679 = vector.extract_strided_slice %661 {offsets = [0, 32], sizes = [2, 16], strides = [1, 1]} : vector<2x64xf32> to vector<2x16xf32>
    %680 = math.tanh %679 : vector<2x16xf32>
    %681 = vector.extract_strided_slice %661 {offsets = [0, 48], sizes = [2, 16], strides = [1, 1]} : vector<2x64xf32> to vector<2x16xf32>
    %682 = arith.negf %681 : vector<2x16xf32>
    %683 = math.exp %682 : vector<2x16xf32>
    %cst_148 = arith.constant 1.000000e+00 : f32
    %684 = vector.broadcast %cst_148 : f32 to vector<2x16xf32>
    %685 = arith.addf %684, %683 : vector<2x16xf32>
    %686 = arith.divf %684, %685 : vector<2x16xf32>
    %687 = arith.mulf %678, %649 : vector<2x16xf32>
    %688 = arith.mulf %672, %680 : vector<2x16xf32>
    %689 = arith.addf %687, %688 : vector<2x16xf32>
    %690 = math.tanh %689 : vector<2x16xf32>
    %691 = arith.mulf %686, %690 : vector<2x16xf32>
    %692 = vector.extract_strided_slice %666 {offsets = [0, 0], sizes = [2, 16], strides = [1, 1]} : vector<2x64xf32> to vector<2x16xf32>
    %693 = arith.negf %692 : vector<2x16xf32>
    %694 = math.exp %693 : vector<2x16xf32>
    %cst_149 = arith.constant 1.000000e+00 : f32
    %695 = vector.broadcast %cst_149 : f32 to vector<2x16xf32>
    %696 = arith.addf %695, %694 : vector<2x16xf32>
    %697 = arith.divf %695, %696 : vector<2x16xf32>
    %698 = vector.extract_strided_slice %666 {offsets = [0, 16], sizes = [2, 16], strides = [1, 1]} : vector<2x64xf32> to vector<2x16xf32>
    %699 = arith.negf %698 : vector<2x16xf32>
    %700 = math.exp %699 : vector<2x16xf32>
    %cst_150 = arith.constant 1.000000e+00 : f32
    %701 = vector.broadcast %cst_150 : f32 to vector<2x16xf32>
    %702 = arith.addf %701, %700 : vector<2x16xf32>
    %703 = arith.divf %701, %702 : vector<2x16xf32>
    %704 = vector.extract_strided_slice %666 {offsets = [0, 32], sizes = [2, 16], strides = [1, 1]} : vector<2x64xf32> to vector<2x16xf32>
    %705 = math.tanh %704 : vector<2x16xf32>
    %706 = vector.extract_strided_slice %666 {offsets = [0, 48], sizes = [2, 16], strides = [1, 1]} : vector<2x64xf32> to vector<2x16xf32>
    %707 = arith.negf %706 : vector<2x16xf32>
    %708 = math.exp %707 : vector<2x16xf32>
    %cst_151 = arith.constant 1.000000e+00 : f32
    %709 = vector.broadcast %cst_151 : f32 to vector<2x16xf32>
    %710 = arith.addf %709, %708 : vector<2x16xf32>
    %711 = arith.divf %709, %710 : vector<2x16xf32>
    %712 = arith.mulf %703, %655 : vector<2x16xf32>
    %713 = arith.mulf %697, %705 : vector<2x16xf32>
    %714 = arith.addf %712, %713 : vector<2x16xf32>
    %715 = math.tanh %714 : vector<2x16xf32>
    %716 = arith.mulf %711, %715 : vector<2x16xf32>
    %717 = vector.broadcast %c7_i32_138 : i32 to vector<2x1xi32>
    %718 = arith.cmpi sgt, %0, %717 : vector<2x1xi32>
    %719 = vector.broadcast %656 : i32 to vector<2x1xi32>
    %720 = arith.cmpi sgt, %0, %719 : vector<2x1xi32>
    %cst_152 = arith.constant 0.000000e+00 : f32
    %721 = vector.shape_cast %718 : vector<2x1xi1> to vector<2x1xi1>
    %722 = vector.broadcast %721 : vector<2x1xi1> to vector<2x16xi1>
    %723 = vector.broadcast %cst_152 : f32 to vector<2x16xf32>
    %724 = arith.select %722, %691, %723 : vector<2x16xi1>, vector<2x16xf32>
    %725 = arith.index_cast %c7_i32_138 : i32 to index
    %c0_153 = arith.constant 0 : index
    %c0_154 = arith.constant 0 : index
    %726 = vector.load %arg6[%725, %c0_153, %c0_154] : memref<8x2x16xf32, #tpu.memory_space<vmem>>, vector<1x2x16xf32>
    %727 = vector.shape_cast %726 : vector<1x2x16xf32> to vector<2x16xf32>
    %728 = vector.shape_cast %724 : vector<2x16xf32> to vector<1x2x16xf32>
    tpu.vector_store %arg6[%725, %c0_153, %c0_154], %728 {strides = array<i32>} : memref<8x2x16xf32, #tpu.memory_space<vmem>>, vector<1x2x16xf32>,
    %cst_155 = arith.constant 0.000000e+00 : f32
    %729 = vector.shape_cast %720 : vector<2x1xi1> to vector<2x1xi1>
    %730 = vector.broadcast %729 : vector<2x1xi1> to vector<2x16xi1>
    %731 = vector.broadcast %cst_155 : f32 to vector<2x16xf32>
    %732 = arith.select %730, %716, %731 : vector<2x16xi1>, vector<2x16xf32>
    %733 = arith.index_cast %656 : i32 to index
    %c0_156 = arith.constant 0 : index
    %c0_157 = arith.constant 0 : index
    %734 = vector.load %arg7[%733, %c0_156, %c0_157] : memref<8x2x16xf32, #tpu.memory_space<vmem>>, vector<1x2x16xf32>
    %735 = vector.shape_cast %734 : vector<1x2x16xf32> to vector<2x16xf32>
    %736 = vector.shape_cast %732 : vector<2x16xf32> to vector<1x2x16xf32>
    tpu.vector_store %arg7[%733, %c0_156, %c0_157], %736 {strides = array<i32>} : memref<8x2x16xf32, #tpu.memory_space<vmem>>, vector<1x2x16xf32>,
    %737 = vector.shape_cast %718 : vector<2x1xi1> to vector<2x1xi1>
    %738 = vector.broadcast %737 : vector<2x1xi1> to vector<2x16xi1>
    %739 = arith.select %738, %691, %646 : vector<2x16xi1>, vector<2x16xf32>
    %740 = vector.shape_cast %718 : vector<2x1xi1> to vector<2x1xi1>
    %741 = vector.broadcast %740 : vector<2x1xi1> to vector<2x16xi1>
    %742 = arith.select %741, %689, %649 : vector<2x16xi1>, vector<2x16xf32>
    %743 = vector.shape_cast %720 : vector<2x1xi1> to vector<2x1xi1>
    %744 = vector.broadcast %743 : vector<2x1xi1> to vector<2x16xi1>
    %745 = arith.select %744, %716, %652 : vector<2x16xi1>, vector<2x16xf32>
    %746 = vector.shape_cast %720 : vector<2x1xi1> to vector<2x1xi1>
    %747 = vector.broadcast %746 : vector<2x1xi1> to vector<2x16xi1>
    %748 = arith.select %747, %714, %655 : vector<2x16xi1>, vector<2x16xf32>
    %c8_i32 = arith.constant 8 : i32
    return
  }
  func.func @transform_0(%arg0: i32) -> (i32, i32, i32) {
    %c0_i32 = arith.constant 0 : i32
    %c0_i32_0 = arith.constant 0 : i32
    %c0_i32_1 = arith.constant 0 : i32
    %c0_i32_2 = arith.constant 0 : i32
    return %c0_i32, %c0_i32_0, %c0_i32_1 : i32, i32, i32
  }
  func.func @transform_1(%arg0: i32) -> (i32, i32, i32) {
    %c0_i32 = arith.constant 0 : i32
    %c0_i32_0 = arith.constant 0 : i32
    %c0_i32_1 = arith.constant 0 : i32
    %c0_i32_2 = arith.constant 0 : i32
    return %c0_i32, %c0_i32_0, %c0_i32_1 : i32, i32, i32
  }
  func.func @transform_2(%arg0: i32) -> (i32, i32) {
    %c0_i32 = arith.constant 0 : i32
    %c0_i32_0 = arith.constant 0 : i32
    %c0_i32_1 = arith.constant 0 : i32
    return %c0_i32, %c0_i32_0 : i32, i32
  }
  func.func @transform_3(%arg0: i32) -> (i32, i32) {
    %c0_i32 = arith.constant 0 : i32
    %c0_i32_0 = arith.constant 0 : i32
    %c0_i32_1 = arith.constant 0 : i32
    return %c0_i32, %c0_i32_0 : i32, i32
  }
  func.func @transform_4(%arg0: i32) -> (i32, i32) {
    %c0_i32 = arith.constant 0 : i32
    %c0_i32_0 = arith.constant 0 : i32
    %c0_i32_1 = arith.constant 0 : i32
    return %c0_i32, %c0_i32_0 : i32, i32
  }
  func.func @transform_5(%arg0: i32) -> (i32, i32, i32) {
    %c0_i32 = arith.constant 0 : i32
    %c0_i32_0 = arith.constant 0 : i32
    %c0_i32_1 = arith.constant 0 : i32
    %c0_i32_2 = arith.constant 0 : i32
    return %c0_i32, %c0_i32_0, %c0_i32_1 : i32, i32, i32
  }
  func.func @transform_6(%arg0: i32) -> (i32, i32, i32) {
    %c0_i32 = arith.constant 0 : i32
    %c0_i32_0 = arith.constant 0 : i32
    %c0_i32_1 = arith.constant 0 : i32
    %c0_i32_2 = arith.constant 0 : i32
    return %c0_i32, %c0_i32_0, %c0_i32_1 : i32, i32, i32
  }
}

module attributes {stable_mosaic.version = 11 : i64} {
  func.func @_bilstm_recurrent_kernel(%arg0: i32, %arg1: memref<4x7x64xf32, #tpu.memory_space<vmem>>, %arg2: memref<4x7x64xf32, #tpu.memory_space<vmem>>, %arg3: memref<7x1xi32, #tpu.memory_space<vmem>>, %arg4: memref<16x64xf32, #tpu.memory_space<vmem>>, %arg5: memref<16x64xf32, #tpu.memory_space<vmem>>, %arg6: memref<4x7x16xf32, #tpu.memory_space<vmem>>, %arg7: memref<4x7x16xf32, #tpu.memory_space<vmem>>) attributes {dimension_semantics = [#tpu.dimension_semantics<arbitrary>], iteration_bounds = array<i64: 1>, scalar_prefetch = 0 : i64, scratch_operands = 0 : i64, tpu.core_type = #tpu.core_type<tc>, window_params = [{pipeline_mode = #tpu.pipeline_mode<synchronous>, transform_indices = @transform_0, window_bounds = array<i64: 4, 7, 64>}, {pipeline_mode = #tpu.pipeline_mode<synchronous>, transform_indices = @transform_1, window_bounds = array<i64: 4, 7, 64>}, {pipeline_mode = #tpu.pipeline_mode<synchronous>, transform_indices = @transform_2, window_bounds = array<i64: 7, 1>}, {pipeline_mode = #tpu.pipeline_mode<synchronous>, transform_indices = @transform_3, window_bounds = array<i64: 16, 64>}, {pipeline_mode = #tpu.pipeline_mode<synchronous>, transform_indices = @transform_4, window_bounds = array<i64: 16, 64>}, {pipeline_mode = #tpu.pipeline_mode<synchronous>, transform_indices = @transform_5, window_bounds = array<i64: 4, 7, 16>}, {pipeline_mode = #tpu.pipeline_mode<synchronous>, transform_indices = @transform_6, window_bounds = array<i64: 4, 7, 16>}]} {
    %c0 = arith.constant 0 : index
    %c0_0 = arith.constant 0 : index
    %0 = vector.load %arg3[%c0, %c0_0] : memref<7x1xi32, #tpu.memory_space<vmem>>, vector<7x1xi32>
    %c0_1 = arith.constant 0 : index
    %c0_2 = arith.constant 0 : index
    %1 = vector.load %arg4[%c0_1, %c0_2] : memref<16x64xf32, #tpu.memory_space<vmem>>, vector<16x64xf32>
    %c0_3 = arith.constant 0 : index
    %c0_4 = arith.constant 0 : index
    %2 = vector.load %arg5[%c0_3, %c0_4] : memref<16x64xf32, #tpu.memory_space<vmem>>, vector<16x64xf32>
    %cst = arith.constant 0.000000e+00 : f32
    %3 = vector.broadcast %cst : f32 to vector<7x16xf32>
    %cst_5 = arith.constant 0.000000e+00 : f32
    %4 = vector.broadcast %cst_5 : f32 to vector<7x16xf32>
    %c0_i32 = arith.constant 0 : i32
    %c3_i32 = arith.constant 3 : i32
    %5 = arith.subi %c3_i32, %c0_i32 : i32
    %6 = arith.index_cast %c0_i32 : i32 to index
    %c0_6 = arith.constant 0 : index
    %c0_7 = arith.constant 0 : index
    %7 = vector.load %arg1[%6, %c0_6, %c0_7] : memref<4x7x64xf32, #tpu.memory_space<vmem>>, vector<1x7x64xf32>
    %8 = vector.shape_cast %7 : vector<1x7x64xf32> to vector<7x64xf32>
    %cst_8 = arith.constant dense<0.000000e+00> : vector<7x64xf32>
    %9 = tpu.matmul %3, %1, %cst_8 {dimension_numbers = #tpu.dot_dimension_numbers<[1], [0], [0], [1], [0, 0, 1, 1], [], []>} : vector<7x16xf32>, vector<16x64xf32>, vector<7x64xf32> -> vector<7x64xf32>
    %10 = arith.addf %8, %9 : vector<7x64xf32>
    %11 = arith.index_cast %5 : i32 to index
    %c0_9 = arith.constant 0 : index
    %c0_10 = arith.constant 0 : index
    %12 = vector.load %arg2[%11, %c0_9, %c0_10] : memref<4x7x64xf32, #tpu.memory_space<vmem>>, vector<1x7x64xf32>
    %13 = vector.shape_cast %12 : vector<1x7x64xf32> to vector<7x64xf32>
    %cst_11 = arith.constant dense<0.000000e+00> : vector<7x64xf32>
    %14 = tpu.matmul %3, %2, %cst_11 {dimension_numbers = #tpu.dot_dimension_numbers<[1], [0], [0], [1], [0, 0, 1, 1], [], []>} : vector<7x16xf32>, vector<16x64xf32>, vector<7x64xf32> -> vector<7x64xf32>
    %15 = arith.addf %13, %14 : vector<7x64xf32>
    %16 = vector.extract_strided_slice %10 {offsets = [0, 0], sizes = [7, 16], strides = [1, 1]} : vector<7x64xf32> to vector<7x16xf32>
    %17 = arith.negf %16 : vector<7x16xf32>
    %18 = math.exp %17 : vector<7x16xf32>
    %cst_12 = arith.constant 1.000000e+00 : f32
    %19 = vector.broadcast %cst_12 : f32 to vector<7x16xf32>
    %20 = arith.addf %19, %18 : vector<7x16xf32>
    %21 = arith.divf %19, %20 : vector<7x16xf32>
    %22 = vector.extract_strided_slice %10 {offsets = [0, 16], sizes = [7, 16], strides = [1, 1]} : vector<7x64xf32> to vector<7x16xf32>
    %23 = arith.negf %22 : vector<7x16xf32>
    %24 = math.exp %23 : vector<7x16xf32>
    %cst_13 = arith.constant 1.000000e+00 : f32
    %25 = vector.broadcast %cst_13 : f32 to vector<7x16xf32>
    %26 = arith.addf %25, %24 : vector<7x16xf32>
    %27 = arith.divf %25, %26 : vector<7x16xf32>
    %28 = vector.extract_strided_slice %10 {offsets = [0, 32], sizes = [7, 16], strides = [1, 1]} : vector<7x64xf32> to vector<7x16xf32>
    %29 = math.tanh %28 : vector<7x16xf32>
    %30 = vector.extract_strided_slice %10 {offsets = [0, 48], sizes = [7, 16], strides = [1, 1]} : vector<7x64xf32> to vector<7x16xf32>
    %31 = arith.negf %30 : vector<7x16xf32>
    %32 = math.exp %31 : vector<7x16xf32>
    %cst_14 = arith.constant 1.000000e+00 : f32
    %33 = vector.broadcast %cst_14 : f32 to vector<7x16xf32>
    %34 = arith.addf %33, %32 : vector<7x16xf32>
    %35 = arith.divf %33, %34 : vector<7x16xf32>
    %36 = arith.mulf %27, %4 : vector<7x16xf32>
    %37 = arith.mulf %21, %29 : vector<7x16xf32>
    %38 = arith.addf %36, %37 : vector<7x16xf32>
    %39 = math.tanh %38 : vector<7x16xf32>
    %40 = arith.mulf %35, %39 : vector<7x16xf32>
    %41 = vector.extract_strided_slice %15 {offsets = [0, 0], sizes = [7, 16], strides = [1, 1]} : vector<7x64xf32> to vector<7x16xf32>
    %42 = arith.negf %41 : vector<7x16xf32>
    %43 = math.exp %42 : vector<7x16xf32>
    %cst_15 = arith.constant 1.000000e+00 : f32
    %44 = vector.broadcast %cst_15 : f32 to vector<7x16xf32>
    %45 = arith.addf %44, %43 : vector<7x16xf32>
    %46 = arith.divf %44, %45 : vector<7x16xf32>
    %47 = vector.extract_strided_slice %15 {offsets = [0, 16], sizes = [7, 16], strides = [1, 1]} : vector<7x64xf32> to vector<7x16xf32>
    %48 = arith.negf %47 : vector<7x16xf32>
    %49 = math.exp %48 : vector<7x16xf32>
    %cst_16 = arith.constant 1.000000e+00 : f32
    %50 = vector.broadcast %cst_16 : f32 to vector<7x16xf32>
    %51 = arith.addf %50, %49 : vector<7x16xf32>
    %52 = arith.divf %50, %51 : vector<7x16xf32>
    %53 = vector.extract_strided_slice %15 {offsets = [0, 32], sizes = [7, 16], strides = [1, 1]} : vector<7x64xf32> to vector<7x16xf32>
    %54 = math.tanh %53 : vector<7x16xf32>
    %55 = vector.extract_strided_slice %15 {offsets = [0, 48], sizes = [7, 16], strides = [1, 1]} : vector<7x64xf32> to vector<7x16xf32>
    %56 = arith.negf %55 : vector<7x16xf32>
    %57 = math.exp %56 : vector<7x16xf32>
    %cst_17 = arith.constant 1.000000e+00 : f32
    %58 = vector.broadcast %cst_17 : f32 to vector<7x16xf32>
    %59 = arith.addf %58, %57 : vector<7x16xf32>
    %60 = arith.divf %58, %59 : vector<7x16xf32>
    %61 = arith.mulf %52, %4 : vector<7x16xf32>
    %62 = arith.mulf %46, %54 : vector<7x16xf32>
    %63 = arith.addf %61, %62 : vector<7x16xf32>
    %64 = math.tanh %63 : vector<7x16xf32>
    %65 = arith.mulf %60, %64 : vector<7x16xf32>
    %66 = vector.broadcast %c0_i32 : i32 to vector<7x1xi32>
    %67 = arith.cmpi sgt, %0, %66 : vector<7x1xi32>
    %68 = vector.broadcast %5 : i32 to vector<7x1xi32>
    %69 = arith.cmpi sgt, %0, %68 : vector<7x1xi32>
    %cst_18 = arith.constant 0.000000e+00 : f32
    %70 = vector.shape_cast %67 : vector<7x1xi1> to vector<7x1xi1>
    %71 = vector.broadcast %70 : vector<7x1xi1> to vector<7x16xi1>
    %72 = vector.broadcast %cst_18 : f32 to vector<7x16xf32>
    %73 = arith.select %71, %40, %72 : vector<7x16xi1>, vector<7x16xf32>
    %74 = arith.index_cast %c0_i32 : i32 to index
    %c0_19 = arith.constant 0 : index
    %c0_20 = arith.constant 0 : index
    %75 = vector.load %arg6[%74, %c0_19, %c0_20] : memref<4x7x16xf32, #tpu.memory_space<vmem>>, vector<1x7x16xf32>
    %76 = vector.shape_cast %75 : vector<1x7x16xf32> to vector<7x16xf32>
    %77 = vector.shape_cast %73 : vector<7x16xf32> to vector<1x7x16xf32>
    tpu.vector_store %arg6[%74, %c0_19, %c0_20], %77 {strides = array<i32>} : memref<4x7x16xf32, #tpu.memory_space<vmem>>, vector<1x7x16xf32>,
    %cst_21 = arith.constant 0.000000e+00 : f32
    %78 = vector.shape_cast %69 : vector<7x1xi1> to vector<7x1xi1>
    %79 = vector.broadcast %78 : vector<7x1xi1> to vector<7x16xi1>
    %80 = vector.broadcast %cst_21 : f32 to vector<7x16xf32>
    %81 = arith.select %79, %65, %80 : vector<7x16xi1>, vector<7x16xf32>
    %82 = arith.index_cast %5 : i32 to index
    %c0_22 = arith.constant 0 : index
    %c0_23 = arith.constant 0 : index
    %83 = vector.load %arg7[%82, %c0_22, %c0_23] : memref<4x7x16xf32, #tpu.memory_space<vmem>>, vector<1x7x16xf32>
    %84 = vector.shape_cast %83 : vector<1x7x16xf32> to vector<7x16xf32>
    %85 = vector.shape_cast %81 : vector<7x16xf32> to vector<1x7x16xf32>
    tpu.vector_store %arg7[%82, %c0_22, %c0_23], %85 {strides = array<i32>} : memref<4x7x16xf32, #tpu.memory_space<vmem>>, vector<1x7x16xf32>,
    %86 = vector.shape_cast %67 : vector<7x1xi1> to vector<7x1xi1>
    %87 = vector.broadcast %86 : vector<7x1xi1> to vector<7x16xi1>
    %88 = arith.select %87, %40, %3 : vector<7x16xi1>, vector<7x16xf32>
    %89 = vector.shape_cast %67 : vector<7x1xi1> to vector<7x1xi1>
    %90 = vector.broadcast %89 : vector<7x1xi1> to vector<7x16xi1>
    %91 = arith.select %90, %38, %4 : vector<7x16xi1>, vector<7x16xf32>
    %92 = vector.shape_cast %69 : vector<7x1xi1> to vector<7x1xi1>
    %93 = vector.broadcast %92 : vector<7x1xi1> to vector<7x16xi1>
    %94 = arith.select %93, %65, %3 : vector<7x16xi1>, vector<7x16xf32>
    %95 = vector.shape_cast %69 : vector<7x1xi1> to vector<7x1xi1>
    %96 = vector.broadcast %95 : vector<7x1xi1> to vector<7x16xi1>
    %97 = arith.select %96, %63, %4 : vector<7x16xi1>, vector<7x16xf32>
    %c1_i32 = arith.constant 1 : i32
    %c3_i32_24 = arith.constant 3 : i32
    %98 = arith.subi %c3_i32_24, %c1_i32 : i32
    %99 = arith.index_cast %c1_i32 : i32 to index
    %c0_25 = arith.constant 0 : index
    %c0_26 = arith.constant 0 : index
    %100 = vector.load %arg1[%99, %c0_25, %c0_26] : memref<4x7x64xf32, #tpu.memory_space<vmem>>, vector<1x7x64xf32>
    %101 = vector.shape_cast %100 : vector<1x7x64xf32> to vector<7x64xf32>
    %cst_27 = arith.constant dense<0.000000e+00> : vector<7x64xf32>
    %102 = tpu.matmul %88, %1, %cst_27 {dimension_numbers = #tpu.dot_dimension_numbers<[1], [0], [0], [1], [0, 0, 1, 1], [], []>} : vector<7x16xf32>, vector<16x64xf32>, vector<7x64xf32> -> vector<7x64xf32>
    %103 = arith.addf %101, %102 : vector<7x64xf32>
    %104 = arith.index_cast %98 : i32 to index
    %c0_28 = arith.constant 0 : index
    %c0_29 = arith.constant 0 : index
    %105 = vector.load %arg2[%104, %c0_28, %c0_29] : memref<4x7x64xf32, #tpu.memory_space<vmem>>, vector<1x7x64xf32>
    %106 = vector.shape_cast %105 : vector<1x7x64xf32> to vector<7x64xf32>
    %cst_30 = arith.constant dense<0.000000e+00> : vector<7x64xf32>
    %107 = tpu.matmul %94, %2, %cst_30 {dimension_numbers = #tpu.dot_dimension_numbers<[1], [0], [0], [1], [0, 0, 1, 1], [], []>} : vector<7x16xf32>, vector<16x64xf32>, vector<7x64xf32> -> vector<7x64xf32>
    %108 = arith.addf %106, %107 : vector<7x64xf32>
    %109 = vector.extract_strided_slice %103 {offsets = [0, 0], sizes = [7, 16], strides = [1, 1]} : vector<7x64xf32> to vector<7x16xf32>
    %110 = arith.negf %109 : vector<7x16xf32>
    %111 = math.exp %110 : vector<7x16xf32>
    %cst_31 = arith.constant 1.000000e+00 : f32
    %112 = vector.broadcast %cst_31 : f32 to vector<7x16xf32>
    %113 = arith.addf %112, %111 : vector<7x16xf32>
    %114 = arith.divf %112, %113 : vector<7x16xf32>
    %115 = vector.extract_strided_slice %103 {offsets = [0, 16], sizes = [7, 16], strides = [1, 1]} : vector<7x64xf32> to vector<7x16xf32>
    %116 = arith.negf %115 : vector<7x16xf32>
    %117 = math.exp %116 : vector<7x16xf32>
    %cst_32 = arith.constant 1.000000e+00 : f32
    %118 = vector.broadcast %cst_32 : f32 to vector<7x16xf32>
    %119 = arith.addf %118, %117 : vector<7x16xf32>
    %120 = arith.divf %118, %119 : vector<7x16xf32>
    %121 = vector.extract_strided_slice %103 {offsets = [0, 32], sizes = [7, 16], strides = [1, 1]} : vector<7x64xf32> to vector<7x16xf32>
    %122 = math.tanh %121 : vector<7x16xf32>
    %123 = vector.extract_strided_slice %103 {offsets = [0, 48], sizes = [7, 16], strides = [1, 1]} : vector<7x64xf32> to vector<7x16xf32>
    %124 = arith.negf %123 : vector<7x16xf32>
    %125 = math.exp %124 : vector<7x16xf32>
    %cst_33 = arith.constant 1.000000e+00 : f32
    %126 = vector.broadcast %cst_33 : f32 to vector<7x16xf32>
    %127 = arith.addf %126, %125 : vector<7x16xf32>
    %128 = arith.divf %126, %127 : vector<7x16xf32>
    %129 = arith.mulf %120, %91 : vector<7x16xf32>
    %130 = arith.mulf %114, %122 : vector<7x16xf32>
    %131 = arith.addf %129, %130 : vector<7x16xf32>
    %132 = math.tanh %131 : vector<7x16xf32>
    %133 = arith.mulf %128, %132 : vector<7x16xf32>
    %134 = vector.extract_strided_slice %108 {offsets = [0, 0], sizes = [7, 16], strides = [1, 1]} : vector<7x64xf32> to vector<7x16xf32>
    %135 = arith.negf %134 : vector<7x16xf32>
    %136 = math.exp %135 : vector<7x16xf32>
    %cst_34 = arith.constant 1.000000e+00 : f32
    %137 = vector.broadcast %cst_34 : f32 to vector<7x16xf32>
    %138 = arith.addf %137, %136 : vector<7x16xf32>
    %139 = arith.divf %137, %138 : vector<7x16xf32>
    %140 = vector.extract_strided_slice %108 {offsets = [0, 16], sizes = [7, 16], strides = [1, 1]} : vector<7x64xf32> to vector<7x16xf32>
    %141 = arith.negf %140 : vector<7x16xf32>
    %142 = math.exp %141 : vector<7x16xf32>
    %cst_35 = arith.constant 1.000000e+00 : f32
    %143 = vector.broadcast %cst_35 : f32 to vector<7x16xf32>
    %144 = arith.addf %143, %142 : vector<7x16xf32>
    %145 = arith.divf %143, %144 : vector<7x16xf32>
    %146 = vector.extract_strided_slice %108 {offsets = [0, 32], sizes = [7, 16], strides = [1, 1]} : vector<7x64xf32> to vector<7x16xf32>
    %147 = math.tanh %146 : vector<7x16xf32>
    %148 = vector.extract_strided_slice %108 {offsets = [0, 48], sizes = [7, 16], strides = [1, 1]} : vector<7x64xf32> to vector<7x16xf32>
    %149 = arith.negf %148 : vector<7x16xf32>
    %150 = math.exp %149 : vector<7x16xf32>
    %cst_36 = arith.constant 1.000000e+00 : f32
    %151 = vector.broadcast %cst_36 : f32 to vector<7x16xf32>
    %152 = arith.addf %151, %150 : vector<7x16xf32>
    %153 = arith.divf %151, %152 : vector<7x16xf32>
    %154 = arith.mulf %145, %97 : vector<7x16xf32>
    %155 = arith.mulf %139, %147 : vector<7x16xf32>
    %156 = arith.addf %154, %155 : vector<7x16xf32>
    %157 = math.tanh %156 : vector<7x16xf32>
    %158 = arith.mulf %153, %157 : vector<7x16xf32>
    %159 = vector.broadcast %c1_i32 : i32 to vector<7x1xi32>
    %160 = arith.cmpi sgt, %0, %159 : vector<7x1xi32>
    %161 = vector.broadcast %98 : i32 to vector<7x1xi32>
    %162 = arith.cmpi sgt, %0, %161 : vector<7x1xi32>
    %cst_37 = arith.constant 0.000000e+00 : f32
    %163 = vector.shape_cast %160 : vector<7x1xi1> to vector<7x1xi1>
    %164 = vector.broadcast %163 : vector<7x1xi1> to vector<7x16xi1>
    %165 = vector.broadcast %cst_37 : f32 to vector<7x16xf32>
    %166 = arith.select %164, %133, %165 : vector<7x16xi1>, vector<7x16xf32>
    %167 = arith.index_cast %c1_i32 : i32 to index
    %c0_38 = arith.constant 0 : index
    %c0_39 = arith.constant 0 : index
    %168 = vector.load %arg6[%167, %c0_38, %c0_39] : memref<4x7x16xf32, #tpu.memory_space<vmem>>, vector<1x7x16xf32>
    %169 = vector.shape_cast %168 : vector<1x7x16xf32> to vector<7x16xf32>
    %170 = vector.shape_cast %166 : vector<7x16xf32> to vector<1x7x16xf32>
    tpu.vector_store %arg6[%167, %c0_38, %c0_39], %170 {strides = array<i32>} : memref<4x7x16xf32, #tpu.memory_space<vmem>>, vector<1x7x16xf32>,
    %cst_40 = arith.constant 0.000000e+00 : f32
    %171 = vector.shape_cast %162 : vector<7x1xi1> to vector<7x1xi1>
    %172 = vector.broadcast %171 : vector<7x1xi1> to vector<7x16xi1>
    %173 = vector.broadcast %cst_40 : f32 to vector<7x16xf32>
    %174 = arith.select %172, %158, %173 : vector<7x16xi1>, vector<7x16xf32>
    %175 = arith.index_cast %98 : i32 to index
    %c0_41 = arith.constant 0 : index
    %c0_42 = arith.constant 0 : index
    %176 = vector.load %arg7[%175, %c0_41, %c0_42] : memref<4x7x16xf32, #tpu.memory_space<vmem>>, vector<1x7x16xf32>
    %177 = vector.shape_cast %176 : vector<1x7x16xf32> to vector<7x16xf32>
    %178 = vector.shape_cast %174 : vector<7x16xf32> to vector<1x7x16xf32>
    tpu.vector_store %arg7[%175, %c0_41, %c0_42], %178 {strides = array<i32>} : memref<4x7x16xf32, #tpu.memory_space<vmem>>, vector<1x7x16xf32>,
    %179 = vector.shape_cast %160 : vector<7x1xi1> to vector<7x1xi1>
    %180 = vector.broadcast %179 : vector<7x1xi1> to vector<7x16xi1>
    %181 = arith.select %180, %133, %88 : vector<7x16xi1>, vector<7x16xf32>
    %182 = vector.shape_cast %160 : vector<7x1xi1> to vector<7x1xi1>
    %183 = vector.broadcast %182 : vector<7x1xi1> to vector<7x16xi1>
    %184 = arith.select %183, %131, %91 : vector<7x16xi1>, vector<7x16xf32>
    %185 = vector.shape_cast %162 : vector<7x1xi1> to vector<7x1xi1>
    %186 = vector.broadcast %185 : vector<7x1xi1> to vector<7x16xi1>
    %187 = arith.select %186, %158, %94 : vector<7x16xi1>, vector<7x16xf32>
    %188 = vector.shape_cast %162 : vector<7x1xi1> to vector<7x1xi1>
    %189 = vector.broadcast %188 : vector<7x1xi1> to vector<7x16xi1>
    %190 = arith.select %189, %156, %97 : vector<7x16xi1>, vector<7x16xf32>
    %c2_i32 = arith.constant 2 : i32
    %c3_i32_43 = arith.constant 3 : i32
    %191 = arith.subi %c3_i32_43, %c2_i32 : i32
    %192 = arith.index_cast %c2_i32 : i32 to index
    %c0_44 = arith.constant 0 : index
    %c0_45 = arith.constant 0 : index
    %193 = vector.load %arg1[%192, %c0_44, %c0_45] : memref<4x7x64xf32, #tpu.memory_space<vmem>>, vector<1x7x64xf32>
    %194 = vector.shape_cast %193 : vector<1x7x64xf32> to vector<7x64xf32>
    %cst_46 = arith.constant dense<0.000000e+00> : vector<7x64xf32>
    %195 = tpu.matmul %181, %1, %cst_46 {dimension_numbers = #tpu.dot_dimension_numbers<[1], [0], [0], [1], [0, 0, 1, 1], [], []>} : vector<7x16xf32>, vector<16x64xf32>, vector<7x64xf32> -> vector<7x64xf32>
    %196 = arith.addf %194, %195 : vector<7x64xf32>
    %197 = arith.index_cast %191 : i32 to index
    %c0_47 = arith.constant 0 : index
    %c0_48 = arith.constant 0 : index
    %198 = vector.load %arg2[%197, %c0_47, %c0_48] : memref<4x7x64xf32, #tpu.memory_space<vmem>>, vector<1x7x64xf32>
    %199 = vector.shape_cast %198 : vector<1x7x64xf32> to vector<7x64xf32>
    %cst_49 = arith.constant dense<0.000000e+00> : vector<7x64xf32>
    %200 = tpu.matmul %187, %2, %cst_49 {dimension_numbers = #tpu.dot_dimension_numbers<[1], [0], [0], [1], [0, 0, 1, 1], [], []>} : vector<7x16xf32>, vector<16x64xf32>, vector<7x64xf32> -> vector<7x64xf32>
    %201 = arith.addf %199, %200 : vector<7x64xf32>
    %202 = vector.extract_strided_slice %196 {offsets = [0, 0], sizes = [7, 16], strides = [1, 1]} : vector<7x64xf32> to vector<7x16xf32>
    %203 = arith.negf %202 : vector<7x16xf32>
    %204 = math.exp %203 : vector<7x16xf32>
    %cst_50 = arith.constant 1.000000e+00 : f32
    %205 = vector.broadcast %cst_50 : f32 to vector<7x16xf32>
    %206 = arith.addf %205, %204 : vector<7x16xf32>
    %207 = arith.divf %205, %206 : vector<7x16xf32>
    %208 = vector.extract_strided_slice %196 {offsets = [0, 16], sizes = [7, 16], strides = [1, 1]} : vector<7x64xf32> to vector<7x16xf32>
    %209 = arith.negf %208 : vector<7x16xf32>
    %210 = math.exp %209 : vector<7x16xf32>
    %cst_51 = arith.constant 1.000000e+00 : f32
    %211 = vector.broadcast %cst_51 : f32 to vector<7x16xf32>
    %212 = arith.addf %211, %210 : vector<7x16xf32>
    %213 = arith.divf %211, %212 : vector<7x16xf32>
    %214 = vector.extract_strided_slice %196 {offsets = [0, 32], sizes = [7, 16], strides = [1, 1]} : vector<7x64xf32> to vector<7x16xf32>
    %215 = math.tanh %214 : vector<7x16xf32>
    %216 = vector.extract_strided_slice %196 {offsets = [0, 48], sizes = [7, 16], strides = [1, 1]} : vector<7x64xf32> to vector<7x16xf32>
    %217 = arith.negf %216 : vector<7x16xf32>
    %218 = math.exp %217 : vector<7x16xf32>
    %cst_52 = arith.constant 1.000000e+00 : f32
    %219 = vector.broadcast %cst_52 : f32 to vector<7x16xf32>
    %220 = arith.addf %219, %218 : vector<7x16xf32>
    %221 = arith.divf %219, %220 : vector<7x16xf32>
    %222 = arith.mulf %213, %184 : vector<7x16xf32>
    %223 = arith.mulf %207, %215 : vector<7x16xf32>
    %224 = arith.addf %222, %223 : vector<7x16xf32>
    %225 = math.tanh %224 : vector<7x16xf32>
    %226 = arith.mulf %221, %225 : vector<7x16xf32>
    %227 = vector.extract_strided_slice %201 {offsets = [0, 0], sizes = [7, 16], strides = [1, 1]} : vector<7x64xf32> to vector<7x16xf32>
    %228 = arith.negf %227 : vector<7x16xf32>
    %229 = math.exp %228 : vector<7x16xf32>
    %cst_53 = arith.constant 1.000000e+00 : f32
    %230 = vector.broadcast %cst_53 : f32 to vector<7x16xf32>
    %231 = arith.addf %230, %229 : vector<7x16xf32>
    %232 = arith.divf %230, %231 : vector<7x16xf32>
    %233 = vector.extract_strided_slice %201 {offsets = [0, 16], sizes = [7, 16], strides = [1, 1]} : vector<7x64xf32> to vector<7x16xf32>
    %234 = arith.negf %233 : vector<7x16xf32>
    %235 = math.exp %234 : vector<7x16xf32>
    %cst_54 = arith.constant 1.000000e+00 : f32
    %236 = vector.broadcast %cst_54 : f32 to vector<7x16xf32>
    %237 = arith.addf %236, %235 : vector<7x16xf32>
    %238 = arith.divf %236, %237 : vector<7x16xf32>
    %239 = vector.extract_strided_slice %201 {offsets = [0, 32], sizes = [7, 16], strides = [1, 1]} : vector<7x64xf32> to vector<7x16xf32>
    %240 = math.tanh %239 : vector<7x16xf32>
    %241 = vector.extract_strided_slice %201 {offsets = [0, 48], sizes = [7, 16], strides = [1, 1]} : vector<7x64xf32> to vector<7x16xf32>
    %242 = arith.negf %241 : vector<7x16xf32>
    %243 = math.exp %242 : vector<7x16xf32>
    %cst_55 = arith.constant 1.000000e+00 : f32
    %244 = vector.broadcast %cst_55 : f32 to vector<7x16xf32>
    %245 = arith.addf %244, %243 : vector<7x16xf32>
    %246 = arith.divf %244, %245 : vector<7x16xf32>
    %247 = arith.mulf %238, %190 : vector<7x16xf32>
    %248 = arith.mulf %232, %240 : vector<7x16xf32>
    %249 = arith.addf %247, %248 : vector<7x16xf32>
    %250 = math.tanh %249 : vector<7x16xf32>
    %251 = arith.mulf %246, %250 : vector<7x16xf32>
    %252 = vector.broadcast %c2_i32 : i32 to vector<7x1xi32>
    %253 = arith.cmpi sgt, %0, %252 : vector<7x1xi32>
    %254 = vector.broadcast %191 : i32 to vector<7x1xi32>
    %255 = arith.cmpi sgt, %0, %254 : vector<7x1xi32>
    %cst_56 = arith.constant 0.000000e+00 : f32
    %256 = vector.shape_cast %253 : vector<7x1xi1> to vector<7x1xi1>
    %257 = vector.broadcast %256 : vector<7x1xi1> to vector<7x16xi1>
    %258 = vector.broadcast %cst_56 : f32 to vector<7x16xf32>
    %259 = arith.select %257, %226, %258 : vector<7x16xi1>, vector<7x16xf32>
    %260 = arith.index_cast %c2_i32 : i32 to index
    %c0_57 = arith.constant 0 : index
    %c0_58 = arith.constant 0 : index
    %261 = vector.load %arg6[%260, %c0_57, %c0_58] : memref<4x7x16xf32, #tpu.memory_space<vmem>>, vector<1x7x16xf32>
    %262 = vector.shape_cast %261 : vector<1x7x16xf32> to vector<7x16xf32>
    %263 = vector.shape_cast %259 : vector<7x16xf32> to vector<1x7x16xf32>
    tpu.vector_store %arg6[%260, %c0_57, %c0_58], %263 {strides = array<i32>} : memref<4x7x16xf32, #tpu.memory_space<vmem>>, vector<1x7x16xf32>,
    %cst_59 = arith.constant 0.000000e+00 : f32
    %264 = vector.shape_cast %255 : vector<7x1xi1> to vector<7x1xi1>
    %265 = vector.broadcast %264 : vector<7x1xi1> to vector<7x16xi1>
    %266 = vector.broadcast %cst_59 : f32 to vector<7x16xf32>
    %267 = arith.select %265, %251, %266 : vector<7x16xi1>, vector<7x16xf32>
    %268 = arith.index_cast %191 : i32 to index
    %c0_60 = arith.constant 0 : index
    %c0_61 = arith.constant 0 : index
    %269 = vector.load %arg7[%268, %c0_60, %c0_61] : memref<4x7x16xf32, #tpu.memory_space<vmem>>, vector<1x7x16xf32>
    %270 = vector.shape_cast %269 : vector<1x7x16xf32> to vector<7x16xf32>
    %271 = vector.shape_cast %267 : vector<7x16xf32> to vector<1x7x16xf32>
    tpu.vector_store %arg7[%268, %c0_60, %c0_61], %271 {strides = array<i32>} : memref<4x7x16xf32, #tpu.memory_space<vmem>>, vector<1x7x16xf32>,
    %272 = vector.shape_cast %253 : vector<7x1xi1> to vector<7x1xi1>
    %273 = vector.broadcast %272 : vector<7x1xi1> to vector<7x16xi1>
    %274 = arith.select %273, %226, %181 : vector<7x16xi1>, vector<7x16xf32>
    %275 = vector.shape_cast %253 : vector<7x1xi1> to vector<7x1xi1>
    %276 = vector.broadcast %275 : vector<7x1xi1> to vector<7x16xi1>
    %277 = arith.select %276, %224, %184 : vector<7x16xi1>, vector<7x16xf32>
    %278 = vector.shape_cast %255 : vector<7x1xi1> to vector<7x1xi1>
    %279 = vector.broadcast %278 : vector<7x1xi1> to vector<7x16xi1>
    %280 = arith.select %279, %251, %187 : vector<7x16xi1>, vector<7x16xf32>
    %281 = vector.shape_cast %255 : vector<7x1xi1> to vector<7x1xi1>
    %282 = vector.broadcast %281 : vector<7x1xi1> to vector<7x16xi1>
    %283 = arith.select %282, %249, %190 : vector<7x16xi1>, vector<7x16xf32>
    %c3_i32_62 = arith.constant 3 : i32
    %c3_i32_63 = arith.constant 3 : i32
    %284 = arith.subi %c3_i32_63, %c3_i32_62 : i32
    %285 = arith.index_cast %c3_i32_62 : i32 to index
    %c0_64 = arith.constant 0 : index
    %c0_65 = arith.constant 0 : index
    %286 = vector.load %arg1[%285, %c0_64, %c0_65] : memref<4x7x64xf32, #tpu.memory_space<vmem>>, vector<1x7x64xf32>
    %287 = vector.shape_cast %286 : vector<1x7x64xf32> to vector<7x64xf32>
    %cst_66 = arith.constant dense<0.000000e+00> : vector<7x64xf32>
    %288 = tpu.matmul %274, %1, %cst_66 {dimension_numbers = #tpu.dot_dimension_numbers<[1], [0], [0], [1], [0, 0, 1, 1], [], []>} : vector<7x16xf32>, vector<16x64xf32>, vector<7x64xf32> -> vector<7x64xf32>
    %289 = arith.addf %287, %288 : vector<7x64xf32>
    %290 = arith.index_cast %284 : i32 to index
    %c0_67 = arith.constant 0 : index
    %c0_68 = arith.constant 0 : index
    %291 = vector.load %arg2[%290, %c0_67, %c0_68] : memref<4x7x64xf32, #tpu.memory_space<vmem>>, vector<1x7x64xf32>
    %292 = vector.shape_cast %291 : vector<1x7x64xf32> to vector<7x64xf32>
    %cst_69 = arith.constant dense<0.000000e+00> : vector<7x64xf32>
    %293 = tpu.matmul %280, %2, %cst_69 {dimension_numbers = #tpu.dot_dimension_numbers<[1], [0], [0], [1], [0, 0, 1, 1], [], []>} : vector<7x16xf32>, vector<16x64xf32>, vector<7x64xf32> -> vector<7x64xf32>
    %294 = arith.addf %292, %293 : vector<7x64xf32>
    %295 = vector.extract_strided_slice %289 {offsets = [0, 0], sizes = [7, 16], strides = [1, 1]} : vector<7x64xf32> to vector<7x16xf32>
    %296 = arith.negf %295 : vector<7x16xf32>
    %297 = math.exp %296 : vector<7x16xf32>
    %cst_70 = arith.constant 1.000000e+00 : f32
    %298 = vector.broadcast %cst_70 : f32 to vector<7x16xf32>
    %299 = arith.addf %298, %297 : vector<7x16xf32>
    %300 = arith.divf %298, %299 : vector<7x16xf32>
    %301 = vector.extract_strided_slice %289 {offsets = [0, 16], sizes = [7, 16], strides = [1, 1]} : vector<7x64xf32> to vector<7x16xf32>
    %302 = arith.negf %301 : vector<7x16xf32>
    %303 = math.exp %302 : vector<7x16xf32>
    %cst_71 = arith.constant 1.000000e+00 : f32
    %304 = vector.broadcast %cst_71 : f32 to vector<7x16xf32>
    %305 = arith.addf %304, %303 : vector<7x16xf32>
    %306 = arith.divf %304, %305 : vector<7x16xf32>
    %307 = vector.extract_strided_slice %289 {offsets = [0, 32], sizes = [7, 16], strides = [1, 1]} : vector<7x64xf32> to vector<7x16xf32>
    %308 = math.tanh %307 : vector<7x16xf32>
    %309 = vector.extract_strided_slice %289 {offsets = [0, 48], sizes = [7, 16], strides = [1, 1]} : vector<7x64xf32> to vector<7x16xf32>
    %310 = arith.negf %309 : vector<7x16xf32>
    %311 = math.exp %310 : vector<7x16xf32>
    %cst_72 = arith.constant 1.000000e+00 : f32
    %312 = vector.broadcast %cst_72 : f32 to vector<7x16xf32>
    %313 = arith.addf %312, %311 : vector<7x16xf32>
    %314 = arith.divf %312, %313 : vector<7x16xf32>
    %315 = arith.mulf %306, %277 : vector<7x16xf32>
    %316 = arith.mulf %300, %308 : vector<7x16xf32>
    %317 = arith.addf %315, %316 : vector<7x16xf32>
    %318 = math.tanh %317 : vector<7x16xf32>
    %319 = arith.mulf %314, %318 : vector<7x16xf32>
    %320 = vector.extract_strided_slice %294 {offsets = [0, 0], sizes = [7, 16], strides = [1, 1]} : vector<7x64xf32> to vector<7x16xf32>
    %321 = arith.negf %320 : vector<7x16xf32>
    %322 = math.exp %321 : vector<7x16xf32>
    %cst_73 = arith.constant 1.000000e+00 : f32
    %323 = vector.broadcast %cst_73 : f32 to vector<7x16xf32>
    %324 = arith.addf %323, %322 : vector<7x16xf32>
    %325 = arith.divf %323, %324 : vector<7x16xf32>
    %326 = vector.extract_strided_slice %294 {offsets = [0, 16], sizes = [7, 16], strides = [1, 1]} : vector<7x64xf32> to vector<7x16xf32>
    %327 = arith.negf %326 : vector<7x16xf32>
    %328 = math.exp %327 : vector<7x16xf32>
    %cst_74 = arith.constant 1.000000e+00 : f32
    %329 = vector.broadcast %cst_74 : f32 to vector<7x16xf32>
    %330 = arith.addf %329, %328 : vector<7x16xf32>
    %331 = arith.divf %329, %330 : vector<7x16xf32>
    %332 = vector.extract_strided_slice %294 {offsets = [0, 32], sizes = [7, 16], strides = [1, 1]} : vector<7x64xf32> to vector<7x16xf32>
    %333 = math.tanh %332 : vector<7x16xf32>
    %334 = vector.extract_strided_slice %294 {offsets = [0, 48], sizes = [7, 16], strides = [1, 1]} : vector<7x64xf32> to vector<7x16xf32>
    %335 = arith.negf %334 : vector<7x16xf32>
    %336 = math.exp %335 : vector<7x16xf32>
    %cst_75 = arith.constant 1.000000e+00 : f32
    %337 = vector.broadcast %cst_75 : f32 to vector<7x16xf32>
    %338 = arith.addf %337, %336 : vector<7x16xf32>
    %339 = arith.divf %337, %338 : vector<7x16xf32>
    %340 = arith.mulf %331, %283 : vector<7x16xf32>
    %341 = arith.mulf %325, %333 : vector<7x16xf32>
    %342 = arith.addf %340, %341 : vector<7x16xf32>
    %343 = math.tanh %342 : vector<7x16xf32>
    %344 = arith.mulf %339, %343 : vector<7x16xf32>
    %345 = vector.broadcast %c3_i32_62 : i32 to vector<7x1xi32>
    %346 = arith.cmpi sgt, %0, %345 : vector<7x1xi32>
    %347 = vector.broadcast %284 : i32 to vector<7x1xi32>
    %348 = arith.cmpi sgt, %0, %347 : vector<7x1xi32>
    %cst_76 = arith.constant 0.000000e+00 : f32
    %349 = vector.shape_cast %346 : vector<7x1xi1> to vector<7x1xi1>
    %350 = vector.broadcast %349 : vector<7x1xi1> to vector<7x16xi1>
    %351 = vector.broadcast %cst_76 : f32 to vector<7x16xf32>
    %352 = arith.select %350, %319, %351 : vector<7x16xi1>, vector<7x16xf32>
    %353 = arith.index_cast %c3_i32_62 : i32 to index
    %c0_77 = arith.constant 0 : index
    %c0_78 = arith.constant 0 : index
    %354 = vector.load %arg6[%353, %c0_77, %c0_78] : memref<4x7x16xf32, #tpu.memory_space<vmem>>, vector<1x7x16xf32>
    %355 = vector.shape_cast %354 : vector<1x7x16xf32> to vector<7x16xf32>
    %356 = vector.shape_cast %352 : vector<7x16xf32> to vector<1x7x16xf32>
    tpu.vector_store %arg6[%353, %c0_77, %c0_78], %356 {strides = array<i32>} : memref<4x7x16xf32, #tpu.memory_space<vmem>>, vector<1x7x16xf32>,
    %cst_79 = arith.constant 0.000000e+00 : f32
    %357 = vector.shape_cast %348 : vector<7x1xi1> to vector<7x1xi1>
    %358 = vector.broadcast %357 : vector<7x1xi1> to vector<7x16xi1>
    %359 = vector.broadcast %cst_79 : f32 to vector<7x16xf32>
    %360 = arith.select %358, %344, %359 : vector<7x16xi1>, vector<7x16xf32>
    %361 = arith.index_cast %284 : i32 to index
    %c0_80 = arith.constant 0 : index
    %c0_81 = arith.constant 0 : index
    %362 = vector.load %arg7[%361, %c0_80, %c0_81] : memref<4x7x16xf32, #tpu.memory_space<vmem>>, vector<1x7x16xf32>
    %363 = vector.shape_cast %362 : vector<1x7x16xf32> to vector<7x16xf32>
    %364 = vector.shape_cast %360 : vector<7x16xf32> to vector<1x7x16xf32>
    tpu.vector_store %arg7[%361, %c0_80, %c0_81], %364 {strides = array<i32>} : memref<4x7x16xf32, #tpu.memory_space<vmem>>, vector<1x7x16xf32>,
    %365 = vector.shape_cast %346 : vector<7x1xi1> to vector<7x1xi1>
    %366 = vector.broadcast %365 : vector<7x1xi1> to vector<7x16xi1>
    %367 = arith.select %366, %319, %274 : vector<7x16xi1>, vector<7x16xf32>
    %368 = vector.shape_cast %346 : vector<7x1xi1> to vector<7x1xi1>
    %369 = vector.broadcast %368 : vector<7x1xi1> to vector<7x16xi1>
    %370 = arith.select %369, %317, %277 : vector<7x16xi1>, vector<7x16xf32>
    %371 = vector.shape_cast %348 : vector<7x1xi1> to vector<7x1xi1>
    %372 = vector.broadcast %371 : vector<7x1xi1> to vector<7x16xi1>
    %373 = arith.select %372, %344, %280 : vector<7x16xi1>, vector<7x16xf32>
    %374 = vector.shape_cast %348 : vector<7x1xi1> to vector<7x1xi1>
    %375 = vector.broadcast %374 : vector<7x1xi1> to vector<7x16xi1>
    %376 = arith.select %375, %342, %283 : vector<7x16xi1>, vector<7x16xf32>
    %c4_i32 = arith.constant 4 : i32
    return
  }
  func.func @transform_0(%arg0: i32) -> (i32, i32, i32) {
    %c0_i32 = arith.constant 0 : i32
    %c0_i32_0 = arith.constant 0 : i32
    %c0_i32_1 = arith.constant 0 : i32
    %c0_i32_2 = arith.constant 0 : i32
    return %c0_i32, %c0_i32_0, %c0_i32_1 : i32, i32, i32
  }
  func.func @transform_1(%arg0: i32) -> (i32, i32, i32) {
    %c0_i32 = arith.constant 0 : i32
    %c0_i32_0 = arith.constant 0 : i32
    %c0_i32_1 = arith.constant 0 : i32
    %c0_i32_2 = arith.constant 0 : i32
    return %c0_i32, %c0_i32_0, %c0_i32_1 : i32, i32, i32
  }
  func.func @transform_2(%arg0: i32) -> (i32, i32) {
    %c0_i32 = arith.constant 0 : i32
    %c0_i32_0 = arith.constant 0 : i32
    %c0_i32_1 = arith.constant 0 : i32
    return %c0_i32, %c0_i32_0 : i32, i32
  }
  func.func @transform_3(%arg0: i32) -> (i32, i32) {
    %c0_i32 = arith.constant 0 : i32
    %c0_i32_0 = arith.constant 0 : i32
    %c0_i32_1 = arith.constant 0 : i32
    return %c0_i32, %c0_i32_0 : i32, i32
  }
  func.func @transform_4(%arg0: i32) -> (i32, i32) {
    %c0_i32 = arith.constant 0 : i32
    %c0_i32_0 = arith.constant 0 : i32
    %c0_i32_1 = arith.constant 0 : i32
    return %c0_i32, %c0_i32_0 : i32, i32
  }
  func.func @transform_5(%arg0: i32) -> (i32, i32, i32) {
    %c0_i32 = arith.constant 0 : i32
    %c0_i32_0 = arith.constant 0 : i32
    %c0_i32_1 = arith.constant 0 : i32
    %c0_i32_2 = arith.constant 0 : i32
    return %c0_i32, %c0_i32_0, %c0_i32_1 : i32, i32, i32
  }
  func.func @transform_6(%arg0: i32) -> (i32, i32, i32) {
    %c0_i32 = arith.constant 0 : i32
    %c0_i32_0 = arith.constant 0 : i32
    %c0_i32_1 = arith.constant 0 : i32
    %c0_i32_2 = arith.constant 0 : i32
    return %c0_i32, %c0_i32_0, %c0_i32_1 : i32, i32, i32
  }
}

module attributes {stable_mosaic.version = 11 : i64} {
  func.func @_agg_attention_kernel(%arg0: i32, %arg1: memref<16x32xf32, #tpu.memory_space<vmem>>, %arg2: memref<8x32xf32, #tpu.memory_space<vmem>>, %arg3: memref<2x1xi32, #tpu.memory_space<vmem>>, %arg4: memref<32x32xf32, #tpu.memory_space<vmem>>, %arg5: memref<1x32xf32, #tpu.memory_space<vmem>>, %arg6: memref<32x32xf32, #tpu.memory_space<vmem>>, %arg7: memref<1x32xf32, #tpu.memory_space<vmem>>, %arg8: memref<32x32xf32, #tpu.memory_space<vmem>>, %arg9: memref<1x32xf32, #tpu.memory_space<vmem>>, %arg10: memref<32x32xf32, #tpu.memory_space<vmem>>, %arg11: memref<1x32xf32, #tpu.memory_space<vmem>>, %arg12: memref<32x6xf32, #tpu.memory_space<vmem>>, %arg13: memref<1x6xf32, #tpu.memory_space<vmem>>, %arg14: memref<8x6xf32, #tpu.memory_space<vmem>>, %arg15: memref<8x32xf32, #tpu.memory_space<vmem>>) attributes {dimension_semantics = [#tpu.dimension_semantics<arbitrary>], iteration_bounds = array<i64: 1>, scalar_prefetch = 0 : i64, scratch_operands = 1 : i64, tpu.core_type = #tpu.core_type<tc>, window_params = [{pipeline_mode = #tpu.pipeline_mode<synchronous>, transform_indices = @transform_0, window_bounds = array<i64: 16, 32>}, {pipeline_mode = #tpu.pipeline_mode<synchronous>, transform_indices = @transform_1, window_bounds = array<i64: 8, 32>}, {pipeline_mode = #tpu.pipeline_mode<synchronous>, transform_indices = @transform_2, window_bounds = array<i64: 2, 1>}, {pipeline_mode = #tpu.pipeline_mode<synchronous>, transform_indices = @transform_3, window_bounds = array<i64: 32, 32>}, {pipeline_mode = #tpu.pipeline_mode<synchronous>, transform_indices = @transform_4, window_bounds = array<i64: 1, 32>}, {pipeline_mode = #tpu.pipeline_mode<synchronous>, transform_indices = @transform_5, window_bounds = array<i64: 32, 32>}, {pipeline_mode = #tpu.pipeline_mode<synchronous>, transform_indices = @transform_6, window_bounds = array<i64: 1, 32>}, {pipeline_mode = #tpu.pipeline_mode<synchronous>, transform_indices = @transform_7, window_bounds = array<i64: 32, 32>}, {pipeline_mode = #tpu.pipeline_mode<synchronous>, transform_indices = @transform_8, window_bounds = array<i64: 1, 32>}, {pipeline_mode = #tpu.pipeline_mode<synchronous>, transform_indices = @transform_9, window_bounds = array<i64: 32, 32>}, {pipeline_mode = #tpu.pipeline_mode<synchronous>, transform_indices = @transform_10, window_bounds = array<i64: 1, 32>}, {pipeline_mode = #tpu.pipeline_mode<synchronous>, transform_indices = @transform_11, window_bounds = array<i64: 32, 6>}, {pipeline_mode = #tpu.pipeline_mode<synchronous>, transform_indices = @transform_12, window_bounds = array<i64: 1, 6>}, {pipeline_mode = #tpu.pipeline_mode<synchronous>, transform_indices = @transform_13, window_bounds = array<i64: 8, 6>}]} {
    %c0 = arith.constant 0 : index
    %c0_0 = arith.constant 0 : index
    %0 = vector.load %arg1[%c0, %c0_0] : memref<16x32xf32, #tpu.memory_space<vmem>>, vector<16x32xf32>
    %c0_1 = arith.constant 0 : index
    %c0_2 = arith.constant 0 : index
    %1 = vector.load %arg2[%c0_1, %c0_2] : memref<8x32xf32, #tpu.memory_space<vmem>>, vector<8x32xf32>
    %c0_3 = arith.constant 0 : index
    %c0_4 = arith.constant 0 : index
    %2 = vector.load %arg3[%c0_3, %c0_4] : memref<2x1xi32, #tpu.memory_space<vmem>>, vector<2x1xi32>
    %c0_5 = arith.constant 0 : index
    %c0_6 = arith.constant 0 : index
    %3 = vector.load %arg4[%c0_5, %c0_6] : memref<32x32xf32, #tpu.memory_space<vmem>>, vector<32x32xf32>
    %cst = arith.constant dense<0.000000e+00> : vector<16x32xf32>
    %4 = tpu.matmul %0, %3, %cst {dimension_numbers = #tpu.dot_dimension_numbers<[1], [0], [0], [1], [0, 0, 1, 1], [], []>} : vector<16x32xf32>, vector<32x32xf32>, vector<16x32xf32> -> vector<16x32xf32>
    %c0_7 = arith.constant 0 : index
    %c0_8 = arith.constant 0 : index
    %5 = vector.load %arg5[%c0_7, %c0_8] : memref<1x32xf32, #tpu.memory_space<vmem>>, vector<1x32xf32>
    %6 = vector.broadcast %5 : vector<1x32xf32> to vector<16x32xf32>
    %7 = arith.addf %4, %6 : vector<16x32xf32>
    %8 = vector.extract_strided_slice %7 {offsets = [0, 0], sizes = [8, 32], strides = [1, 1]} : vector<16x32xf32> to vector<8x32xf32>
    %9 = vector.extract_strided_slice %0 {offsets = [0, 0], sizes = [8, 32], strides = [1, 1]} : vector<16x32xf32> to vector<8x32xf32>
    %10 = vector.extract_strided_slice %1 {offsets = [0, 0], sizes = [4, 32], strides = [1, 1]} : vector<8x32xf32> to vector<4x32xf32>
    %cst_9 = arith.constant dense<0.000000e+00> : vector<4x8xf32>
    %11 = tpu.matmul %10, %8, %cst_9 {dimension_numbers = #tpu.dot_dimension_numbers<[1], [1], [0], [0], [0, 0, 1, 0], [], []>} : vector<4x32xf32>, vector<8x32xf32>, vector<4x8xf32> -> vector<4x8xf32>
    %12 = tpu.iota {dimensions = array<i32: 1>} : vector<4x8xi32>
    %13 = vector.extract_strided_slice %2 {offsets = [0, 0], sizes = [1, 1], strides = [1, 1]} : vector<2x1xi32> to vector<1x1xi32>
    %14 = vector.broadcast %13 : vector<1x1xi32> to vector<4x8xi32>
    %15 = arith.cmpi slt, %12, %14 : vector<4x8xi32>
    %cst_10 = arith.constant -1.000000e+02 : f32
    %16 = vector.broadcast %cst_10 : f32 to vector<4x8xf32>
    %17 = arith.select %15, %11, %16 : vector<4x8xi1>, vector<4x8xf32>
    %cst_11 = arith.constant dense<0xFF800000> : vector<4xf32>
    %18 = vector.multi_reduction <maximumf>, %17, %cst_11 [1] : vector<4x8xf32> to vector<4xf32>
    %19 = vector.shape_cast %18 : vector<4xf32> to vector<4x1xf32>
    %20 = vector.broadcast %19 : vector<4x1xf32> to vector<4x8xf32>
    %21 = arith.subf %17, %20 : vector<4x8xf32>
    %22 = math.exp %21 : vector<4x8xf32>
    %cst_12 = arith.constant dense<0.000000e+00> : vector<4xf32>
    %23 = vector.multi_reduction <add>, %22, %cst_12 [1] : vector<4x8xf32> to vector<4xf32>
    %24 = vector.shape_cast %23 : vector<4xf32> to vector<4x1xf32>
    %25 = vector.broadcast %24 : vector<4x1xf32> to vector<4x8xf32>
    %26 = arith.divf %22, %25 : vector<4x8xf32>
    %cst_13 = arith.constant dense<0.000000e+00> : vector<4x32xf32>
    %27 = tpu.matmul %26, %9, %cst_13 {dimension_numbers = #tpu.dot_dimension_numbers<[1], [0], [0], [1], [0, 0, 1, 1], [], []>} : vector<4x8xf32>, vector<8x32xf32>, vector<4x32xf32> -> vector<4x32xf32>
    %c0_14 = arith.constant 0 : index
    %c0_15 = arith.constant 0 : index
    %28 = vector.load %arg15[%c0_14, %c0_15] : memref<8x32xf32, #tpu.memory_space<vmem>>, vector<4x32xf32>
    tpu.vector_store %arg15[%c0_14, %c0_15], %27 {strides = array<i32>} : memref<8x32xf32, #tpu.memory_space<vmem>>, vector<4x32xf32>,
    %29 = vector.extract_strided_slice %7 {offsets = [8, 0], sizes = [8, 32], strides = [1, 1]} : vector<16x32xf32> to vector<8x32xf32>
    %30 = vector.extract_strided_slice %0 {offsets = [8, 0], sizes = [8, 32], strides = [1, 1]} : vector<16x32xf32> to vector<8x32xf32>
    %31 = vector.extract_strided_slice %1 {offsets = [4, 0], sizes = [4, 32], strides = [1, 1]} : vector<8x32xf32> to vector<4x32xf32>
    %cst_16 = arith.constant dense<0.000000e+00> : vector<4x8xf32>
    %32 = tpu.matmul %31, %29, %cst_16 {dimension_numbers = #tpu.dot_dimension_numbers<[1], [1], [0], [0], [0, 0, 1, 0], [], []>} : vector<4x32xf32>, vector<8x32xf32>, vector<4x8xf32> -> vector<4x8xf32>
    %33 = tpu.iota {dimensions = array<i32: 1>} : vector<4x8xi32>
    %34 = vector.extract_strided_slice %2 {offsets = [1, 0], sizes = [1, 1], strides = [1, 1]} : vector<2x1xi32> to vector<1x1xi32>
    %35 = vector.broadcast %34 : vector<1x1xi32> to vector<4x8xi32>
    %36 = arith.cmpi slt, %33, %35 : vector<4x8xi32>
    %cst_17 = arith.constant -1.000000e+02 : f32
    %37 = vector.broadcast %cst_17 : f32 to vector<4x8xf32>
    %38 = arith.select %36, %32, %37 : vector<4x8xi1>, vector<4x8xf32>
    %cst_18 = arith.constant dense<0xFF800000> : vector<4xf32>
    %39 = vector.multi_reduction <maximumf>, %38, %cst_18 [1] : vector<4x8xf32> to vector<4xf32>
    %40 = vector.shape_cast %39 : vector<4xf32> to vector<4x1xf32>
    %41 = vector.broadcast %40 : vector<4x1xf32> to vector<4x8xf32>
    %42 = arith.subf %38, %41 : vector<4x8xf32>
    %43 = math.exp %42 : vector<4x8xf32>
    %cst_19 = arith.constant dense<0.000000e+00> : vector<4xf32>
    %44 = vector.multi_reduction <add>, %43, %cst_19 [1] : vector<4x8xf32> to vector<4xf32>
    %45 = vector.shape_cast %44 : vector<4xf32> to vector<4x1xf32>
    %46 = vector.broadcast %45 : vector<4x1xf32> to vector<4x8xf32>
    %47 = arith.divf %43, %46 : vector<4x8xf32>
    %cst_20 = arith.constant dense<0.000000e+00> : vector<4x32xf32>
    %48 = tpu.matmul %47, %30, %cst_20 {dimension_numbers = #tpu.dot_dimension_numbers<[1], [0], [0], [1], [0, 0, 1, 1], [], []>} : vector<4x8xf32>, vector<8x32xf32>, vector<4x32xf32> -> vector<4x32xf32>
    %c4 = arith.constant 4 : index
    %c0_21 = arith.constant 0 : index
    %49 = vector.load %arg15[%c4, %c0_21] : memref<8x32xf32, #tpu.memory_space<vmem>>, vector<4x32xf32>
    tpu.vector_store %arg15[%c4, %c0_21], %48 {strides = array<i32>} : memref<8x32xf32, #tpu.memory_space<vmem>>, vector<4x32xf32>,
    %c0_22 = arith.constant 0 : index
    %c0_23 = arith.constant 0 : index
    %50 = vector.load %arg15[%c0_22, %c0_23] : memref<8x32xf32, #tpu.memory_space<vmem>>, vector<8x32xf32>
    %c0_24 = arith.constant 0 : index
    %c0_25 = arith.constant 0 : index
    %51 = vector.load %arg6[%c0_24, %c0_25] : memref<32x32xf32, #tpu.memory_space<vmem>>, vector<32x32xf32>
    %cst_26 = arith.constant dense<0.000000e+00> : vector<8x32xf32>
    %52 = tpu.matmul %50, %51, %cst_26 {dimension_numbers = #tpu.dot_dimension_numbers<[1], [0], [0], [1], [0, 0, 1, 1], [], []>} : vector<8x32xf32>, vector<32x32xf32>, vector<8x32xf32> -> vector<8x32xf32>
    %c0_27 = arith.constant 0 : index
    %c0_28 = arith.constant 0 : index
    %53 = vector.load %arg7[%c0_27, %c0_28] : memref<1x32xf32, #tpu.memory_space<vmem>>, vector<1x32xf32>
    %54 = vector.broadcast %53 : vector<1x32xf32> to vector<8x32xf32>
    %55 = arith.addf %52, %54 : vector<8x32xf32>
    %c0_29 = arith.constant 0 : index
    %c0_30 = arith.constant 0 : index
    %56 = vector.load %arg8[%c0_29, %c0_30] : memref<32x32xf32, #tpu.memory_space<vmem>>, vector<32x32xf32>
    %cst_31 = arith.constant dense<0.000000e+00> : vector<8x32xf32>
    %57 = tpu.matmul %1, %56, %cst_31 {dimension_numbers = #tpu.dot_dimension_numbers<[1], [0], [0], [1], [0, 0, 1, 1], [], []>} : vector<8x32xf32>, vector<32x32xf32>, vector<8x32xf32> -> vector<8x32xf32>
    %58 = arith.addf %55, %57 : vector<8x32xf32>
    %c0_32 = arith.constant 0 : index
    %c0_33 = arith.constant 0 : index
    %59 = vector.load %arg9[%c0_32, %c0_33] : memref<1x32xf32, #tpu.memory_space<vmem>>, vector<1x32xf32>
    %60 = vector.broadcast %59 : vector<1x32xf32> to vector<8x32xf32>
    %61 = arith.addf %58, %60 : vector<8x32xf32>
    %c0_34 = arith.constant 0 : index
    %c0_35 = arith.constant 0 : index
    %62 = vector.load %arg10[%c0_34, %c0_35] : memref<32x32xf32, #tpu.memory_space<vmem>>, vector<32x32xf32>
    %cst_36 = arith.constant dense<0.000000e+00> : vector<8x32xf32>
    %63 = tpu.matmul %61, %62, %cst_36 {dimension_numbers = #tpu.dot_dimension_numbers<[1], [0], [0], [1], [0, 0, 1, 1], [], []>} : vector<8x32xf32>, vector<32x32xf32>, vector<8x32xf32> -> vector<8x32xf32>
    %c0_37 = arith.constant 0 : index
    %c0_38 = arith.constant 0 : index
    %64 = vector.load %arg11[%c0_37, %c0_38] : memref<1x32xf32, #tpu.memory_space<vmem>>, vector<1x32xf32>
    %65 = vector.broadcast %64 : vector<1x32xf32> to vector<8x32xf32>
    %66 = arith.addf %63, %65 : vector<8x32xf32>
    %67 = math.tanh %66 : vector<8x32xf32>
    %c0_39 = arith.constant 0 : index
    %c0_40 = arith.constant 0 : index
    %68 = vector.load %arg12[%c0_39, %c0_40] : memref<32x6xf32, #tpu.memory_space<vmem>>, vector<32x6xf32>
    %cst_41 = arith.constant dense<0.000000e+00> : vector<8x6xf32>
    %69 = tpu.matmul %67, %68, %cst_41 {dimension_numbers = #tpu.dot_dimension_numbers<[1], [0], [0], [1], [0, 0, 1, 1], [], []>} : vector<8x32xf32>, vector<32x6xf32>, vector<8x6xf32> -> vector<8x6xf32>
    %c0_42 = arith.constant 0 : index
    %c0_43 = arith.constant 0 : index
    %70 = vector.load %arg13[%c0_42, %c0_43] : memref<1x6xf32, #tpu.memory_space<vmem>>, vector<1x6xf32>
    %71 = vector.broadcast %70 : vector<1x6xf32> to vector<8x6xf32>
    %72 = arith.addf %69, %71 : vector<8x6xf32>
    %c0_44 = arith.constant 0 : index
    %c0_45 = arith.constant 0 : index
    %73 = vector.load %arg14[%c0_44, %c0_45] : memref<8x6xf32, #tpu.memory_space<vmem>>, vector<8x6xf32>
    tpu.vector_store %arg14[%c0_44, %c0_45], %72 {strides = array<i32>} : memref<8x6xf32, #tpu.memory_space<vmem>>, vector<8x6xf32>,
    return
  }
  func.func @transform_0(%arg0: i32) -> (i32, i32) {
    %c0_i32 = arith.constant 0 : i32
    %c0_i32_0 = arith.constant 0 : i32
    %c0_i32_1 = arith.constant 0 : i32
    return %c0_i32, %c0_i32_0 : i32, i32
  }
  func.func @transform_1(%arg0: i32) -> (i32, i32) {
    %c0_i32 = arith.constant 0 : i32
    %c0_i32_0 = arith.constant 0 : i32
    %c0_i32_1 = arith.constant 0 : i32
    return %c0_i32, %c0_i32_0 : i32, i32
  }
  func.func @transform_2(%arg0: i32) -> (i32, i32) {
    %c0_i32 = arith.constant 0 : i32
    %c0_i32_0 = arith.constant 0 : i32
    %c0_i32_1 = arith.constant 0 : i32
    return %c0_i32, %c0_i32_0 : i32, i32
  }
  func.func @transform_3(%arg0: i32) -> (i32, i32) {
    %c0_i32 = arith.constant 0 : i32
    %c0_i32_0 = arith.constant 0 : i32
    %c0_i32_1 = arith.constant 0 : i32
    return %c0_i32, %c0_i32_0 : i32, i32
  }
  func.func @transform_4(%arg0: i32) -> (i32, i32) {
    %c0_i32 = arith.constant 0 : i32
    %c0_i32_0 = arith.constant 0 : i32
    %c0_i32_1 = arith.constant 0 : i32
    return %c0_i32, %c0_i32_0 : i32, i32
  }
  func.func @transform_5(%arg0: i32) -> (i32, i32) {
    %c0_i32 = arith.constant 0 : i32
    %c0_i32_0 = arith.constant 0 : i32
    %c0_i32_1 = arith.constant 0 : i32
    return %c0_i32, %c0_i32_0 : i32, i32
  }
  func.func @transform_6(%arg0: i32) -> (i32, i32) {
    %c0_i32 = arith.constant 0 : i32
    %c0_i32_0 = arith.constant 0 : i32
    %c0_i32_1 = arith.constant 0 : i32
    return %c0_i32, %c0_i32_0 : i32, i32
  }
  func.func @transform_7(%arg0: i32) -> (i32, i32) {
    %c0_i32 = arith.constant 0 : i32
    %c0_i32_0 = arith.constant 0 : i32
    %c0_i32_1 = arith.constant 0 : i32
    return %c0_i32, %c0_i32_0 : i32, i32
  }
  func.func @transform_8(%arg0: i32) -> (i32, i32) {
    %c0_i32 = arith.constant 0 : i32
    %c0_i32_0 = arith.constant 0 : i32
    %c0_i32_1 = arith.constant 0 : i32
    return %c0_i32, %c0_i32_0 : i32, i32
  }
  func.func @transform_9(%arg0: i32) -> (i32, i32) {
    %c0_i32 = arith.constant 0 : i32
    %c0_i32_0 = arith.constant 0 : i32
    %c0_i32_1 = arith.constant 0 : i32
    return %c0_i32, %c0_i32_0 : i32, i32
  }
  func.func @transform_10(%arg0: i32) -> (i32, i32) {
    %c0_i32 = arith.constant 0 : i32
    %c0_i32_0 = arith.constant 0 : i32
    %c0_i32_1 = arith.constant 0 : i32
    return %c0_i32, %c0_i32_0 : i32, i32
  }
  func.func @transform_11(%arg0: i32) -> (i32, i32) {
    %c0_i32 = arith.constant 0 : i32
    %c0_i32_0 = arith.constant 0 : i32
    %c0_i32_1 = arith.constant 0 : i32
    return %c0_i32, %c0_i32_0 : i32, i32
  }
  func.func @transform_12(%arg0: i32) -> (i32, i32) {
    %c0_i32 = arith.constant 0 : i32
    %c0_i32_0 = arith.constant 0 : i32
    %c0_i32_1 = arith.constant 0 : i32
    return %c0_i32, %c0_i32_0 : i32, i32
  }
  func.func @transform_13(%arg0: i32) -> (i32, i32) {
    %c0_i32 = arith.constant 0 : i32
    %c0_i32_0 = arith.constant 0 : i32
    %c0_i32_1 = arith.constant 0 : i32
    return %c0_i32, %c0_i32_0 : i32, i32
  }
}

</mosaic_0001>

<llo_original>
// kernel: _lambda_.5
$region0: #{_lambda_.5}
  #allocation0 [shape = 'u32[]', space=smem, size = 0x4, offset = 0x4, fixed_abs, tag = 'smem constant byte address 0x4 - core index']
  #allocation1 [shape = 'u32[72,128]{1,0:T(1,128)}', space=vmem, size = 0x9000, scoped, tag = 'internal scratch']
  %s0 = inlined_call_operand.vmem [shape: f32[4,7,64], index: 0, kind: input, shape index: {}]
  %s1 = inlined_call_operand.vmem [shape: f32[4,7,64], index: 1, kind: input, shape index: {}]
  %s2 = inlined_call_operand.vmem [shape: s32[7,1], index: 2, kind: input, shape index: {}]
  %s3 = inlined_call_operand.vmem [shape: f32[16,64], index: 3, kind: input, shape index: {}]
  %s4 = inlined_call_operand.vmem [shape: f32[16,64], index: 4, kind: input, shape index: {}]
  %s5 = inlined_call_operand.vmem [shape: f32[4,7,16], index: 5, kind: output, shape index: {0}]
  %s6 = inlined_call_operand.vmem [shape: f32[4,7,16], index: 6, kind: output, shape index: {1}]
  %7 = xla_tuple %s5, %s6
  %s8 = sld [smem:[#allocation0]]
  $region38: #{_lambda_.5} parent=0
    _
  %s10 = ssub.s32 1, %s8
  %s11 = scalar_select 0, %s10, %s8
  // Predicated region
  $region2: #{_lambda_.5} parent=0 // pred_check
    _
  $region3: #{_lambda_.5} parent=0 // pred_check_branch
    %13 = sbr.rel (0) target = $region5
  $region4: #{_lambda_.5} parent=0 // pred_region
    _
  $region5: #{_lambda_.5} parent=0 // pred_fallthru
    _
  // Predicated region
  $region6: #{_lambda_.5} parent=0 // pred_check
    _
  $region7: #{_lambda_.5} parent=0 // pred_check_branch
    %15 = sbr.rel (0) target = $region9
  $region8: #{_lambda_.5} parent=0 // pred_region
    _
  $region9: #{_lambda_.5} parent=0 // pred_fallthru
    _
  // Predicated region
  $region10: #{_lambda_.5} parent=0 // pred_check
    _
  $region11: #{_lambda_.5} parent=0 // pred_check_branch
    %17 = sbr.rel (0) target = $region13
  $region12: #{_lambda_.5} parent=0 // pred_region
    _
  $region13: #{_lambda_.5} parent=0 // pred_fallthru
    _
  // Predicated region
  $region14: #{_lambda_.5} parent=0 // pred_check
    _
  $region15: #{_lambda_.5} parent=0 // pred_check_branch
    %19 = sbr.rel (0) target = $region17
  $region16: #{_lambda_.5} parent=0 // pred_region
    _
  $region17: #{_lambda_.5} parent=0 // pred_fallthru
    _
  // Predicated region
  $region18: #{_lambda_.5} parent=0 // pred_check
    _
  $region19: #{_lambda_.5} parent=0 // pred_check_branch
    %21 = sbr.rel (0) target = $region21
  $region20: #{_lambda_.5} parent=0 // pred_region
    _
  $region21: #{_lambda_.5} parent=0 // pred_fallthru
    _
  %v22 = vld [vmem:[%s2] sm:$0x7f]
  %v23 = vld [vmem:[%s3] sm:$0xff]
  %v24 = vld [vmem:[%s3 + $0x8] sm:$0xff]
  %v25 = vld [vmem:[%s4] sm:$0xff]
  %v26 = vld [vmem:[%s4 + $0x8] sm:$0xff]
  %v27 = vld [vmem:[%s0] sm:$0x7f]
  %vm28 = vcmask 130048
  %v30 = vsel %vm28, 0.0, 0
  %32 = vmatpush.msra.mxu0 0.0
  %33 = vmatpush.msra.mxu0 0.0
  %34 = vmatpush.msra.mxu0 0.0
  %35 = vmatpush.msra.mxu0 0.0
  %36 = vmatpush.msra.mxu0 0.0
  %37 = vmatpush.msra.mxu0 0.0
  %38 = vmatpush.msra.mxu0 0.0
  %39 = vmatpush.msra.mxu0 0.0
  %40 = vmatpush.msra.mxu0 0.0
  %41 = vmatpush.msra.mxu0 0.0
  %42 = vmatpush.msra.mxu0 0.0
  %43 = vmatpush.msra.mxu0 0.0
  %44 = vmatpush.msra.mxu0 0.0
  %45 = vmatpush.msra.mxu0 0.0
  %46 = vmatpush.msra.mxu0 %v24
  %47 = vmatpush.msra.mxu0 %v23
  %48 = vmatmul.f32.gmra.mxu0 %v30
  %v49 = vpop.f32.mrf.mxu0
  %v50 = vadd.f32 0.0, %v49
  %51 = vdwg.mxu0
  %v52 = vadd.f32 %v27, %v50
  %s53 = scalar_lea.vmem %s1, 24
  %v54 = vld [vmem:[%s53] sm:$0x7f]
  %55 = vmatpush.msra.mxu0 0.0
  %56 = vmatpush.msra.mxu0 0.0
  %57 = vmatpush.msra.mxu0 0.0
  %58 = vmatpush.msra.mxu0 0.0
  %59 = vmatpush.msra.mxu0 0.0
  %60 = vmatpush.msra.mxu0 0.0
  %61 = vmatpush.msra.mxu0 0.0
  %62 = vmatpush.msra.mxu0 0.0
  %63 = vmatpush.msra.mxu0 0.0
  %64 = vmatpush.msra.mxu0 0.0
  %65 = vmatpush.msra.mxu0 0.0
  %66 = vmatpush.msra.mxu0 0.0
  %67 = vmatpush.msra.mxu0 0.0
  %68 = vmatpush.msra.mxu0 0.0
  %69 = vmatpush.msra.mxu0 %v26
  %70 = vmatpush.msra.mxu0 %v25
  %71 = vmatmul.f32.gmra.mxu0 %v30
  %v72 = vpop.f32.mrf.mxu0
  %v73 = vadd.f32 0.0, %v72
  %74 = vdwg.mxu0
  %v75 = vadd.f32 %v54, %v73
  %v76 = vxor.u32 %v52, 2147483648
  %v77 = vmul.f32 %v76, 1.442695
  %v78 = vpow.pop %v77
  %v79 = vadd.f32 %v78, 1.0
  %v80 = vrcp.pop %v79
  %v81 = vmul.f32 %v79, %v80
  %v82 = vsub.f32 1.0, %v81
  %v83 = vmul.f32 %v80, %v82
  %v84 = vadd.f32 %v80, %v83
  %vm85 = vweird.f32 %v79
  %vm86 = vweird.f32 %v80
  %vm87 = vmor %vm85, %vm86
  %v88 = vsel %vm87, %v80, %v84
  %v89 = vand.u32 2147483647, %v79
  %vm90 = vcmp.eq.f32.partialorder %v89, 8.507059e+37
  %v91 = vand.u32 %v79, 2147483648
  %v92 = vor.u32 1.1754944e-38, %v91
  %v93 = vsel %vm90, %v92, %v88
  %v94 = vmul.f32 1.0, %v93
  %v95 = vtanh.pop %v52
  %v96 = vmul.f32 %v94, 0.0
  %98 = vrot.lane.b32.xlu0 %v95, 96
  %v99 = vpop.permute.xlu0 %98
  %v101 = vmul.f32 %v94, %v99
  %103 = vrot.lane.b32.xlu0 %v101, 16
  %v104 = vpop.permute.xlu0 %103
  %v106 = vadd.f32 %v96, %v104
  %v107 = vtanh.pop %v106
  %109 = vrot.lane.b32.xlu0 %v107, 32
  %v110 = vpop.permute.xlu0 %109
  %v112 = vmul.f32 %v94, %v110
  %v113 = vxor.u32 %v75, 2147483648
  %v114 = vmul.f32 %v113, 1.442695
  %v115 = vpow.pop %v114
  %v116 = vadd.f32 %v115, 1.0
  %v117 = vrcp.pop %v116
  %v118 = vmul.f32 %v116, %v117
  %v119 = vsub.f32 1.0, %v118
  %v120 = vmul.f32 %v117, %v119
  %v121 = vadd.f32 %v117, %v120
  %vm122 = vweird.f32 %v116
  %vm123 = vweird.f32 %v117
  %vm124 = vmor %vm122, %vm123
  %v125 = vsel %vm124, %v117, %v121
  %v126 = vand.u32 2147483647, %v116
  %vm127 = vcmp.eq.f32.partialorder %v126, 8.507059e+37
  %v128 = vand.u32 %v116, 2147483648
  %v129 = vor.u32 1.1754944e-38, %v128
  %v130 = vsel %vm127, %v129, %v125
  %v131 = vmul.f32 1.0, %v130
  %v132 = vtanh.pop %v75
  %v133 = vmul.f32 %v131, 0.0
  %135 = vrot.lane.b32.xlu0 %v132, 96
  %v136 = vpop.permute.xlu0 %135
  %v138 = vmul.f32 %v131, %v136
  %140 = vrot.lane.b32.xlu0 %v138, 16
  %v141 = vpop.permute.xlu0 %140
  %v143 = vadd.f32 %v133, %v141
  %v144 = vtanh.pop %v143
  %146 = vrot.lane.b32.xlu0 %v144, 32
  %v147 = vpop.permute.xlu0 %146
  %v149 = vmul.f32 %v131, %v147
  %vm150 = vcmp.gt.s32.totalorder %v22, 0
  %vm151 = vcmp.gt.s32.totalorder %v22, 3
  %v152 = vsel %vm150, 1, 0
  %153 = vset.pattern.permute.xlu0 0
  %154 = vperm.xlu0 %153, %v152
  %v155 = vpop.permute.xlu0 %154
  %vm156 = vcmp.eq.s32.totalorder %v155, 1
  %v157 = vsel %vm156, %v112, 0.0
  %159 = vrot.lane.b32.xlu0 %v157, 80
  %v160 = vpop.permute.xlu0 %159
  %vm162 = vcmask 129024
  %163 = vst.msk [vmem:[%s5] sm:$0x7f] %vm162, %v160
  %v164 = vsel %vm151, 1, 0
  %165 = vset.pattern.permute.xlu0 0
  %166 = vperm.xlu0 %165, %v164
  %v167 = vpop.permute.xlu0 %166
  %vm168 = vcmp.eq.s32.totalorder %v167, 1
  %v169 = vsel %vm168, %v149, 0.0
  %171 = vrot.lane.b32.xlu0 %v169, 80
  %v172 = vpop.permute.xlu0 %171
  %s174 = scalar_lea.vmem %s6, 24
  %175 = vst.msk [vmem:[%s174] sm:$0x7f] %vm162, %v172
  %v176 = vsel %vm156, %v106, 0.0
  %v177 = vsel %vm168, %v143, 0.0
  %s178 = scalar_lea.vmem %s0, 8
  %v179 = vld [vmem:[%s178] sm:$0x7f]
  %v180 = vsel %vm28, %v160, 0
  %182 = vmatpush.msra.mxu0 0.0
  %183 = vmatpush.msra.mxu0 0.0
  %184 = vmatpush.msra.mxu0 0.0
  %185 = vmatpush.msra.mxu0 0.0
  %186 = vmatpush.msra.mxu0 0.0
  %187 = vmatpush.msra.mxu0 0.0
  %188 = vmatpush.msra.mxu0 0.0
  %189 = vmatpush.msra.mxu0 0.0
  %190 = vmatpush.msra.mxu0 0.0
  %191 = vmatpush.msra.mxu0 0.0
  %192 = vmatpush.msra.mxu0 0.0
  %193 = vmatpush.msra.mxu0 0.0
  %194 = vmatpush.msra.mxu0 0.0
  %195 = vmatpush.msra.mxu0 0.0
  %196 = vmatpush.msra.mxu0 %v24
  %197 = vmatpush.msra.mxu0 %v23
  %198 = vmatmul.f32.gmra.mxu0 %v180
  %v199 = vpop.f32.mrf.mxu0
  %v200 = vadd.f32 0.0, %v199
  %201 = vdwg.mxu0
  %v202 = vadd.f32 %v179, %v200
  %s203 = scalar_lea.vmem %s1, 16
  %v204 = vld [vmem:[%s203] sm:$0x7f]
  %v205 = vsel %vm28, %v172, 0
  %207 = vmatpush.msra.mxu0 0.0
  %208 = vmatpush.msra.mxu0 0.0
  %209 = vmatpush.msra.mxu0 0.0
  %210 = vmatpush.msra.mxu0 0.0
  %211 = vmatpush.msra.mxu0 0.0
  %212 = vmatpush.msra.mxu0 0.0
  %213 = vmatpush.msra.mxu0 0.0
  %214 = vmatpush.msra.mxu0 0.0
  %215 = vmatpush.msra.mxu0 0.0
  %216 = vmatpush.msra.mxu0 0.0
  %217 = vmatpush.msra.mxu0 0.0
  %218 = vmatpush.msra.mxu0 0.0
  %219 = vmatpush.msra.mxu0 0.0
  %220 = vmatpush.msra.mxu0 0.0
  %221 = vmatpush.msra.mxu0 %v26
  %222 = vmatpush.msra.mxu0 %v25
  %223 = vmatmul.f32.gmra.mxu0 %v205
  %v224 = vpop.f32.mrf.mxu0
  %v225 = vadd.f32 0.0, %v224
  %226 = vdwg.mxu0
  %v227 = vadd.f32 %v204, %v225
  %v228 = vxor.u32 %v202, 2147483648
  %v229 = vmul.f32 %v228, 1.442695
  %v230 = vpow.pop %v229
  %v231 = vadd.f32 %v230, 1.0
  %v232 = vrcp.pop %v231
  %v233 = vmul.f32 %v231, %v232
  %v234 = vsub.f32 1.0, %v233
  %v235 = vmul.f32 %v232, %v234
  %v236 = vadd.f32 %v232, %v235
  %vm237 = vweird.f32 %v231
  %vm238 = vweird.f32 %v232
  %vm239 = vmor %vm237, %vm238
  %v240 = vsel %vm239, %v232, %v236
  %v241 = vand.u32 2147483647, %v231
  %vm242 = vcmp.eq.f32.partialorder %v241, 8.507059e+37
  %v243 = vand.u32 %v231, 2147483648
  %v244 = vor.u32 1.1754944e-38, %v243
  %v245 = vsel %vm242, %v244, %v240
  %v246 = vmul.f32 1.0, %v245
  %v247 = vtanh.pop %v202
  %v248 = vmul.f32 %v246, %v176
  %250 = vrot.lane.b32.xlu0 %v247, 96
  %v251 = vpop.permute.xlu0 %250
  %v253 = vmul.f32 %v246, %v251
  %255 = vrot.lane.b32.xlu0 %v253, 16
  %v256 = vpop.permute.xlu0 %255
  %v258 = vadd.f32 %v248, %v256
  %v259 = vtanh.pop %v258
  %261 = vrot.lane.b32.xlu0 %v259, 32
  %v262 = vpop.permute.xlu0 %261
  %v264 = vmul.f32 %v246, %v262
  %v265 = vxor.u32 %v227, 2147483648
  %v266 = vmul.f32 %v265, 1.442695
  %v267 = vpow.pop %v266
  %v268 = vadd.f32 %v267, 1.0
  %v269 = vrcp.pop %v268
  %v270 = vmul.f32 %v268, %v269
  %v271 = vsub.f32 1.0, %v270
  %v272 = vmul.f32 %v269, %v271
  %v273 = vadd.f32 %v269, %v272
  %vm274 = vweird.f32 %v268
  %vm275 = vweird.f32 %v269
  %vm276 = vmor %vm274, %vm275
  %v277 = vsel %vm276, %v269, %v273
  %v278 = vand.u32 2147483647, %v268
  %vm279 = vcmp.eq.f32.partialorder %v278, 8.507059e+37
  %v280 = vand.u32 %v268, 2147483648
  %v281 = vor.u32 1.1754944e-38, %v280
  %v282 = vsel %vm279, %v281, %v277
  %v283 = vmul.f32 1.0, %v282
  %v284 = vtanh.pop %v227
  %v285 = vmul.f32 %v283, %v177
  %287 = vrot.lane.b32.xlu0 %v284, 96
  %v288 = vpop.permute.xlu0 %287
  %v290 = vmul.f32 %v283, %v288
  %292 = vrot.lane.b32.xlu0 %v290, 16
  %v293 = vpop.permute.xlu0 %292
  %v295 = vadd.f32 %v285, %v293
  %v296 = vtanh.pop %v295
  %298 = vrot.lane.b32.xlu0 %v296, 32
  %v299 = vpop.permute.xlu0 %298
  %v301 = vmul.f32 %v283, %v299
  %vm302 = vcmp.gt.s32.totalorder %v22, 1
  %vm303 = vcmp.gt.s32.totalorder %v22, 2
  %v304 = vsel %vm302, 1, 0
  %305 = vset.pattern.permute.xlu0 0
  %306 = vperm.xlu0 %305, %v304
  %v307 = vpop.permute.xlu0 %306
  %vm308 = vcmp.eq.s32.totalorder %v307, 1
  %v309 = vsel %vm308, %v264, 0.0
  %311 = vrot.lane.b32.xlu0 %v309, 80
  %v312 = vpop.permute.xlu0 %311
  %s314 = scalar_lea.vmem %s5, 8
  %315 = vst.msk [vmem:[%s314] sm:$0x7f] %vm162, %v312
  %v316 = vsel %vm303, 1, 0
  %317 = vset.pattern.permute.xlu0 0
  %318 = vperm.xlu0 %317, %v316
  %v319 = vpop.permute.xlu0 %318
  %vm320 = vcmp.eq.s32.totalorder %v319, 1
  %v321 = vsel %vm320, %v301, 0.0
  %323 = vrot.lane.b32.xlu0 %v321, 80
  %v324 = vpop.permute.xlu0 %323
  %s326 = scalar_lea.vmem %s6, 16
  %327 = vst.msk [vmem:[%s326] sm:$0x7f] %vm162, %v324
  %v328 = vsel %vm308, %v264, %v157
  %v329 = vsel %vm308, %v258, %v176
  %v330 = vsel %vm320, %v301, %v169
  %v331 = vsel %vm320, %v295, %v177
  %s332 = scalar_lea.vmem %s0, 16
  %v333 = vld [vmem:[%s332] sm:$0x7f]
  %335 = vrot.lane.b32.xlu0 %v328, 80
  %v336 = vpop.permute.xlu0 %335
  %v337 = vsel %vm28, %v336, 0
  %339 = vmatpush.msra.mxu0 0.0
  %340 = vmatpush.msra.mxu0 0.0
  %341 = vmatpush.msra.mxu0 0.0
  %342 = vmatpush.msra.mxu0 0.0
  %343 = vmatpush.msra.mxu0 0.0
  %344 = vmatpush.msra.mxu0 0.0
  %345 = vmatpush.msra.mxu0 0.0
  %346 = vmatpush.msra.mxu0 0.0
  %347 = vmatpush.msra.mxu0 0.0
  %348 = vmatpush.msra.mxu0 0.0
  %349 = vmatpush.msra.mxu0 0.0
  %350 = vmatpush.msra.mxu0 0.0
  %351 = vmatpush.msra.mxu0 0.0
  %352 = vmatpush.msra.mxu0 0.0
  %353 = vmatpush.msra.mxu0 %v24
  %354 = vmatpush.msra.mxu0 %v23
  %355 = vmatmul.f32.gmra.mxu0 %v337
  %v356 = vpop.f32.mrf.mxu0
  %v357 = vadd.f32 0.0, %v356
  %358 = vdwg.mxu0
  %v359 = vadd.f32 %v333, %v357
  %s360 = scalar_lea.vmem %s1, 8
  %v361 = vld [vmem:[%s360] sm:$0x7f]
  %363 = vrot.lane.b32.xlu0 %v330, 80
  %v364 = vpop.permute.xlu0 %363
  %v365 = vsel %vm28, %v364, 0
  %367 = vmatpush.msra.mxu0 0.0
  %368 = vmatpush.msra.mxu0 0.0
  %369 = vmatpush.msra.mxu0 0.0
  %370 = vmatpush.msra.mxu0 0.0
  %371 = vmatpush.msra.mxu0 0.0
  %372 = vmatpush.msra.mxu0 0.0
  %373 = vmatpush.msra.mxu0 0.0
  %374 = vmatpush.msra.mxu0 0.0
  %375 = vmatpush.msra.mxu0 0.0
  %376 = vmatpush.msra.mxu0 0.0
  %377 = vmatpush.msra.mxu0 0.0
  %378 = vmatpush.msra.mxu0 0.0
  %379 = vmatpush.msra.mxu0 0.0
  %380 = vmatpush.msra.mxu0 0.0
  %381 = vmatpush.msra.mxu0 %v26
  %382 = vmatpush.msra.mxu0 %v25
  %383 = vmatmul.f32.gmra.mxu0 %v365
  %v384 = vpop.f32.mrf.mxu0
  %v385 = vadd.f32 0.0, %v384
  %386 = vdwg.mxu0
  %v387 = vadd.f32 %v361, %v385
  %v388 = vxor.u32 %v359, 2147483648
  %v389 = vmul.f32 %v388, 1.442695
  %v390 = vpow.pop %v389
  %v391 = vadd.f32 %v390, 1.0
  %v392 = vrcp.pop %v391
  %v393 = vmul.f32 %v391, %v392
  %v394 = vsub.f32 1.0, %v393
  %v395 = vmul.f32 %v392, %v394
  %v396 = vadd.f32 %v392, %v395
  %vm397 = vweird.f32 %v391
  %vm398 = vweird.f32 %v392
  %vm399 = vmor %vm397, %vm398
  %v400 = vsel %vm399, %v392, %v396
  %v401 = vand.u32 2147483647, %v391
  %vm402 = vcmp.eq.f32.partialorder %v401, 8.507059e+37
  %v403 = vand.u32 %v391, 2147483648
  %v404 = vor.u32 1.1754944e-38, %v403
  %v405 = vsel %vm402, %v404, %v400
  %v406 = vmul.f32 1.0, %v405
  %v407 = vtanh.pop %v359
  %v408 = vmul.f32 %v406, %v329
  %410 = vrot.lane.b32.xlu0 %v407, 96
  %v411 = vpop.permute.xlu0 %410
  %v413 = vmul.f32 %v406, %v411
  %415 = vrot.lane.b32.xlu0 %v413, 16
  %v416 = vpop.permute.xlu0 %415
  %v418 = vadd.f32 %v408, %v416
  %v419 = vtanh.pop %v418
  %421 = vrot.lane.b32.xlu0 %v419, 32
  %v422 = vpop.permute.xlu0 %421
  %v424 = vmul.f32 %v406, %v422
  %v425 = vxor.u32 %v387, 2147483648
  %v426 = vmul.f32 %v425, 1.442695
  %v427 = vpow.pop %v426
  %v428 = vadd.f32 %v427, 1.0
  %v429 = vrcp.pop %v428
  %v430 = vmul.f32 %v428, %v429
  %v431 = vsub.f32 1.0, %v430
  %v432 = vmul.f32 %v429, %v431
  %v433 = vadd.f32 %v429, %v432
  %vm434 = vweird.f32 %v428
  %vm435 = vweird.f32 %v429
  %vm436 = vmor %vm434, %vm435
  %v437 = vsel %vm436, %v429, %v433
  %v438 = vand.u32 2147483647, %v428
  %vm439 = vcmp.eq.f32.partialorder %v438, 8.507059e+37
  %v440 = vand.u32 %v428, 2147483648
  %v441 = vor.u32 1.1754944e-38, %v440
  %v442 = vsel %vm439, %v441, %v437
  %v443 = vmul.f32 1.0, %v442
  %v444 = vtanh.pop %v387
  %v445 = vmul.f32 %v443, %v331
  %447 = vrot.lane.b32.xlu0 %v444, 96
  %v448 = vpop.permute.xlu0 %447
  %v450 = vmul.f32 %v443, %v448
  %452 = vrot.lane.b32.xlu0 %v450, 16
  %v453 = vpop.permute.xlu0 %452
  %v455 = vadd.f32 %v445, %v453
  %v456 = vtanh.pop %v455
  %458 = vrot.lane.b32.xlu0 %v456, 32
  %v459 = vpop.permute.xlu0 %458
  %v461 = vmul.f32 %v443, %v459
  %v462 = vsel %vm320, %v424, 0.0
  %464 = vrot.lane.b32.xlu0 %v462, 80
  %v465 = vpop.permute.xlu0 %464
  %s467 = scalar_lea.vmem %s5, 16
  %468 = vst.msk [vmem:[%s467] sm:$0x7f] %vm162, %v465
  %v469 = vsel %vm308, %v461, 0.0
  %471 = vrot.lane.b32.xlu0 %v469, 80
  %v472 = vpop.permute.xlu0 %471
  %s474 = scalar_lea.vmem %s6, 8
  %475 = vst.msk [vmem:[%s474] sm:$0x7f] %vm162, %v472
  %v476 = vsel %vm320, %v424, %v328
  %v477 = vsel %vm320, %v418, %v329
  %v478 = vsel %vm308, %v461, %v330
  %v479 = vsel %vm308, %v455, %v331
  %s480 = scalar_lea.vmem %s0, 24
  %v481 = vld [vmem:[%s480] sm:$0x7f]
  %483 = vrot.lane.b32.xlu0 %v476, 80
  %v484 = vpop.permute.xlu0 %483
  %v485 = vsel %vm28, %v484, 0
  %487 = vmatpush.msra.mxu0 0.0
  %488 = vmatpush.msra.mxu0 0.0
  %489 = vmatpush.msra.mxu0 0.0
  %490 = vmatpush.msra.mxu0 0.0
  %491 = vmatpush.msra.mxu0 0.0
  %492 = vmatpush.msra.mxu0 0.0
  %493 = vmatpush.msra.mxu0 0.0
  %494 = vmatpush.msra.mxu0 0.0
  %495 = vmatpush.msra.mxu0 0.0
  %496 = vmatpush.msra.mxu0 0.0
  %497 = vmatpush.msra.mxu0 0.0
  %498 = vmatpush.msra.mxu0 0.0
  %499 = vmatpush.msra.mxu0 0.0
  %500 = vmatpush.msra.mxu0 0.0
  %501 = vmatpush.msra.mxu0 %v24
  %502 = vmatpush.msra.mxu0 %v23
  %503 = vmatmul.f32.gmra.mxu0 %v485
  %v504 = vpop.f32.mrf.mxu0
  %v505 = vadd.f32 0.0, %v504
  %506 = vdwg.mxu0
  %v507 = vadd.f32 %v481, %v505
  %v508 = vld [vmem:[%s1] sm:$0x7f]
  %510 = vrot.lane.b32.xlu0 %v478, 80
  %v511 = vpop.permute.xlu0 %510
  %v512 = vsel %vm28, %v511, 0
  %514 = vmatpush.msra.mxu0 0.0
  %515 = vmatpush.msra.mxu0 0.0
  %516 = vmatpush.msra.mxu0 0.0
  %517 = vmatpush.msra.mxu0 0.0
  %518 = vmatpush.msra.mxu0 0.0
  %519 = vmatpush.msra.mxu0 0.0
  %520 = vmatpush.msra.mxu0 0.0
  %521 = vmatpush.msra.mxu0 0.0
  %522 = vmatpush.msra.mxu0 0.0
  %523 = vmatpush.msra.mxu0 0.0
  %524 = vmatpush.msra.mxu0 0.0
  %525 = vmatpush.msra.mxu0 0.0
  %526 = vmatpush.msra.mxu0 0.0
  %527 = vmatpush.msra.mxu0 0.0
  %528 = vmatpush.msra.mxu0 %v26
  %529 = vmatpush.msra.mxu0 %v25
  %530 = vmatmul.f32.gmra.mxu0 %v512
  %v531 = vpop.f32.mrf.mxu0
  %v532 = vadd.f32 0.0, %v531
  %533 = vdwg.mxu0
  %v534 = vadd.f32 %v508, %v532
  %v535 = vxor.u32 %v507, 2147483648
  %v536 = vmul.f32 %v535, 1.442695
  %v537 = vpow.pop %v536
  %v538 = vadd.f32 %v537, 1.0
  %v539 = vrcp.pop %v538
  %v540 = vmul.f32 %v538, %v539
  %v541 = vsub.f32 1.0, %v540
  %v542 = vmul.f32 %v539, %v541
  %v543 = vadd.f32 %v539, %v542
  %vm544 = vweird.f32 %v538
  %vm545 = vweird.f32 %v539
  %vm546 = vmor %vm544, %vm545
  %v547 = vsel %vm546, %v539, %v543
  %v548 = vand.u32 2147483647, %v538
  %vm549 = vcmp.eq.f32.partialorder %v548, 8.507059e+37
  %v550 = vand.u32 %v538, 2147483648
  %v551 = vor.u32 1.1754944e-38, %v550
  %v552 = vsel %vm549, %v551, %v547
  %v553 = vmul.f32 1.0, %v552
  %v554 = vtanh.pop %v507
  %v555 = vmul.f32 %v553, %v477
  %557 = vrot.lane.b32.xlu0 %v554, 96
  %v558 = vpop.permute.xlu0 %557
  %v560 = vmul.f32 %v553, %v558
  %562 = vrot.lane.b32.xlu0 %v560, 16
  %v563 = vpop.permute.xlu0 %562
  %v565 = vadd.f32 %v555, %v563
  %v566 = vtanh.pop %v565
  %568 = vrot.lane.b32.xlu0 %v566, 32
  %v569 = vpop.permute.xlu0 %568
  %v571 = vmul.f32 %v553, %v569
  %v572 = vxor.u32 %v534, 2147483648
  %v573 = vmul.f32 %v572, 1.442695
  %v574 = vpow.pop %v573
  %v575 = vadd.f32 %v574, 1.0
  %v576 = vrcp.pop %v575
  %v577 = vmul.f32 %v575, %v576
  %v578 = vsub.f32 1.0, %v577
  %v579 = vmul.f32 %v576, %v578
  %v580 = vadd.f32 %v576, %v579
  %vm581 = vweird.f32 %v575
  %vm582 = vweird.f32 %v576
  %vm583 = vmor %vm581, %vm582
  %v584 = vsel %vm583, %v576, %v580
  %v585 = vand.u32 2147483647, %v575
  %vm586 = vcmp.eq.f32.partialorder %v585, 8.507059e+37
  %v587 = vand.u32 %v575, 2147483648
  %v588 = vor.u32 1.1754944e-38, %v587
  %v589 = vsel %vm586, %v588, %v584
  %v590 = vmul.f32 1.0, %v589
  %v591 = vtanh.pop %v534
  %v592 = vmul.f32 %v590, %v479
  %594 = vrot.lane.b32.xlu0 %v591, 96
  %v595 = vpop.permute.xlu0 %594
  %v597 = vmul.f32 %v590, %v595
  %599 = vrot.lane.b32.xlu0 %v597, 16
  %v600 = vpop.permute.xlu0 %599
  %v602 = vadd.f32 %v592, %v600
  %v603 = vtanh.pop %v602
  %605 = vrot.lane.b32.xlu0 %v603, 32
  %v606 = vpop.permute.xlu0 %605
  %v608 = vmul.f32 %v590, %v606
  %v609 = vsel %vm168, %v571, 0.0
  %611 = vrot.lane.b32.xlu0 %v609, 80
  %v612 = vpop.permute.xlu0 %611
  %s614 = scalar_lea.vmem %s5, 24
  %615 = vst.msk [vmem:[%s614] sm:$0x7f] %vm162, %v612
  %v616 = vsel %vm156, %v608, 0.0
  %618 = vrot.lane.b32.xlu0 %v616, 80
  %v619 = vpop.permute.xlu0 %618
  %621 = vst.msk [vmem:[%s6] sm:$0x7f] %vm162, %v619
  // Predicated region
  $region22: #{_lambda_.5} parent=0 // pred_check
    _
  $region23: #{_lambda_.5} parent=0 // pred_check_branch
    %623 = sbr.rel (0) target = $region25
  $region24: #{_lambda_.5} parent=0 // pred_region
    _
  $region25: #{_lambda_.5} parent=0 // pred_fallthru
    _
  // Predicated region
  $region26: #{_lambda_.5} parent=0 // pred_check
    _
  $region27: #{_lambda_.5} parent=0 // pred_check_branch
    %625 = sbr.rel (0) target = $region29
  $region28: #{_lambda_.5} parent=0 // pred_region
    _
  $region29: #{_lambda_.5} parent=0 // pred_fallthru
    _
  // Predicated region
  $region30: #{_lambda_.5} parent=0 // pred_check
    _
  $region31: #{_lambda_.5} parent=0 // pred_check_branch
    %627 = sbr.rel (0) target = $region33
  $region32: #{_lambda_.5} parent=0 // pred_region
    _
  $region33: #{_lambda_.5} parent=0 // pred_fallthru
    _
  // Predicated region
  $region34: #{_lambda_.5} parent=0 // pred_check
    _
  $region35: #{_lambda_.5} parent=0 // pred_check_branch
    %629 = sbr.rel (0) target = $region37
  $region36: #{_lambda_.5} parent=0 // pred_region
    _
  $region37: #{_lambda_.5} parent=0 // pred_fallthru
    _

// kernel: _lambda_.7
$region0: #{_lambda_.7}
  #allocation0 [shape = 'u32[]', space=smem, size = 0x4, offset = 0x4, fixed_abs, tag = 'smem constant byte address 0x4 - core index']
  #allocation1 [shape = 'u32[72,128]{1,0:T(1,128)}', space=vmem, size = 0x9000, scoped, tag = 'internal scratch']
  %s0 = inlined_call_operand.vmem [shape: f32[8,2,64], index: 0, kind: input, shape index: {}]
  %s1 = inlined_call_operand.vmem [shape: f32[8,2,64], index: 1, kind: input, shape index: {}]
  %s2 = inlined_call_operand.vmem [shape: s32[2,1], index: 2, kind: input, shape index: {}]
  %s3 = inlined_call_operand.vmem [shape: f32[16,64], index: 3, kind: input, shape index: {}]
  %s4 = inlined_call_operand.vmem [shape: f32[16,64], index: 4, kind: input, shape index: {}]
  %s5 = inlined_call_operand.vmem [shape: f32[8,2,16], index: 5, kind: output, shape index: {0}]
  %s6 = inlined_call_operand.vmem [shape: f32[8,2,16], index: 6, kind: output, shape index: {1}]
  %7 = xla_tuple %s5, %s6
  %s8 = sld [smem:[#allocation0]]
  $region38: #{_lambda_.7} parent=0
    _
  %s10 = ssub.s32 1, %s8
  %s11 = scalar_select 0, %s10, %s8
  // Predicated region
  $region2: #{_lambda_.7} parent=0 // pred_check
    _
  $region3: #{_lambda_.7} parent=0 // pred_check_branch
    %13 = sbr.rel (0) target = $region5
  $region4: #{_lambda_.7} parent=0 // pred_region
    _
  $region5: #{_lambda_.7} parent=0 // pred_fallthru
    _
  // Predicated region
  $region6: #{_lambda_.7} parent=0 // pred_check
    _
  $region7: #{_lambda_.7} parent=0 // pred_check_branch
    %15 = sbr.rel (0) target = $region9
  $region8: #{_lambda_.7} parent=0 // pred_region
    _
  $region9: #{_lambda_.7} parent=0 // pred_fallthru
    _
  // Predicated region
  $region10: #{_lambda_.7} parent=0 // pred_check
    _
  $region11: #{_lambda_.7} parent=0 // pred_check_branch
    %17 = sbr.rel (0) target = $region13
  $region12: #{_lambda_.7} parent=0 // pred_region
    _
  $region13: #{_lambda_.7} parent=0 // pred_fallthru
    _
  // Predicated region
  $region14: #{_lambda_.7} parent=0 // pred_check
    _
  $region15: #{_lambda_.7} parent=0 // pred_check_branch
    %19 = sbr.rel (0) target = $region17
  $region16: #{_lambda_.7} parent=0 // pred_region
    _
  $region17: #{_lambda_.7} parent=0 // pred_fallthru
    _
  // Predicated region
  $region18: #{_lambda_.7} parent=0 // pred_check
    _
  $region19: #{_lambda_.7} parent=0 // pred_check_branch
    %21 = sbr.rel (0) target = $region21
  $region20: #{_lambda_.7} parent=0 // pred_region
    _
  $region21: #{_lambda_.7} parent=0 // pred_fallthru
    _
  %v22 = vld [vmem:[%s2] sm:$0x3]
  %v23 = vld [vmem:[%s3] sm:$0xff]
  %v24 = vld [vmem:[%s3 + $0x8] sm:$0xff]
  %v25 = vld [vmem:[%s4] sm:$0xff]
  %v26 = vld [vmem:[%s4 + $0x8] sm:$0xff]
  %v27 = vld [vmem:[%s0] sm:$0x3]
  %vm28 = vcmask 130048
  %v30 = vsel %vm28, 0.0, 0
  %32 = vmatpush.msra.mxu0 0.0
  %33 = vmatpush.msra.mxu0 0.0
  %34 = vmatpush.msra.mxu0 0.0
  %35 = vmatpush.msra.mxu0 0.0
  %36 = vmatpush.msra.mxu0 0.0
  %37 = vmatpush.msra.mxu0 0.0
  %38 = vmatpush.msra.mxu0 0.0
  %39 = vmatpush.msra.mxu0 0.0
  %40 = vmatpush.msra.mxu0 0.0
  %41 = vmatpush.msra.mxu0 0.0
  %42 = vmatpush.msra.mxu0 0.0
  %43 = vmatpush.msra.mxu0 0.0
  %44 = vmatpush.msra.mxu0 0.0
  %45 = vmatpush.msra.mxu0 0.0
  %46 = vmatpush.msra.mxu0 %v24
  %47 = vmatpush.msra.mxu0 %v23
  %48 = vmatmul.f32.gmra.mxu0 %v30
  %v49 = vpop.f32.mrf.mxu0
  %v50 = vadd.f32 0.0, %v49
  %51 = vdwg.mxu0
  %v52 = vadd.f32 %v27, %v50
  %s53 = scalar_lea.vmem %s1, 14
  %v54 = vld [vmem:[%s53] sm:$0x3]
  %55 = vmatpush.msra.mxu0 0.0
  %56 = vmatpush.msra.mxu0 0.0
  %57 = vmatpush.msra.mxu0 0.0
  %58 = vmatpush.msra.mxu0 0.0
  %59 = vmatpush.msra.mxu0 0.0
  %60 = vmatpush.msra.mxu0 0.0
  %61 = vmatpush.msra.mxu0 0.0
  %62 = vmatpush.msra.mxu0 0.0
  %63 = vmatpush.msra.mxu0 0.0
  %64 = vmatpush.msra.mxu0 0.0
  %65 = vmatpush.msra.mxu0 0.0
  %66 = vmatpush.msra.mxu0 0.0
  %67 = vmatpush.msra.mxu0 0.0
  %68 = vmatpush.msra.mxu0 0.0
  %69 = vmatpush.msra.mxu0 %v26
  %70 = vmatpush.msra.mxu0 %v25
  %71 = vmatmul.f32.gmra.mxu0 %v30
  %v72 = vpop.f32.mrf.mxu0
  %v73 = vadd.f32 0.0, %v72
  %74 = vdwg.mxu0
  %v75 = vadd.f32 %v54, %v73
  %v76 = vxor.u32 %v52, 2147483648
  %v77 = vmul.f32 %v76, 1.442695
  %v78 = vpow.pop %v77
  %v79 = vadd.f32 %v78, 1.0
  %v80 = vrcp.pop %v79
  %v81 = vmul.f32 %v79, %v80
  %v82 = vsub.f32 1.0, %v81
  %v83 = vmul.f32 %v80, %v82
  %v84 = vadd.f32 %v80, %v83
  %vm85 = vweird.f32 %v79
  %vm86 = vweird.f32 %v80
  %vm87 = vmor %vm85, %vm86
  %v88 = vsel %vm87, %v80, %v84
  %v89 = vand.u32 2147483647, %v79
  %vm90 = vcmp.eq.f32.partialorder %v89, 8.507059e+37
  %v91 = vand.u32 %v79, 2147483648
  %v92 = vor.u32 1.1754944e-38, %v91
  %v93 = vsel %vm90, %v92, %v88
  %v94 = vmul.f32 1.0, %v93
  %v95 = vtanh.pop %v52
  %v96 = vmul.f32 %v94, 0.0
  %98 = vrot.lane.b32.xlu0 %v95, 96
  %v99 = vpop.permute.xlu0 %98
  %v101 = vmul.f32 %v94, %v99
  %103 = vrot.lane.b32.xlu0 %v101, 16
  %v104 = vpop.permute.xlu0 %103
  %v106 = vadd.f32 %v96, %v104
  %v107 = vtanh.pop %v106
  %109 = vrot.lane.b32.xlu0 %v107, 32
  %v110 = vpop.permute.xlu0 %109
  %v112 = vmul.f32 %v94, %v110
  %v113 = vxor.u32 %v75, 2147483648
  %v114 = vmul.f32 %v113, 1.442695
  %v115 = vpow.pop %v114
  %v116 = vadd.f32 %v115, 1.0
  %v117 = vrcp.pop %v116
  %v118 = vmul.f32 %v116, %v117
  %v119 = vsub.f32 1.0, %v118
  %v120 = vmul.f32 %v117, %v119
  %v121 = vadd.f32 %v117, %v120
  %vm122 = vweird.f32 %v116
  %vm123 = vweird.f32 %v117
  %vm124 = vmor %vm122, %vm123
  %v125 = vsel %vm124, %v117, %v121
  %v126 = vand.u32 2147483647, %v116
  %vm127 = vcmp.eq.f32.partialorder %v126, 8.507059e+37
  %v128 = vand.u32 %v116, 2147483648
  %v129 = vor.u32 1.1754944e-38, %v128
  %v130 = vsel %vm127, %v129, %v125
  %v131 = vmul.f32 1.0, %v130
  %v132 = vtanh.pop %v75
  %v133 = vmul.f32 %v131, 0.0
  %135 = vrot.lane.b32.xlu0 %v132, 96
  %v136 = vpop.permute.xlu0 %135
  %v138 = vmul.f32 %v131, %v136
  %140 = vrot.lane.b32.xlu0 %v138, 16
  %v141 = vpop.permute.xlu0 %140
  %v143 = vadd.f32 %v133, %v141
  %v144 = vtanh.pop %v143
  %146 = vrot.lane.b32.xlu0 %v144, 32
  %v147 = vpop.permute.xlu0 %146
  %v149 = vmul.f32 %v131, %v147
  %vm150 = vcmp.gt.s32.totalorder %v22, 0
  %vm151 = vcmp.gt.s32.totalorder %v22, 7
  %v152 = vsel %vm150, 1, 0
  %153 = vset.pattern.permute.xlu0 0
  %154 = vperm.xlu0 %153, %v152
  %v155 = vpop.permute.xlu0 %154
  %vm156 = vcmp.eq.s32.totalorder %v155, 1
  %v157 = vsel %vm156, %v112, 0.0
  %159 = vrot.lane.b32.xlu0 %v157, 80
  %v160 = vpop.permute.xlu0 %159
  %vm162 = vcmask 123904
  %163 = vst.msk [vmem:[%s5] sm:$0x3] %vm162, %v160
  %v164 = vsel %vm151, 1, 0
  %165 = vset.pattern.permute.xlu0 0
  %166 = vperm.xlu0 %165, %v164
  %v167 = vpop.permute.xlu0 %166
  %vm168 = vcmp.eq.s32.totalorder %v167, 1
  %v169 = vsel %vm168, %v149, 0.0
  %171 = vrot.lane.b32.xlu0 %v169, 80
  %v172 = vpop.permute.xlu0 %171
  %s174 = scalar_lea.vmem %s6, 14
  %175 = vst.msk [vmem:[%s174] sm:$0x3] %vm162, %v172
  %v176 = vsel %vm156, %v106, 0.0
  %v177 = vsel %vm168, %v143, 0.0
  %s178 = scalar_lea.vmem %s0, 2
  %v179 = vld [vmem:[%s178] sm:$0x3]
  %v180 = vsel %vm28, %v160, 0
  %182 = vmatpush.msra.mxu0 0.0
  %183 = vmatpush.msra.mxu0 0.0
  %184 = vmatpush.msra.mxu0 0.0
  %185 = vmatpush.msra.mxu0 0.0
  %186 = vmatpush.msra.mxu0 0.0
  %187 = vmatpush.msra.mxu0 0.0
  %188 = vmatpush.msra.mxu0 0.0
  %189 = vmatpush.msra.mxu0 0.0
  %190 = vmatpush.msra.mxu0 0.0
  %191 = vmatpush.msra.mxu0 0.0
  %192 = vmatpush.msra.mxu0 0.0
  %193 = vmatpush.msra.mxu0 0.0
  %194 = vmatpush.msra.mxu0 0.0
  %195 = vmatpush.msra.mxu0 0.0
  %196 = vmatpush.msra.mxu0 %v24
  %197 = vmatpush.msra.mxu0 %v23
  %198 = vmatmul.f32.gmra.mxu0 %v180
  %v199 = vpop.f32.mrf.mxu0
  %v200 = vadd.f32 0.0, %v199
  %201 = vdwg.mxu0
  %v202 = vadd.f32 %v179, %v200
  %s203 = scalar_lea.vmem %s1, 12
  %v204 = vld [vmem:[%s203] sm:$0x3]
  %v205 = vsel %vm28, %v172, 0
  %207 = vmatpush.msra.mxu0 0.0
  %208 = vmatpush.msra.mxu0 0.0
  %209 = vmatpush.msra.mxu0 0.0
  %210 = vmatpush.msra.mxu0 0.0
  %211 = vmatpush.msra.mxu0 0.0
  %212 = vmatpush.msra.mxu0 0.0
  %213 = vmatpush.msra.mxu0 0.0
  %214 = vmatpush.msra.mxu0 0.0
  %215 = vmatpush.msra.mxu0 0.0
  %216 = vmatpush.msra.mxu0 0.0
  %217 = vmatpush.msra.mxu0 0.0
  %218 = vmatpush.msra.mxu0 0.0
  %219 = vmatpush.msra.mxu0 0.0
  %220 = vmatpush.msra.mxu0 0.0
  %221 = vmatpush.msra.mxu0 %v26
  %222 = vmatpush.msra.mxu0 %v25
  %223 = vmatmul.f32.gmra.mxu0 %v205
  %v224 = vpop.f32.mrf.mxu0
  %v225 = vadd.f32 0.0, %v224
  %226 = vdwg.mxu0
  %v227 = vadd.f32 %v204, %v225
  %v228 = vxor.u32 %v202, 2147483648
  %v229 = vmul.f32 %v228, 1.442695
  %v230 = vpow.pop %v229
  %v231 = vadd.f32 %v230, 1.0
  %v232 = vrcp.pop %v231
  %v233 = vmul.f32 %v231, %v232
  %v234 = vsub.f32 1.0, %v233
  %v235 = vmul.f32 %v232, %v234
  %v236 = vadd.f32 %v232, %v235
  %vm237 = vweird.f32 %v231
  %vm238 = vweird.f32 %v232
  %vm239 = vmor %vm237, %vm238
  %v240 = vsel %vm239, %v232, %v236
  %v241 = vand.u32 2147483647, %v231
  %vm242 = vcmp.eq.f32.partialorder %v241, 8.507059e+37
  %v243 = vand.u32 %v231, 2147483648
  %v244 = vor.u32 1.1754944e-38, %v243
  %v245 = vsel %vm242, %v244, %v240
  %v246 = vmul.f32 1.0, %v245
  %v247 = vtanh.pop %v202
  %v248 = vmul.f32 %v246, %v176
  %250 = vrot.lane.b32.xlu0 %v247, 96
  %v251 = vpop.permute.xlu0 %250
  %v253 = vmul.f32 %v246, %v251
  %255 = vrot.lane.b32.xlu0 %v253, 16
  %v256 = vpop.permute.xlu0 %255
  %v258 = vadd.f32 %v248, %v256
  %v259 = vtanh.pop %v258
  %261 = vrot.lane.b32.xlu0 %v259, 32
  %v262 = vpop.permute.xlu0 %261
  %v264 = vmul.f32 %v246, %v262
  %v265 = vxor.u32 %v227, 2147483648
  %v266 = vmul.f32 %v265, 1.442695
  %v267 = vpow.pop %v266
  %v268 = vadd.f32 %v267, 1.0
  %v269 = vrcp.pop %v268
  %v270 = vmul.f32 %v268, %v269
  %v271 = vsub.f32 1.0, %v270
  %v272 = vmul.f32 %v269, %v271
  %v273 = vadd.f32 %v269, %v272
  %vm274 = vweird.f32 %v268
  %vm275 = vweird.f32 %v269
  %vm276 = vmor %vm274, %vm275
  %v277 = vsel %vm276, %v269, %v273
  %v278 = vand.u32 2147483647, %v268
  %vm279 = vcmp.eq.f32.partialorder %v278, 8.507059e+37
  %v280 = vand.u32 %v268, 2147483648
  %v281 = vor.u32 1.1754944e-38, %v280
  %v282 = vsel %vm279, %v281, %v277
  %v283 = vmul.f32 1.0, %v282
  %v284 = vtanh.pop %v227
  %v285 = vmul.f32 %v283, %v177
  %287 = vrot.lane.b32.xlu0 %v284, 96
  %v288 = vpop.permute.xlu0 %287
  %v290 = vmul.f32 %v283, %v288
  %292 = vrot.lane.b32.xlu0 %v290, 16
  %v293 = vpop.permute.xlu0 %292
  %v295 = vadd.f32 %v285, %v293
  %v296 = vtanh.pop %v295
  %298 = vrot.lane.b32.xlu0 %v296, 32
  %v299 = vpop.permute.xlu0 %298
  %v301 = vmul.f32 %v283, %v299
  %vm302 = vcmp.gt.s32.totalorder %v22, 1
  %vm303 = vcmp.gt.s32.totalorder %v22, 6
  %v304 = vsel %vm302, 1, 0
  %305 = vset.pattern.permute.xlu0 0
  %306 = vperm.xlu0 %305, %v304
  %v307 = vpop.permute.xlu0 %306
  %vm308 = vcmp.eq.s32.totalorder %v307, 1
  %v309 = vsel %vm308, %v264, 0.0
  %311 = vrot.lane.b32.xlu0 %v309, 80
  %v312 = vpop.permute.xlu0 %311
  %s314 = scalar_lea.vmem %s5, 2
  %315 = vst.msk [vmem:[%s314] sm:$0x3] %vm162, %v312
  %v316 = vsel %vm303, 1, 0
  %317 = vset.pattern.permute.xlu0 0
  %318 = vperm.xlu0 %317, %v316
  %v319 = vpop.permute.xlu0 %318
  %vm320 = vcmp.eq.s32.totalorder %v319, 1
  %v321 = vsel %vm320, %v301, 0.0
  %323 = vrot.lane.b32.xlu0 %v321, 80
  %v324 = vpop.permute.xlu0 %323
  %s326 = scalar_lea.vmem %s6, 12
  %327 = vst.msk [vmem:[%s326] sm:$0x3] %vm162, %v324
  %v328 = vsel %vm308, %v264, %v157
  %v329 = vsel %vm308, %v258, %v176
  %v330 = vsel %vm320, %v301, %v169
  %v331 = vsel %vm320, %v295, %v177
  %s332 = scalar_lea.vmem %s0, 4
  %v333 = vld [vmem:[%s332] sm:$0x3]
  %335 = vrot.lane.b32.xlu0 %v328, 80
  %v336 = vpop.permute.xlu0 %335
  %v337 = vsel %vm28, %v336, 0
  %339 = vmatpush.msra.mxu0 0.0
  %340 = vmatpush.msra.mxu0 0.0
  %341 = vmatpush.msra.mxu0 0.0
  %342 = vmatpush.msra.mxu0 0.0
  %343 = vmatpush.msra.mxu0 0.0
  %344 = vmatpush.msra.mxu0 0.0
  %345 = vmatpush.msra.mxu0 0.0
  %346 = vmatpush.msra.mxu0 0.0
  %347 = vmatpush.msra.mxu0 0.0
  %348 = vmatpush.msra.mxu0 0.0
  %349 = vmatpush.msra.mxu0 0.0
  %350 = vmatpush.msra.mxu0 0.0
  %351 = vmatpush.msra.mxu0 0.0
  %352 = vmatpush.msra.mxu0 0.0
  %353 = vmatpush.msra.mxu0 %v24
  %354 = vmatpush.msra.mxu0 %v23
  %355 = vmatmul.f32.gmra.mxu0 %v337
  %v356 = vpop.f32.mrf.mxu0
  %v357 = vadd.f32 0.0, %v356
  %358 = vdwg.mxu0
  %v359 = vadd.f32 %v333, %v357
  %s360 = scalar_lea.vmem %s1, 10
  %v361 = vld [vmem:[%s360] sm:$0x3]
  %363 = vrot.lane.b32.xlu0 %v330, 80
  %v364 = vpop.permute.xlu0 %363
  %v365 = vsel %vm28, %v364, 0
  %367 = vmatpush.msra.mxu0 0.0
  %368 = vmatpush.msra.mxu0 0.0
  %369 = vmatpush.msra.mxu0 0.0
  %370 = vmatpush.msra.mxu0 0.0
  %371 = vmatpush.msra.mxu0 0.0
  %372 = vmatpush.msra.mxu0 0.0
  %373 = vmatpush.msra.mxu0 0.0
  %374 = vmatpush.msra.mxu0 0.0
  %375 = vmatpush.msra.mxu0 0.0
  %376 = vmatpush.msra.mxu0 0.0
  %377 = vmatpush.msra.mxu0 0.0
  %378 = vmatpush.msra.mxu0 0.0
  %379 = vmatpush.msra.mxu0 0.0
  %380 = vmatpush.msra.mxu0 0.0
  %381 = vmatpush.msra.mxu0 %v26
  %382 = vmatpush.msra.mxu0 %v25
  %383 = vmatmul.f32.gmra.mxu0 %v365
  %v384 = vpop.f32.mrf.mxu0
  %v385 = vadd.f32 0.0, %v384
  %386 = vdwg.mxu0
  %v387 = vadd.f32 %v361, %v385
  %v388 = vxor.u32 %v359, 2147483648
  %v389 = vmul.f32 %v388, 1.442695
  %v390 = vpow.pop %v389
  %v391 = vadd.f32 %v390, 1.0
  %v392 = vrcp.pop %v391
  %v393 = vmul.f32 %v391, %v392
  %v394 = vsub.f32 1.0, %v393
  %v395 = vmul.f32 %v392, %v394
  %v396 = vadd.f32 %v392, %v395
  %vm397 = vweird.f32 %v391
  %vm398 = vweird.f32 %v392
  %vm399 = vmor %vm397, %vm398
  %v400 = vsel %vm399, %v392, %v396
  %v401 = vand.u32 2147483647, %v391
  %vm402 = vcmp.eq.f32.partialorder %v401, 8.507059e+37
  %v403 = vand.u32 %v391, 2147483648
  %v404 = vor.u32 1.1754944e-38, %v403
  %v405 = vsel %vm402, %v404, %v400
  %v406 = vmul.f32 1.0, %v405
  %v407 = vtanh.pop %v359
  %v408 = vmul.f32 %v406, %v329
  %410 = vrot.lane.b32.xlu0 %v407, 96
  %v411 = vpop.permute.xlu0 %410
  %v413 = vmul.f32 %v406, %v411
  %415 = vrot.lane.b32.xlu0 %v413, 16
  %v416 = vpop.permute.xlu0 %415
  %v418 = vadd.f32 %v408, %v416
  %v419 = vtanh.pop %v418
  %421 = vrot.lane.b32.xlu0 %v419, 32
  %v422 = vpop.permute.xlu0 %421
  %v424 = vmul.f32 %v406, %v422
  %v425 = vxor.u32 %v387, 2147483648
  %v426 = vmul.f32 %v425, 1.442695
  %v427 = vpow.pop %v426
  %v428 = vadd.f32 %v427, 1.0
  %v429 = vrcp.pop %v428
  %v430 = vmul.f32 %v428, %v429
  %v431 = vsub.f32 1.0, %v430
  %v432 = vmul.f32 %v429, %v431
  %v433 = vadd.f32 %v429, %v432
  %vm434 = vweird.f32 %v428
  %vm435 = vweird.f32 %v429
  %vm436 = vmor %vm434, %vm435
  %v437 = vsel %vm436, %v429, %v433
  %v438 = vand.u32 2147483647, %v428
  %vm439 = vcmp.eq.f32.partialorder %v438, 8.507059e+37
  %v440 = vand.u32 %v428, 2147483648
  %v441 = vor.u32 1.1754944e-38, %v440
  %v442 = vsel %vm439, %v441, %v437
  %v443 = vmul.f32 1.0, %v442
  %v444 = vtanh.pop %v387
  %v445 = vmul.f32 %v443, %v331
  %447 = vrot.lane.b32.xlu0 %v444, 96
  %v448 = vpop.permute.xlu0 %447
  %v450 = vmul.f32 %v443, %v448
  %452 = vrot.lane.b32.xlu0 %v450, 16
  %v453 = vpop.permute.xlu0 %452
  %v455 = vadd.f32 %v445, %v453
  %v456 = vtanh.pop %v455
  %458 = vrot.lane.b32.xlu0 %v456, 32
  %v459 = vpop.permute.xlu0 %458
  %v461 = vmul.f32 %v443, %v459
  %vm462 = vcmp.gt.s32.totalorder %v22, 2
  %vm463 = vcmp.gt.s32.totalorder %v22, 5
  %v464 = vsel %vm462, 1, 0
  %465 = vset.pattern.permute.xlu0 0
  %466 = vperm.xlu0 %465, %v464
  %v467 = vpop.permute.xlu0 %466
  %vm468 = vcmp.eq.s32.totalorder %v467, 1
  %v469 = vsel %vm468, %v424, 0.0
  %471 = vrot.lane.b32.xlu0 %v469, 80
  %v472 = vpop.permute.xlu0 %471
  %s474 = scalar_lea.vmem %s5, 4
  %475 = vst.msk [vmem:[%s474] sm:$0x3] %vm162, %v472
  %v476 = vsel %vm463, 1, 0
  %477 = vset.pattern.permute.xlu0 0
  %478 = vperm.xlu0 %477, %v476
  %v479 = vpop.permute.xlu0 %478
  %vm480 = vcmp.eq.s32.totalorder %v479, 1
  %v481 = vsel %vm480, %v461, 0.0
  %483 = vrot.lane.b32.xlu0 %v481, 80
  %v484 = vpop.permute.xlu0 %483
  %s486 = scalar_lea.vmem %s6, 10
  %487 = vst.msk [vmem:[%s486] sm:$0x3] %vm162, %v484
  %v488 = vsel %vm468, %v424, %v328
  %v489 = vsel %vm468, %v418, %v329
  %v490 = vsel %vm480, %v461, %v330
  %v491 = vsel %vm480, %v455, %v331
  %s492 = scalar_lea.vmem %s0, 6
  %v493 = vld [vmem:[%s492] sm:$0x3]
  %495 = vrot.lane.b32.xlu0 %v488, 80
  %v496 = vpop.permute.xlu0 %495
  %v497 = vsel %vm28, %v496, 0
  %499 = vmatpush.msra.mxu0 0.0
  %500 = vmatpush.msra.mxu0 0.0
  %501 = vmatpush.msra.mxu0 0.0
  %502 = vmatpush.msra.mxu0 0.0
  %503 = vmatpush.msra.mxu0 0.0
  %504 = vmatpush.msra.mxu0 0.0
  %505 = vmatpush.msra.mxu0 0.0
  %506 = vmatpush.msra.mxu0 0.0
  %507 = vmatpush.msra.mxu0 0.0
  %508 = vmatpush.msra.mxu0 0.0
  %509 = vmatpush.msra.mxu0 0.0
  %510 = vmatpush.msra.mxu0 0.0
  %511 = vmatpush.msra.mxu0 0.0
  %512 = vmatpush.msra.mxu0 0.0
  %513 = vmatpush.msra.mxu0 %v24
  %514 = vmatpush.msra.mxu0 %v23
  %515 = vmatmul.f32.gmra.mxu0 %v497
  %v516 = vpop.f32.mrf.mxu0
  %v517 = vadd.f32 0.0, %v516
  %518 = vdwg.mxu0
  %v519 = vadd.f32 %v493, %v517
  %s520 = scalar_lea.vmem %s1, 8
  %v521 = vld [vmem:[%s520] sm:$0x3]
  %523 = vrot.lane.b32.xlu0 %v490, 80
  %v524 = vpop.permute.xlu0 %523
  %v525 = vsel %vm28, %v524, 0
  %527 = vmatpush.msra.mxu0 0.0
  %528 = vmatpush.msra.mxu0 0.0
  %529 = vmatpush.msra.mxu0 0.0
  %530 = vmatpush.msra.mxu0 0.0
  %531 = vmatpush.msra.mxu0 0.0
  %532 = vmatpush.msra.mxu0 0.0
  %533 = vmatpush.msra.mxu0 0.0
  %534 = vmatpush.msra.mxu0 0.0
  %535 = vmatpush.msra.mxu0 0.0
  %536 = vmatpush.msra.mxu0 0.0
  %537 = vmatpush.msra.mxu0 0.0
  %538 = vmatpush.msra.mxu0 0.0
  %539 = vmatpush.msra.mxu0 0.0
  %540 = vmatpush.msra.mxu0 0.0
  %541 = vmatpush.msra.mxu0 %v26
  %542 = vmatpush.msra.mxu0 %v25
  %543 = vmatmul.f32.gmra.mxu0 %v525
  %v544 = vpop.f32.mrf.mxu0
  %v545 = vadd.f32 0.0, %v544
  %546 = vdwg.mxu0
  %v547 = vadd.f32 %v521, %v545
  %v548 = vxor.u32 %v519, 2147483648
  %v549 = vmul.f32 %v548, 1.442695
  %v550 = vpow.pop %v549
  %v551 = vadd.f32 %v550, 1.0
  %v552 = vrcp.pop %v551
  %v553 = vmul.f32 %v551, %v552
  %v554 = vsub.f32 1.0, %v553
  %v555 = vmul.f32 %v552, %v554
  %v556 = vadd.f32 %v552, %v555
  %vm557 = vweird.f32 %v551
  %vm558 = vweird.f32 %v552
  %vm559 = vmor %vm557, %vm558
  %v560 = vsel %vm559, %v552, %v556
  %v561 = vand.u32 2147483647, %v551
  %vm562 = vcmp.eq.f32.partialorder %v561, 8.507059e+37
  %v563 = vand.u32 %v551, 2147483648
  %v564 = vor.u32 1.1754944e-38, %v563
  %v565 = vsel %vm562, %v564, %v560
  %v566 = vmul.f32 1.0, %v565
  %v567 = vtanh.pop %v519
  %v568 = vmul.f32 %v566, %v489
  %570 = vrot.lane.b32.xlu0 %v567, 96
  %v571 = vpop.permute.xlu0 %570
  %v573 = vmul.f32 %v566, %v571
  %575 = vrot.lane.b32.xlu0 %v573, 16
  %v576 = vpop.permute.xlu0 %575
  %v578 = vadd.f32 %v568, %v576
  %v579 = vtanh.pop %v578
  %581 = vrot.lane.b32.xlu0 %v579, 32
  %v582 = vpop.permute.xlu0 %581
  %v584 = vmul.f32 %v566, %v582
  %v585 = vxor.u32 %v547, 2147483648
  %v586 = vmul.f32 %v585, 1.442695
  %v587 = vpow.pop %v586
  %v588 = vadd.f32 %v587, 1.0
  %v589 = vrcp.pop %v588
  %v590 = vmul.f32 %v588, %v589
  %v591 = vsub.f32 1.0, %v590
  %v592 = vmul.f32 %v589, %v591
  %v593 = vadd.f32 %v589, %v592
  %vm594 = vweird.f32 %v588
  %vm595 = vweird.f32 %v589
  %vm596 = vmor %vm594, %vm595
  %v597 = vsel %vm596, %v589, %v593
  %v598 = vand.u32 2147483647, %v588
  %vm599 = vcmp.eq.f32.partialorder %v598, 8.507059e+37
  %v600 = vand.u32 %v588, 2147483648
  %v601 = vor.u32 1.1754944e-38, %v600
  %v602 = vsel %vm599, %v601, %v597
  %v603 = vmul.f32 1.0, %v602
  %v604 = vtanh.pop %v547
  %v605 = vmul.f32 %v603, %v491
  %607 = vrot.lane.b32.xlu0 %v604, 96
  %v608 = vpop.permute.xlu0 %607
  %v610 = vmul.f32 %v603, %v608
  %612 = vrot.lane.b32.xlu0 %v610, 16
  %v613 = vpop.permute.xlu0 %612
  %v615 = vadd.f32 %v605, %v613
  %v616 = vtanh.pop %v615
  %618 = vrot.lane.b32.xlu0 %v616, 32
  %v619 = vpop.permute.xlu0 %618
  %v621 = vmul.f32 %v603, %v619
  %vm622 = vcmp.gt.s32.totalorder %v22, 3
  %vm623 = vcmp.gt.s32.totalorder %v22, 4
  %v624 = vsel %vm622, 1, 0
  %625 = vset.pattern.permute.xlu0 0
  %626 = vperm.xlu0 %625, %v624
  %v627 = vpop.permute.xlu0 %626
  %vm628 = vcmp.eq.s32.totalorder %v627, 1
  %v629 = vsel %vm628, %v584, 0.0
  %631 = vrot.lane.b32.xlu0 %v629, 80
  %v632 = vpop.permute.xlu0 %631
  %s634 = scalar_lea.vmem %s5, 6
  %635 = vst.msk [vmem:[%s634] sm:$0x3] %vm162, %v632
  %v636 = vsel %vm623, 1, 0
  %637 = vset.pattern.permute.xlu0 0
  %638 = vperm.xlu0 %637, %v636
  %v639 = vpop.permute.xlu0 %638
  %vm640 = vcmp.eq.s32.totalorder %v639, 1
  %v641 = vsel %vm640, %v621, 0.0
  %643 = vrot.lane.b32.xlu0 %v641, 80
  %v644 = vpop.permute.xlu0 %643
  %s646 = scalar_lea.vmem %s6, 8
  %647 = vst.msk [vmem:[%s646] sm:$0x3] %vm162, %v644
  %v648 = vsel %vm628, %v584, %v488
  %v649 = vsel %vm628, %v578, %v489
  %v650 = vsel %vm640, %v621, %v490
  %v651 = vsel %vm640, %v615, %v491
  %s652 = scalar_lea.vmem %s0, 8
  %v653 = vld [vmem:[%s652] sm:$0x3]
  %655 = vrot.lane.b32.xlu0 %v648, 80
  %v656 = vpop.permute.xlu0 %655
  %v657 = vsel %vm28, %v656, 0
  %659 = vmatpush.msra.mxu0 0.0
  %660 = vmatpush.msra.mxu0 0.0
  %661 = vmatpush.msra.mxu0 0.0
  %662 = vmatpush.msra.mxu0 0.0
  %663 = vmatpush.msra.mxu0 0.0
  %664 = vmatpush.msra.mxu0 0.0
  %665 = vmatpush.msra.mxu0 0.0
  %666 = vmatpush.msra.mxu0 0.0
  %667 = vmatpush.msra.mxu0 0.0
  %668 = vmatpush.msra.mxu0 0.0
  %669 = vmatpush.msra.mxu0 0.0
  %670 = vmatpush.msra.mxu0 0.0
  %671 = vmatpush.msra.mxu0 0.0
  %672 = vmatpush.msra.mxu0 0.0
  %673 = vmatpush.msra.mxu0 %v24
  %674 = vmatpush.msra.mxu0 %v23
  %675 = vmatmul.f32.gmra.mxu0 %v657
  %v676 = vpop.f32.mrf.mxu0
  %v677 = vadd.f32 0.0, %v676
  %678 = vdwg.mxu0
  %v679 = vadd.f32 %v653, %v677
  %s680 = scalar_lea.vmem %s1, 6
  %v681 = vld [vmem:[%s680] sm:$0x3]
  %683 = vrot.lane.b32.xlu0 %v650, 80
  %v684 = vpop.permute.xlu0 %683
  %v685 = vsel %vm28, %v684, 0
  %687 = vmatpush.msra.mxu0 0.0
  %688 = vmatpush.msra.mxu0 0.0
  %689 = vmatpush.msra.mxu0 0.0
  %690 = vmatpush.msra.mxu0 0.0
  %691 = vmatpush.msra.mxu0 0.0
  %692 = vmatpush.msra.mxu0 0.0
  %693 = vmatpush.msra.mxu0 0.0
  %694 = vmatpush.msra.mxu0 0.0
  %695 = vmatpush.msra.mxu0 0.0
  %696 = vmatpush.msra.mxu0 0.0
  %697 = vmatpush.msra.mxu0 0.0
  %698 = vmatpush.msra.mxu0 0.0
  %699 = vmatpush.msra.mxu0 0.0
  %700 = vmatpush.msra.mxu0 0.0
  %701 = vmatpush.msra.mxu0 %v26
  %702 = vmatpush.msra.mxu0 %v25
  %703 = vmatmul.f32.gmra.mxu0 %v685
  %v704 = vpop.f32.mrf.mxu0
  %v705 = vadd.f32 0.0, %v704
  %706 = vdwg.mxu0
  %v707 = vadd.f32 %v681, %v705
  %v708 = vxor.u32 %v679, 2147483648
  %v709 = vmul.f32 %v708, 1.442695
  %v710 = vpow.pop %v709
  %v711 = vadd.f32 %v710, 1.0
  %v712 = vrcp.pop %v711
  %v713 = vmul.f32 %v711, %v712
  %v714 = vsub.f32 1.0, %v713
  %v715 = vmul.f32 %v712, %v714
  %v716 = vadd.f32 %v712, %v715
  %vm717 = vweird.f32 %v711
  %vm718 = vweird.f32 %v712
  %vm719 = vmor %vm717, %vm718
  %v720 = vsel %vm719, %v712, %v716
  %v721 = vand.u32 2147483647, %v711
  %vm722 = vcmp.eq.f32.partialorder %v721, 8.507059e+37
  %v723 = vand.u32 %v711, 2147483648
  %v724 = vor.u32 1.1754944e-38, %v723
  %v725 = vsel %vm722, %v724, %v720
  %v726 = vmul.f32 1.0, %v725
  %v727 = vtanh.pop %v679
  %v728 = vmul.f32 %v726, %v649
  %730 = vrot.lane.b32.xlu0 %v727, 96
  %v731 = vpop.permute.xlu0 %730
  %v733 = vmul.f32 %v726, %v731
  %735 = vrot.lane.b32.xlu0 %v733, 16
  %v736 = vpop.permute.xlu0 %735
  %v738 = vadd.f32 %v728, %v736
  %v739 = vtanh.pop %v738
  %741 = vrot.lane.b32.xlu0 %v739, 32
  %v742 = vpop.permute.xlu0 %741
  %v744 = vmul.f32 %v726, %v742
  %v745 = vxor.u32 %v707, 2147483648
  %v746 = vmul.f32 %v745, 1.442695
  %v747 = vpow.pop %v746
  %v748 = vadd.f32 %v747, 1.0
  %v749 = vrcp.pop %v748
  %v750 = vmul.f32 %v748, %v749
  %v751 = vsub.f32 1.0, %v750
  %v752 = vmul.f32 %v749, %v751
  %v753 = vadd.f32 %v749, %v752
  %vm754 = vweird.f32 %v748
  %vm755 = vweird.f32 %v749
  %vm756 = vmor %vm754, %vm755
  %v757 = vsel %vm756, %v749, %v753
  %v758 = vand.u32 2147483647, %v748
  %vm759 = vcmp.eq.f32.partialorder %v758, 8.507059e+37
  %v760 = vand.u32 %v748, 2147483648
  %v761 = vor.u32 1.1754944e-38, %v760
  %v762 = vsel %vm759, %v761, %v757
  %v763 = vmul.f32 1.0, %v762
  %v764 = vtanh.pop %v707
  %v765 = vmul.f32 %v763, %v651
  %767 = vrot.lane.b32.xlu0 %v764, 96
  %v768 = vpop.permute.xlu0 %767
  %v770 = vmul.f32 %v763, %v768
  %772 = vrot.lane.b32.xlu0 %v770, 16
  %v773 = vpop.permute.xlu0 %772
  %v775 = vadd.f32 %v765, %v773
  %v776 = vtanh.pop %v775
  %778 = vrot.lane.b32.xlu0 %v776, 32
  %v779 = vpop.permute.xlu0 %778
  %v781 = vmul.f32 %v763, %v779
  %v782 = vsel %vm640, %v744, 0.0
  %784 = vrot.lane.b32.xlu0 %v782, 80
  %v785 = vpop.permute.xlu0 %784
  %s787 = scalar_lea.vmem %s5, 8
  %788 = vst.msk [vmem:[%s787] sm:$0x3] %vm162, %v785
  %v789 = vsel %vm628, %v781, 0.0
  %791 = vrot.lane.b32.xlu0 %v789, 80
  %v792 = vpop.permute.xlu0 %791
  %s794 = scalar_lea.vmem %s6, 6
  %795 = vst.msk [vmem:[%s794] sm:$0x3] %vm162, %v792
  %v796 = vsel %vm640, %v744, %v648
  %v797 = vsel %vm640, %v738, %v649
  %v798 = vsel %vm628, %v781, %v650
  %v799 = vsel %vm628, %v775, %v651
  %s800 = scalar_lea.vmem %s0, 10
  %v801 = vld [vmem:[%s800] sm:$0x3]
  %803 = vrot.lane.b32.xlu0 %v796, 80
  %v804 = vpop.permute.xlu0 %803
  %v805 = vsel %vm28, %v804, 0
  %807 = vmatpush.msra.mxu0 0.0
  %808 = vmatpush.msra.mxu0 0.0
  %809 = vmatpush.msra.mxu0 0.0
  %810 = vmatpush.msra.mxu0 0.0
  %811 = vmatpush.msra.mxu0 0.0
  %812 = vmatpush.msra.mxu0 0.0
  %813 = vmatpush.msra.mxu0 0.0
  %814 = vmatpush.msra.mxu0 0.0
  %815 = vmatpush.msra.mxu0 0.0
  %816 = vmatpush.msra.mxu0 0.0
  %817 = vmatpush.msra.mxu0 0.0
  %818 = vmatpush.msra.mxu0 0.0
  %819 = vmatpush.msra.mxu0 0.0
  %820 = vmatpush.msra.mxu0 0.0
  %821 = vmatpush.msra.mxu0 %v24
  %822 = vmatpush.msra.mxu0 %v23
  %823 = vmatmul.f32.gmra.mxu0 %v805
  %v824 = vpop.f32.mrf.mxu0
  %v825 = vadd.f32 0.0, %v824
  %826 = vdwg.mxu0
  %v827 = vadd.f32 %v801, %v825
  %s828 = scalar_lea.vmem %s1, 4
  %v829 = vld [vmem:[%s828] sm:$0x3]
  %831 = vrot.lane.b32.xlu0 %v798, 80
  %v832 = vpop.permute.xlu0 %831
  %v833 = vsel %vm28, %v832, 0
  %835 = vmatpush.msra.mxu0 0.0
  %836 = vmatpush.msra.mxu0 0.0
  %837 = vmatpush.msra.mxu0 0.0
  %838 = vmatpush.msra.mxu0 0.0
  %839 = vmatpush.msra.mxu0 0.0
  %840 = vmatpush.msra.mxu0 0.0
  %841 = vmatpush.msra.mxu0 0.0
  %842 = vmatpush.msra.mxu0 0.0
  %843 = vmatpush.msra.mxu0 0.0
  %844 = vmatpush.msra.mxu0 0.0
  %845 = vmatpush.msra.mxu0 0.0
  %846 = vmatpush.msra.mxu0 0.0
  %847 = vmatpush.msra.mxu0 0.0
  %848 = vmatpush.msra.mxu0 0.0
  %849 = vmatpush.msra.mxu0 %v26
  %850 = vmatpush.msra.mxu0 %v25
  %851 = vmatmul.f32.gmra.mxu0 %v833
  %v852 = vpop.f32.mrf.mxu0
  %v853 = vadd.f32 0.0, %v852
  %854 = vdwg.mxu0
  %v855 = vadd.f32 %v829, %v853
  %v856 = vxor.u32 %v827, 2147483648
  %v857 = vmul.f32 %v856, 1.442695
  %v858 = vpow.pop %v857
  %v859 = vadd.f32 %v858, 1.0
  %v860 = vrcp.pop %v859
  %v861 = vmul.f32 %v859, %v860
  %v862 = vsub.f32 1.0, %v861
  %v863 = vmul.f32 %v860, %v862
  %v864 = vadd.f32 %v860, %v863
  %vm865 = vweird.f32 %v859
  %vm866 = vweird.f32 %v860
  %vm867 = vmor %vm865, %vm866
  %v868 = vsel %vm867, %v860, %v864
  %v869 = vand.u32 2147483647, %v859
  %vm870 = vcmp.eq.f32.partialorder %v869, 8.507059e+37
  %v871 = vand.u32 %v859, 2147483648
  %v872 = vor.u32 1.1754944e-38, %v871
  %v873 = vsel %vm870, %v872, %v868
  %v874 = vmul.f32 1.0, %v873
  %v875 = vtanh.pop %v827
  %v876 = vmul.f32 %v874, %v797
  %878 = vrot.lane.b32.xlu0 %v875, 96
  %v879 = vpop.permute.xlu0 %878
  %v881 = vmul.f32 %v874, %v879
  %883 = vrot.lane.b32.xlu0 %v881, 16
  %v884 = vpop.permute.xlu0 %883
  %v886 = vadd.f32 %v876, %v884
  %v887 = vtanh.pop %v886
  %889 = vrot.lane.b32.xlu0 %v887, 32
  %v890 = vpop.permute.xlu0 %889
  %v892 = vmul.f32 %v874, %v890
  %v893 = vxor.u32 %v855, 2147483648
  %v894 = vmul.f32 %v893, 1.442695
  %v895 = vpow.pop %v894
  %v896 = vadd.f32 %v895, 1.0
  %v897 = vrcp.pop %v896
  %v898 = vmul.f32 %v896, %v897
  %v899 = vsub.f32 1.0, %v898
  %v900 = vmul.f32 %v897, %v899
  %v901 = vadd.f32 %v897, %v900
  %vm902 = vweird.f32 %v896
  %vm903 = vweird.f32 %v897
  %vm904 = vmor %vm902, %vm903
  %v905 = vsel %vm904, %v897, %v901
  %v906 = vand.u32 2147483647, %v896
  %vm907 = vcmp.eq.f32.partialorder %v906, 8.507059e+37
  %v908 = vand.u32 %v896, 2147483648
  %v909 = vor.u32 1.1754944e-38, %v908
  %v910 = vsel %vm907, %v909, %v905
  %v911 = vmul.f32 1.0, %v910
  %v912 = vtanh.pop %v855
  %v913 = vmul.f32 %v911, %v799
  %915 = vrot.lane.b32.xlu0 %v912, 96
  %v916 = vpop.permute.xlu0 %915
  %v918 = vmul.f32 %v911, %v916
  %920 = vrot.lane.b32.xlu0 %v918, 16
  %v921 = vpop.permute.xlu0 %920
  %v923 = vadd.f32 %v913, %v921
  %v924 = vtanh.pop %v923
  %926 = vrot.lane.b32.xlu0 %v924, 32
  %v927 = vpop.permute.xlu0 %926
  %v929 = vmul.f32 %v911, %v927
  %v930 = vsel %vm480, %v892, 0.0
  %932 = vrot.lane.b32.xlu0 %v930, 80
  %v933 = vpop.permute.xlu0 %932
  %s935 = scalar_lea.vmem %s5, 10
  %936 = vst.msk [vmem:[%s935] sm:$0x3] %vm162, %v933
  %v937 = vsel %vm468, %v929, 0.0
  %939 = vrot.lane.b32.xlu0 %v937, 80
  %v940 = vpop.permute.xlu0 %939
  %s942 = scalar_lea.vmem %s6, 4
  %943 = vst.msk [vmem:[%s942] sm:$0x3] %vm162, %v940
  %v944 = vsel %vm480, %v892, %v796
  %v945 = vsel %vm480, %v886, %v797
  %v946 = vsel %vm468, %v929, %v798
  %v947 = vsel %vm468, %v923, %v799
  %s948 = scalar_lea.vmem %s0, 12
  %v949 = vld [vmem:[%s948] sm:$0x3]
  %951 = vrot.lane.b32.xlu0 %v944, 80
  %v952 = vpop.permute.xlu0 %951
  %v953 = vsel %vm28, %v952, 0
  %955 = vmatpush.msra.mxu0 0.0
  %956 = vmatpush.msra.mxu0 0.0
  %957 = vmatpush.msra.mxu0 0.0
  %958 = vmatpush.msra.mxu0 0.0
  %959 = vmatpush.msra.mxu0 0.0
  %960 = vmatpush.msra.mxu0 0.0
  %961 = vmatpush.msra.mxu0 0.0
  %962 = vmatpush.msra.mxu0 0.0
  %963 = vmatpush.msra.mxu0 0.0
  %964 = vmatpush.msra.mxu0 0.0
  %965 = vmatpush.msra.mxu0 0.0
  %966 = vmatpush.msra.mxu0 0.0
  %967 = vmatpush.msra.mxu0 0.0
  %968 = vmatpush.msra.mxu0 0.0
  %969 = vmatpush.msra.mxu0 %v24
  %970 = vmatpush.msra.mxu0 %v23
  %971 = vmatmul.f32.gmra.mxu0 %v953
  %v972 = vpop.f32.mrf.mxu0
  %v973 = vadd.f32 0.0, %v972
  %974 = vdwg.mxu0
  %v975 = vadd.f32 %v949, %v973
  %s976 = scalar_lea.vmem %s1, 2
  %v977 = vld [vmem:[%s976] sm:$0x3]
  %979 = vrot.lane.b32.xlu0 %v946, 80
  %v980 = vpop.permute.xlu0 %979
  %v981 = vsel %vm28, %v980, 0
  %983 = vmatpush.msra.mxu0 0.0
  %984 = vmatpush.msra.mxu0 0.0
  %985 = vmatpush.msra.mxu0 0.0
  %986 = vmatpush.msra.mxu0 0.0
  %987 = vmatpush.msra.mxu0 0.0
  %988 = vmatpush.msra.mxu0 0.0
  %989 = vmatpush.msra.mxu0 0.0
  %990 = vmatpush.msra.mxu0 0.0
  %991 = vmatpush.msra.mxu0 0.0
  %992 = vmatpush.msra.mxu0 0.0
  %993 = vmatpush.msra.mxu0 0.0
  %994 = vmatpush.msra.mxu0 0.0
  %995 = vmatpush.msra.mxu0 0.0
  %996 = vmatpush.msra.mxu0 0.0
  %997 = vmatpush.msra.mxu0 %v26
  %998 = vmatpush.msra.mxu0 %v25
  %999 = vmatmul.f32.gmra.mxu0 %v981
  %v1000 = vpop.f32.mrf.mxu0
  %v1001 = vadd.f32 0.0, %v1000
  %1002 = vdwg.mxu0
  %v1003 = vadd.f32 %v977, %v1001
  %v1004 = vxor.u32 %v975, 2147483648
  %v1005 = vmul.f32 %v1004, 1.442695
  %v1006 = vpow.pop %v1005
  %v1007 = vadd.f32 %v1006, 1.0
  %v1008 = vrcp.pop %v1007
  %v1009 = vmul.f32 %v1007, %v1008
  %v1010 = vsub.f32 1.0, %v1009
  %v1011 = vmul.f32 %v1008, %v1010
  %v1012 = vadd.f32 %v1008, %v1011
  %vm1013 = vweird.f32 %v1007
  %vm1014 = vweird.f32 %v1008
  %vm1015 = vmor %vm1013, %vm1014
  %v1016 = vsel %vm1015, %v1008, %v1012
  %v1017 = vand.u32 2147483647, %v1007
  %vm1018 = vcmp.eq.f32.partialorder %v1017, 8.507059e+37
  %v1019 = vand.u32 %v1007, 2147483648
  %v1020 = vor.u32 1.1754944e-38, %v1019
  %v1021 = vsel %vm1018, %v1020, %v1016
  %v1022 = vmul.f32 1.0, %v1021
  %v1023 = vtanh.pop %v975
  %v1024 = vmul.f32 %v1022, %v945
  %1026 = vrot.lane.b32.xlu0 %v1023, 96
  %v1027 = vpop.permute.xlu0 %1026
  %v1029 = vmul.f32 %v1022, %v1027
  %1031 = vrot.lane.b32.xlu0 %v1029, 16
  %v1032 = vpop.permute.xlu0 %1031
  %v1034 = vadd.f32 %v1024, %v1032
  %v1035 = vtanh.pop %v1034
  %1037 = vrot.lane.b32.xlu0 %v1035, 32
  %v1038 = vpop.permute.xlu0 %1037
  %v1040 = vmul.f32 %v1022, %v1038
  %v1041 = vxor.u32 %v1003, 2147483648
  %v1042 = vmul.f32 %v1041, 1.442695
  %v1043 = vpow.pop %v1042
  %v1044 = vadd.f32 %v1043, 1.0
  %v1045 = vrcp.pop %v1044
  %v1046 = vmul.f32 %v1044, %v1045
  %v1047 = vsub.f32 1.0, %v1046
  %v1048 = vmul.f32 %v1045, %v1047
  %v1049 = vadd.f32 %v1045, %v1048
  %vm1050 = vweird.f32 %v1044
  %vm1051 = vweird.f32 %v1045
  %vm1052 = vmor %vm1050, %vm1051
  %v1053 = vsel %vm1052, %v1045, %v1049
  %v1054 = vand.u32 2147483647, %v1044
  %vm1055 = vcmp.eq.f32.partialorder %v1054, 8.507059e+37
  %v1056 = vand.u32 %v1044, 2147483648
  %v1057 = vor.u32 1.1754944e-38, %v1056
  %v1058 = vsel %vm1055, %v1057, %v1053
  %v1059 = vmul.f32 1.0, %v1058
  %v1060 = vtanh.pop %v1003
  %v1061 = vmul.f32 %v1059, %v947
  %1063 = vrot.lane.b32.xlu0 %v1060, 96
  %v1064 = vpop.permute.xlu0 %1063
  %v1066 = vmul.f32 %v1059, %v1064
  %1068 = vrot.lane.b32.xlu0 %v1066, 16
  %v1069 = vpop.permute.xlu0 %1068
  %v1071 = vadd.f32 %v1061, %v1069
  %v1072 = vtanh.pop %v1071
  %1074 = vrot.lane.b32.xlu0 %v1072, 32
  %v1075 = vpop.permute.xlu0 %1074
  %v1077 = vmul.f32 %v1059, %v1075
  %v1078 = vsel %vm320, %v1040, 0.0
  %1080 = vrot.lane.b32.xlu0 %v1078, 80
  %v1081 = vpop.permute.xlu0 %1080
  %s1083 = scalar_lea.vmem %s5, 12
  %1084 = vst.msk [vmem:[%s1083] sm:$0x3] %vm162, %v1081
  %v1085 = vsel %vm308, %v1077, 0.0
  %1087 = vrot.lane.b32.xlu0 %v1085, 80
  %v1088 = vpop.permute.xlu0 %1087
  %s1090 = scalar_lea.vmem %s6, 2
  %1091 = vst.msk [vmem:[%s1090] sm:$0x3] %vm162, %v1088
  %v1092 = vsel %vm320, %v1040, %v944
  %v1093 = vsel %vm320, %v1034, %v945
  %v1094 = vsel %vm308, %v1077, %v946
  %v1095 = vsel %vm308, %v1071, %v947
  %s1096 = scalar_lea.vmem %s0, 14
  %v1097 = vld [vmem:[%s1096] sm:$0x3]
  %1099 = vrot.lane.b32.xlu0 %v1092, 80
  %v1100 = vpop.permute.xlu0 %1099
  %v1101 = vsel %vm28, %v1100, 0
  %1103 = vmatpush.msra.mxu0 0.0
  %1104 = vmatpush.msra.mxu0 0.0
  %1105 = vmatpush.msra.mxu0 0.0
  %1106 = vmatpush.msra.mxu0 0.0
  %1107 = vmatpush.msra.mxu0 0.0
  %1108 = vmatpush.msra.mxu0 0.0
  %1109 = vmatpush.msra.mxu0 0.0
  %1110 = vmatpush.msra.mxu0 0.0
  %1111 = vmatpush.msra.mxu0 0.0
  %1112 = vmatpush.msra.mxu0 0.0
  %1113 = vmatpush.msra.mxu0 0.0
  %1114 = vmatpush.msra.mxu0 0.0
  %1115 = vmatpush.msra.mxu0 0.0
  %1116 = vmatpush.msra.mxu0 0.0
  %1117 = vmatpush.msra.mxu0 %v24
  %1118 = vmatpush.msra.mxu0 %v23
  %1119 = vmatmul.f32.gmra.mxu0 %v1101
  %v1120 = vpop.f32.mrf.mxu0
  %v1121 = vadd.f32 0.0, %v1120
  %1122 = vdwg.mxu0
  %v1123 = vadd.f32 %v1097, %v1121
  %v1124 = vld [vmem:[%s1] sm:$0x3]
  %1126 = vrot.lane.b32.xlu0 %v1094, 80
  %v1127 = vpop.permute.xlu0 %1126
  %v1128 = vsel %vm28, %v1127, 0
  %1130 = vmatpush.msra.mxu0 0.0
  %1131 = vmatpush.msra.mxu0 0.0
  %1132 = vmatpush.msra.mxu0 0.0
  %1133 = vmatpush.msra.mxu0 0.0
  %1134 = vmatpush.msra.mxu0 0.0
  %1135 = vmatpush.msra.mxu0 0.0
  %1136 = vmatpush.msra.mxu0 0.0
  %1137 = vmatpush.msra.mxu0 0.0
  %1138 = vmatpush.msra.mxu0 0.0
  %1139 = vmatpush.msra.mxu0 0.0
  %1140 = vmatpush.msra.mxu0 0.0
  %1141 = vmatpush.msra.mxu0 0.0
  %1142 = vmatpush.msra.mxu0 0.0
  %1143 = vmatpush.msra.mxu0 0.0
  %1144 = vmatpush.msra.mxu0 %v26
  %1145 = vmatpush.msra.mxu0 %v25
  %1146 = vmatmul.f32.gmra.mxu0 %v1128
  %v1147 = vpop.f32.mrf.mxu0
  %v1148 = vadd.f32 0.0, %v1147
  %1149 = vdwg.mxu0
  %v1150 = vadd.f32 %v1124, %v1148
  %v1151 = vxor.u32 %v1123, 2147483648
  %v1152 = vmul.f32 %v1151, 1.442695
  %v1153 = vpow.pop %v1152
  %v1154 = vadd.f32 %v1153, 1.0
  %v1155 = vrcp.pop %v1154
  %v1156 = vmul.f32 %v1154, %v1155
  %v1157 = vsub.f32 1.0, %v1156
  %v1158 = vmul.f32 %v1155, %v1157
  %v1159 = vadd.f32 %v1155, %v1158
  %vm1160 = vweird.f32 %v1154
  %vm1161 = vweird.f32 %v1155
  %vm1162 = vmor %vm1160, %vm1161
  %v1163 = vsel %vm1162, %v1155, %v1159
  %v1164 = vand.u32 2147483647, %v1154
  %vm1165 = vcmp.eq.f32.partialorder %v1164, 8.507059e+37
  %v1166 = vand.u32 %v1154, 2147483648
  %v1167 = vor.u32 1.1754944e-38, %v1166
  %v1168 = vsel %vm1165, %v1167, %v1163
  %v1169 = vmul.f32 1.0, %v1168
  %v1170 = vtanh.pop %v1123
  %v1171 = vmul.f32 %v1169, %v1093
  %1173 = vrot.lane.b32.xlu0 %v1170, 96
  %v1174 = vpop.permute.xlu0 %1173
  %v1176 = vmul.f32 %v1169, %v1174
  %1178 = vrot.lane.b32.xlu0 %v1176, 16
  %v1179 = vpop.permute.xlu0 %1178
  %v1181 = vadd.f32 %v1171, %v1179
  %v1182 = vtanh.pop %v1181
  %1184 = vrot.lane.b32.xlu0 %v1182, 32
  %v1185 = vpop.permute.xlu0 %1184
  %v1187 = vmul.f32 %v1169, %v1185
  %v1188 = vxor.u32 %v1150, 2147483648
  %v1189 = vmul.f32 %v1188, 1.442695
  %v1190 = vpow.pop %v1189
  %v1191 = vadd.f32 %v1190, 1.0
  %v1192 = vrcp.pop %v1191
  %v1193 = vmul.f32 %v1191, %v1192
  %v1194 = vsub.f32 1.0, %v1193
  %v1195 = vmul.f32 %v1192, %v1194
  %v1196 = vadd.f32 %v1192, %v1195
  %vm1197 = vweird.f32 %v1191
  %vm1198 = vweird.f32 %v1192
  %vm1199 = vmor %vm1197, %vm1198
  %v1200 = vsel %vm1199, %v1192, %v1196
  %v1201 = vand.u32 2147483647, %v1191
  %vm1202 = vcmp.eq.f32.partialorder %v1201, 8.507059e+37
  %v1203 = vand.u32 %v1191, 2147483648
  %v1204 = vor.u32 1.1754944e-38, %v1203
  %v1205 = vsel %vm1202, %v1204, %v1200
  %v1206 = vmul.f32 1.0, %v1205
  %v1207 = vtanh.pop %v1150
  %v1208 = vmul.f32 %v1206, %v1095
  %1210 = vrot.lane.b32.xlu0 %v1207, 96
  %v1211 = vpop.permute.xlu0 %1210
  %v1213 = vmul.f32 %v1206, %v1211
  %1215 = vrot.lane.b32.xlu0 %v1213, 16
  %v1216 = vpop.permute.xlu0 %1215
  %v1218 = vadd.f32 %v1208, %v1216
  %v1219 = vtanh.pop %v1218
  %1221 = vrot.lane.b32.xlu0 %v1219, 32
  %v1222 = vpop.permute.xlu0 %1221
  %v1224 = vmul.f32 %v1206, %v1222
  %v1225 = vsel %vm168, %v1187, 0.0
  %1227 = vrot.lane.b32.xlu0 %v1225, 80
  %v1228 = vpop.permute.xlu0 %1227
  %s1230 = scalar_lea.vmem %s5, 14
  %1231 = vst.msk [vmem:[%s1230] sm:$0x3] %vm162, %v1228
  %v1232 = vsel %vm156, %v1224, 0.0
  %1234 = vrot.lane.b32.xlu0 %v1232, 80
  %v1235 = vpop.permute.xlu0 %1234
  %1237 = vst.msk [vmem:[%s6] sm:$0x3] %vm162, %v1235
  // Predicated region
  $region22: #{_lambda_.7} parent=0 // pred_check
    _
  $region23: #{_lambda_.7} parent=0 // pred_check_branch
    %1239 = sbr.rel (0) target = $region25
  $region24: #{_lambda_.7} parent=0 // pred_region
    _
  $region25: #{_lambda_.7} parent=0 // pred_fallthru
    _
  // Predicated region
  $region26: #{_lambda_.7} parent=0 // pred_check
    _
  $region27: #{_lambda_.7} parent=0 // pred_check_branch
    %1241 = sbr.rel (0) target = $region29
  $region28: #{_lambda_.7} parent=0 // pred_region
    _
  $region29: #{_lambda_.7} parent=0 // pred_fallthru
    _
  // Predicated region
  $region30: #{_lambda_.7} parent=0 // pred_check
    _
  $region31: #{_lambda_.7} parent=0 // pred_check_branch
    %1243 = sbr.rel (0) target = $region33
  $region32: #{_lambda_.7} parent=0 // pred_region
    _
  $region33: #{_lambda_.7} parent=0 // pred_fallthru
    _
  // Predicated region
  $region34: #{_lambda_.7} parent=0 // pred_check
    _
  $region35: #{_lambda_.7} parent=0 // pred_check_branch
    %1245 = sbr.rel (0) target = $region37
  $region36: #{_lambda_.7} parent=0 // pred_region
    _
  $region37: #{_lambda_.7} parent=0 // pred_fallthru
    _

// kernel: _lambda_.9
$region0: #{_lambda_.9}
  #allocation0 [shape = 'u32[]', space=smem, size = 0x4, offset = 0x4, fixed_abs, tag = 'smem constant byte address 0x4 - core index']
  #allocation1 [shape = 'u32[72,128]{1,0:T(1,128)}', space=vmem, size = 0x9000, scoped, tag = 'internal scratch']
  #allocation2 [shape = 'f32[8,32]{1,0:T(8,128)}', space=vmem, size = 0x1000, scoped, tag = 'scratch operand']
  %s0 = inlined_call_operand.vmem [shape: f32[16,32], index: 0, kind: input, shape index: {}]
  %s1 = inlined_call_operand.vmem [shape: f32[8,32], index: 1, kind: input, shape index: {}]
  %s2 = inlined_call_operand.vmem [shape: s32[2,1], index: 2, kind: input, shape index: {}]
  %s3 = inlined_call_operand.vmem [shape: f32[32,32], index: 3, kind: input, shape index: {}]
  %s4 = inlined_call_operand.vmem [shape: f32[1,32], index: 4, kind: input, shape index: {}]
  %s5 = inlined_call_operand.vmem [shape: f32[32,32], index: 5, kind: input, shape index: {}]
  %s6 = inlined_call_operand.vmem [shape: f32[1,32], index: 6, kind: input, shape index: {}]
  %s7 = inlined_call_operand.vmem [shape: f32[32,32], index: 7, kind: input, shape index: {}]
  %s8 = inlined_call_operand.vmem [shape: f32[1,32], index: 8, kind: input, shape index: {}]
  %s9 = inlined_call_operand.vmem [shape: f32[32,32], index: 9, kind: input, shape index: {}]
  %s10 = inlined_call_operand.vmem [shape: f32[1,32], index: 10, kind: input, shape index: {}]
  %s11 = inlined_call_operand.vmem [shape: f32[32,6], index: 11, kind: input, shape index: {}]
  %s12 = inlined_call_operand.vmem [shape: f32[1,6], index: 12, kind: input, shape index: {}]
  %s13 = inlined_call_operand.hbm [shape: f32[8,6], index: 13, kind: output, shape index: {}]
  %s14 = sld [smem:[#allocation0]]
  $region62: #{_lambda_.9} parent=0
    _
  %s16 = ssub.s32 1, %s14
  %s17 = scalar_select 0, %s16, %s14
  $region1: #{_lambda_.9} parent=0
    #allocation3 [shape = 'u8[4096]{0}', space=vmem, size = 0x1000, scoped, tag = 'output window, operand 0, single buffered']
    #allocation4 [shape = 's32[1]{0}', space=sflag, size = 0x4, scoped, tag = 'scoped memory for _lambda_.9']
    %18 = vsyncpa [#allocation4], 0
    // Predicated region
    $region2: #{_lambda_.9} parent=1 // pred_check
      _
    $region3: #{_lambda_.9} parent=1 // pred_check_branch
      %20 = sbr.rel (0) target = $region5
    $region4: #{_lambda_.9} parent=1 // pred_region
      _
    $region5: #{_lambda_.9} parent=1 // pred_fallthru
      _
    // Predicated region
    $region6: #{_lambda_.9} parent=1 // pred_check
      _
    $region7: #{_lambda_.9} parent=1 // pred_check_branch
      %22 = sbr.rel (0) target = $region9
    $region8: #{_lambda_.9} parent=1 // pred_region
      _
    $region9: #{_lambda_.9} parent=1 // pred_fallthru
      _
    // Predicated region
    $region10: #{_lambda_.9} parent=1 // pred_check
      _
    $region11: #{_lambda_.9} parent=1 // pred_check_branch
      %24 = sbr.rel (0) target = $region13
    $region12: #{_lambda_.9} parent=1 // pred_region
      _
    $region13: #{_lambda_.9} parent=1 // pred_fallthru
      _
    // Predicated region
    $region14: #{_lambda_.9} parent=1 // pred_check
      _
    $region15: #{_lambda_.9} parent=1 // pred_check_branch
      %26 = sbr.rel (0) target = $region17
    $region16: #{_lambda_.9} parent=1 // pred_region
      _
    $region17: #{_lambda_.9} parent=1 // pred_fallthru
      _
    // Predicated region
    $region18: #{_lambda_.9} parent=1 // pred_check
      _
    $region19: #{_lambda_.9} parent=1 // pred_check_branch
      %28 = sbr.rel (0) target = $region21
    $region20: #{_lambda_.9} parent=1 // pred_region
      _
    $region21: #{_lambda_.9} parent=1 // pred_fallthru
      _
    // Predicated region
    $region22: #{_lambda_.9} parent=1 // pred_check
      _
    $region23: #{_lambda_.9} parent=1 // pred_check_branch
      %30 = sbr.rel (0) target = $region25
    $region24: #{_lambda_.9} parent=1 // pred_region
      _
    $region25: #{_lambda_.9} parent=1 // pred_fallthru
      _
    // Predicated region
    $region26: #{_lambda_.9} parent=1 // pred_check
      _
    $region27: #{_lambda_.9} parent=1 // pred_check_branch
      %32 = sbr.rel (0) target = $region29
    $region28: #{_lambda_.9} parent=1 // pred_region
      _
    $region29: #{_lambda_.9} parent=1 // pred_fallthru
      _
    // Predicated region
    $region30: #{_lambda_.9} parent=1 // pred_check
      _
    $region31: #{_lambda_.9} parent=1 // pred_check_branch
      %34 = sbr.rel (0) target = $region33
    $region32: #{_lambda_.9} parent=1 // pred_region
      _
    $region33: #{_lambda_.9} parent=1 // pred_fallthru
      _
    // Predicated region
    $region34: #{_lambda_.9} parent=1 // pred_check
      _
    $region35: #{_lambda_.9} parent=1 // pred_check_branch
      %36 = sbr.rel (0) target = $region37
    $region36: #{_lambda_.9} parent=1 // pred_region
      _
    $region37: #{_lambda_.9} parent=1 // pred_fallthru
      _
    // Predicated region
    $region38: #{_lambda_.9} parent=1 // pred_check
      _
    $region39: #{_lambda_.9} parent=1 // pred_check_branch
      %38 = sbr.rel (0) target = $region41
    $region40: #{_lambda_.9} parent=1 // pred_region
      _
    $region41: #{_lambda_.9} parent=1 // pred_fallthru
      _
    // Predicated region
    $region42: #{_lambda_.9} parent=1 // pred_check
      _
    $region43: #{_lambda_.9} parent=1 // pred_check_branch
      %40 = sbr.rel (0) target = $region45
    $region44: #{_lambda_.9} parent=1 // pred_region
      _
    $region45: #{_lambda_.9} parent=1 // pred_fallthru
      _
    // Predicated region
    $region46: #{_lambda_.9} parent=1 // pred_check
      _
    $region47: #{_lambda_.9} parent=1 // pred_check_branch
      %42 = sbr.rel (0) target = $region49
    $region48: #{_lambda_.9} parent=1 // pred_region
      _
    $region49: #{_lambda_.9} parent=1 // pred_fallthru
      _
    // Predicated region
    $region50: #{_lambda_.9} parent=1 // pred_check
      _
    $region51: #{_lambda_.9} parent=1 // pred_check_branch
      %44 = sbr.rel (0) target = $region53
    $region52: #{_lambda_.9} parent=1 // pred_region
      _
    $region53: #{_lambda_.9} parent=1 // pred_fallthru
      _
    %v45 = vld [vmem:[%s0] sm:$0xff]
    %v46 = vld [vmem:[%s0 + $0x8] sm:$0xff]
    %v47 = vld [vmem:[%s1] sm:$0xff]
    %v48 = vld [vmem:[%s2] sm:$0x3]
    %v49 = vld [vmem:[%s3] sm:$0xff]
    %v50 = vld [vmem:[%s3 + $0x8] sm:$0xff]
    %v51 = vld [vmem:[%s3 + $0x10] sm:$0xff]
    %v52 = vld [vmem:[%s3 + $0x18] sm:$0xff]
    %v53 = vld [vmem:[%s4] sm:$0x1]
    %v55 = vperm.slane %v53, 0
    %vm57 = vcmask 261120
    %v59 = vsel %vm57, %v45, 0
    %v62 = vsel %vm57, %v46, 0
    %64 = vmatpush.msra.mxu0 0.0
    %65 = vmatpush.msra.mxu0 0.0
    %66 = vmatpush.msra.mxu0 0.0
    %67 = vmatpush.msra.mxu0 0.0
    %68 = vmatpush.msra.mxu0 0.0
    %69 = vmatpush.msra.mxu0 0.0
    %70 = vmatpush.msra.mxu0 0.0
    %71 = vmatpush.msra.mxu0 0.0
    %72 = vmatpush.msra.mxu0 0.0
    %73 = vmatpush.msra.mxu0 0.0
    %74 = vmatpush.msra.mxu0 0.0
    %75 = vmatpush.msra.mxu0 0.0
    %76 = vmatpush.msra.mxu0 %v52
    %77 = vmatpush.msra.mxu0 %v51
    %78 = vmatpush.msra.mxu0 %v50
    %79 = vmatpush.msra.mxu0 %v49
    %80 = vmatmul.f32.gmra.mxu0 %v59
    %v81 = vpop.f32.mrf.mxu0
    %v82 = vadd.f32 %v55, %v81
    %83 = vmatmul.f32.gmra.mxu0 %v62
    %v84 = vpop.f32.mrf.mxu0
    %v85 = vadd.f32 %v55, %v84
    %86 = vdwg.mxu0
    %v88 = vsel %vm57, %v47, 0
    %v91 = vsel %vm57, %v82, 0
    %93 = vmatpush.xpose.msra.mxu0 0.0
    %94 = vmatpush.xpose.msra.mxu0 0.0
    %95 = vmatpush.xpose.msra.mxu0 0.0
    %96 = vmatpush.xpose.msra.mxu0 0.0
    %97 = vmatpush.xpose.msra.mxu0 0.0
    %98 = vmatpush.xpose.msra.mxu0 0.0
    %99 = vmatpush.xpose.msra.mxu0 0.0
    %100 = vmatpush.xpose.msra.mxu0 0.0
    %101 = vmatpush.xpose.msra.mxu0 0.0
    %102 = vmatpush.xpose.msra.mxu0 0.0
    %103 = vmatpush.xpose.msra.mxu0 0.0
    %104 = vmatpush.xpose.msra.mxu0 0.0
    %105 = vmatpush.xpose.msra.mxu0 0.0
    %106 = vmatpush.xpose.msra.mxu0 0.0
    %107 = vmatpush.xpose.msra.mxu0 0.0
    %108 = vmatpush.xpose.msra.mxu0 %v91
    %109 = vmatmul.f32.gmra.mxu0 %v88
    %v110 = vpop.f32.mrf.mxu0
    %v111 = vadd.f32 0.0, %v110
    %112 = vdwg.mxu0
    %v113 = vlaneseq
    %v114 = vand.u32 %v113, 127
    %s115 = vtos %v48
    %v116 = vstv %s115
    %vm117 = vcmp.lt.s32.totalorder %v114, %v116
    %v118 = vsel %vm117, %v111, -100.0
    %vm119 = vcmask 60416
    %v120 = vsel %vm119, %v118, -inf
    %121 = vmax.xlane.f32.xlu0 %v120
    %v122 = vpop.xlane.xlu0 %121
    %v123 = vsub.f32 %v118, %v122
    %v124 = vmul.f32 %v123, 1.442695
    %v125 = vpow.pop %v124
    %v126 = vsel %vm119, %v125, 0.0
    %127 = vadd.xlane.f32.xlu0 %v126
    %v128 = vpop.xlane.xlu0 %127
    %v129 = vrcp.pop %v128
    %v130 = vmul.f32 %v128, %v129
    %v131 = vsub.f32 1.0, %v130
    %v132 = vmul.f32 %v129, %v131
    %v133 = vadd.f32 %v129, %v132
    %vm134 = vweird.f32 %v128
    %vm135 = vweird.f32 %v129
    %vm136 = vmor %vm134, %vm135
    %v137 = vsel %vm136, %v129, %v133
    %v138 = vand.u32 2147483647, %v128
    %vm139 = vcmp.eq.f32.partialorder %v138, 8.507059e+37
    %v140 = vand.u32 %v128, 2147483648
    %v141 = vor.u32 1.1754944e-38, %v140
    %v142 = vsel %vm139, %v141, %v137
    %v143 = vmul.f32 %v125, %v142
    %vm144 = vcmask 64512
    %v146 = vsel %vm144, %v143, 0
    %148 = vmatpush.msra.mxu0 0.0
    %149 = vmatpush.msra.mxu0 0.0
    %150 = vmatpush.msra.mxu0 0.0
    %151 = vmatpush.msra.mxu0 0.0
    %152 = vmatpush.msra.mxu0 0.0
    %153 = vmatpush.msra.mxu0 0.0
    %154 = vmatpush.msra.mxu0 0.0
    %155 = vmatpush.msra.mxu0 0.0
    %156 = vmatpush.msra.mxu0 0.0
    %157 = vmatpush.msra.mxu0 0.0
    %158 = vmatpush.msra.mxu0 0.0
    %159 = vmatpush.msra.mxu0 0.0
    %160 = vmatpush.msra.mxu0 0.0
    %161 = vmatpush.msra.mxu0 0.0
    %162 = vmatpush.msra.mxu0 0.0
    %163 = vmatpush.msra.mxu0 %v45
    %164 = vmatmul.f32.gmra.mxu0 %v146
    %v165 = vpop.f32.mrf.mxu0
    %v166 = vadd.f32 0.0, %v165
    %167 = vdwg.mxu0
    %vm168 = vcmask 257024
    %169 = vst.msk [vmem:[#allocation2] sm:$0xf] %vm168, %v166
    %v170 = vrot.slane %v47, 4
    %v171 = vsel %vm57, %v170, 0
    %v174 = vsel %vm57, %v85, 0
    %176 = vmatpush.xpose.msra.mxu0 0.0
    %177 = vmatpush.xpose.msra.mxu0 0.0
    %178 = vmatpush.xpose.msra.mxu0 0.0
    %179 = vmatpush.xpose.msra.mxu0 0.0
    %180 = vmatpush.xpose.msra.mxu0 0.0
    %181 = vmatpush.xpose.msra.mxu0 0.0
    %182 = vmatpush.xpose.msra.mxu0 0.0
    %183 = vmatpush.xpose.msra.mxu0 0.0
    %184 = vmatpush.xpose.msra.mxu0 0.0
    %185 = vmatpush.xpose.msra.mxu0 0.0
    %186 = vmatpush.xpose.msra.mxu0 0.0
    %187 = vmatpush.xpose.msra.mxu0 0.0
    %188 = vmatpush.xpose.msra.mxu0 0.0
    %189 = vmatpush.xpose.msra.mxu0 0.0
    %190 = vmatpush.xpose.msra.mxu0 0.0
    %191 = vmatpush.xpose.msra.mxu0 %v174
    %192 = vmatmul.f32.gmra.mxu0 %v171
    %v193 = vpop.f32.mrf.mxu0
    %v194 = vadd.f32 0.0, %v193
    %195 = vdwg.mxu0
    %v196 = vrot.slane %v48, 1
    %s197 = vtos %v196
    %v198 = vstv %s197
    %vm199 = vcmp.lt.s32.totalorder %v114, %v198
    %v200 = vsel %vm199, %v194, -100.0
    %v201 = vsel %vm119, %v200, -inf
    %202 = vmax.xlane.f32.xlu0 %v201
    %v203 = vpop.xlane.xlu0 %202
    %v204 = vsub.f32 %v200, %v203
    %v205 = vmul.f32 %v204, 1.442695
    %v206 = vpow.pop %v205
    %v207 = vsel %vm119, %v206, 0.0
    %208 = vadd.xlane.f32.xlu0 %v207
    %v209 = vpop.xlane.xlu0 %208
    %v210 = vrcp.pop %v209
    %v211 = vmul.f32 %v209, %v210
    %v212 = vsub.f32 1.0, %v211
    %v213 = vmul.f32 %v210, %v212
    %v214 = vadd.f32 %v210, %v213
    %vm215 = vweird.f32 %v209
    %vm216 = vweird.f32 %v210
    %vm217 = vmor %vm215, %vm216
    %v218 = vsel %vm217, %v210, %v214
    %v219 = vand.u32 2147483647, %v209
    %vm220 = vcmp.eq.f32.partialorder %v219, 8.507059e+37
    %v221 = vand.u32 %v209, 2147483648
    %v222 = vor.u32 1.1754944e-38, %v221
    %v223 = vsel %vm220, %v222, %v218
    %v224 = vmul.f32 %v206, %v223
    %v226 = vsel %vm144, %v224, 0
    %228 = vmatpush.msra.mxu0 0.0
    %229 = vmatpush.msra.mxu0 0.0
    %230 = vmatpush.msra.mxu0 0.0
    %231 = vmatpush.msra.mxu0 0.0
    %232 = vmatpush.msra.mxu0 0.0
    %233 = vmatpush.msra.mxu0 0.0
    %234 = vmatpush.msra.mxu0 0.0
    %235 = vmatpush.msra.mxu0 0.0
    %236 = vmatpush.msra.mxu0 0.0
    %237 = vmatpush.msra.mxu0 0.0
    %238 = vmatpush.msra.mxu0 0.0
    %239 = vmatpush.msra.mxu0 0.0
    %240 = vmatpush.msra.mxu0 0.0
    %241 = vmatpush.msra.mxu0 0.0
    %242 = vmatpush.msra.mxu0 0.0
    %243 = vmatpush.msra.mxu0 %v46
    %244 = vmatmul.f32.gmra.mxu0 %v226
    %v245 = vpop.f32.mrf.mxu0
    %v246 = vadd.f32 0.0, %v245
    %247 = vdwg.mxu0
    %248 = vst.msk [vmem:[#allocation2 + $0x4] sm:$0xf] %vm168, %v246
    %v249 = vld [vmem:[#allocation2] sm:$0xff]
    %v250 = vld [vmem:[%s5] sm:$0xff]
    %v251 = vld [vmem:[%s5 + $0x8] sm:$0xff]
    %v252 = vld [vmem:[%s5 + $0x10] sm:$0xff]
    %v253 = vld [vmem:[%s5 + $0x18] sm:$0xff]
    %v254 = vld [vmem:[%s6] sm:$0x1]
    %v256 = vperm.slane %v254, 0
    %v259 = vsel %vm57, %v249, 0
    %261 = vmatpush.msra.mxu0 0.0
    %262 = vmatpush.msra.mxu0 0.0
    %263 = vmatpush.msra.mxu0 0.0
    %264 = vmatpush.msra.mxu0 0.0
    %265 = vmatpush.msra.mxu0 0.0
    %266 = vmatpush.msra.mxu0 0.0
    %267 = vmatpush.msra.mxu0 0.0
    %268 = vmatpush.msra.mxu0 0.0
    %269 = vmatpush.msra.mxu0 0.0
    %270 = vmatpush.msra.mxu0 0.0
    %271 = vmatpush.msra.mxu0 0.0
    %272 = vmatpush.msra.mxu0 0.0
    %273 = vmatpush.msra.mxu0 %v253
    %274 = vmatpush.msra.mxu0 %v252
    %275 = vmatpush.msra.mxu0 %v251
    %276 = vmatpush.msra.mxu0 %v250
    %277 = vmatmul.f32.gmra.mxu0 %v259
    %v278 = vpop.f32.mrf.mxu0
    %v279 = vadd.f32 %v256, %v278
    %280 = vdwg.mxu0
    %v281 = vld [vmem:[%s7] sm:$0xff]
    %v282 = vld [vmem:[%s7 + $0x8] sm:$0xff]
    %v283 = vld [vmem:[%s7 + $0x10] sm:$0xff]
    %v284 = vld [vmem:[%s7 + $0x18] sm:$0xff]
    %285 = vmatpush.msra.mxu0 0.0
    %286 = vmatpush.msra.mxu0 0.0
    %287 = vmatpush.msra.mxu0 0.0
    %288 = vmatpush.msra.mxu0 0.0
    %289 = vmatpush.msra.mxu0 0.0
    %290 = vmatpush.msra.mxu0 0.0
    %291 = vmatpush.msra.mxu0 0.0
    %292 = vmatpush.msra.mxu0 0.0
    %293 = vmatpush.msra.mxu0 0.0
    %294 = vmatpush.msra.mxu0 0.0
    %295 = vmatpush.msra.mxu0 0.0
    %296 = vmatpush.msra.mxu0 0.0
    %297 = vmatpush.msra.mxu0 %v284
    %298 = vmatpush.msra.mxu0 %v283
    %299 = vmatpush.msra.mxu0 %v282
    %300 = vmatpush.msra.mxu0 %v281
    %301 = vmatmul.f32.gmra.mxu0 %v88
    %v302 = vpop.f32.mrf.mxu0
    %v303 = vadd.f32 0.0, %v302
    %304 = vdwg.mxu0
    %v305 = vadd.f32 %v279, %v303
    %v306 = vld [vmem:[%s8] sm:$0x1]
    %v308 = vperm.slane %v306, 0
    %v310 = vadd.f32 %v305, %v308
    %v311 = vld [vmem:[%s9] sm:$0xff]
    %v312 = vld [vmem:[%s9 + $0x8] sm:$0xff]
    %v313 = vld [vmem:[%s9 + $0x10] sm:$0xff]
    %v314 = vld [vmem:[%s9 + $0x18] sm:$0xff]
    %v315 = vld [vmem:[%s10] sm:$0x1]
    %v317 = vperm.slane %v315, 0
    %v320 = vsel %vm57, %v310, 0
    %322 = vmatpush.msra.mxu0 0.0
    %323 = vmatpush.msra.mxu0 0.0
    %324 = vmatpush.msra.mxu0 0.0
    %325 = vmatpush.msra.mxu0 0.0
    %326 = vmatpush.msra.mxu0 0.0
    %327 = vmatpush.msra.mxu0 0.0
    %328 = vmatpush.msra.mxu0 0.0
    %329 = vmatpush.msra.mxu0 0.0
    %330 = vmatpush.msra.mxu0 0.0
    %331 = vmatpush.msra.mxu0 0.0
    %332 = vmatpush.msra.mxu0 0.0
    %333 = vmatpush.msra.mxu0 0.0
    %334 = vmatpush.msra.mxu0 %v314
    %335 = vmatpush.msra.mxu0 %v313
    %336 = vmatpush.msra.mxu0 %v312
    %337 = vmatpush.msra.mxu0 %v311
    %338 = vmatmul.f32.gmra.mxu0 %v320
    %v339 = vpop.f32.mrf.mxu0
    %v340 = vadd.f32 %v317, %v339
    %341 = vdwg.mxu0
    %v342 = vtanh.pop %v340
    %v343 = vld [vmem:[%s11] sm:$0xff]
    %v344 = vld [vmem:[%s11 + $0x8] sm:$0xff]
    %v345 = vld [vmem:[%s11 + $0x10] sm:$0xff]
    %v346 = vld [vmem:[%s11 + $0x18] sm:$0xff]
    %v347 = vld [vmem:[%s12] sm:$0x1]
    %v349 = vperm.slane %v347, 0
    %v352 = vsel %vm57, %v342, 0
    %354 = vmatpush.msra.mxu0 0.0
    %355 = vmatpush.msra.mxu0 0.0
    %356 = vmatpush.msra.mxu0 0.0
    %357 = vmatpush.msra.mxu0 0.0
    %358 = vmatpush.msra.mxu0 0.0
    %359 = vmatpush.msra.mxu0 0.0
    %360 = vmatpush.msra.mxu0 0.0
    %361 = vmatpush.msra.mxu0 0.0
    %362 = vmatpush.msra.mxu0 0.0
    %363 = vmatpush.msra.mxu0 0.0
    %364 = vmatpush.msra.mxu0 0.0
    %365 = vmatpush.msra.mxu0 0.0
    %366 = vmatpush.msra.mxu0 %v346
    %367 = vmatpush.msra.mxu0 %v345
    %368 = vmatpush.msra.mxu0 %v344
    %369 = vmatpush.msra.mxu0 %v343
    %370 = vmatmul.f32.gmra.mxu0 %v352
    %v371 = vpop.f32.mrf.mxu0
    %v372 = vadd.f32 %v349, %v371
    %373 = vdwg.mxu0
    %vm374 = vcmask 48128
    %375 = vst.msk [vmem:[#allocation3] sm:$0xff] %vm374, %v372
    // Predicated region
    $region54: #{_lambda_.9} parent=1 // pred_check
      _
    $region55: #{_lambda_.9} parent=1 // pred_check_branch
      %377 = sbr.rel (0) target = $region57
    $region56: #{_lambda_.9} parent=1 // pred_region
      %379 = vsyncadd [#allocation4], 0
      %s381 = sshll.u32 [#allocation3], 4
      %s382 = int_to_ptr.vmem [resolvable:$true] %s381
      %s383 = sshll.u32 %s13, 4
      %s384 = int_to_ptr.hbm [resolvable:$true] %s383
      %386 = dma.vmem_to_hbm [thread:$0]  %s382, 128, %s384, [#allocation4]
    $region57: #{_lambda_.9} parent=1 // pred_fallthru
      _
    // Predicated region
    $region58: #{_lambda_.9} parent=1 // pred_check
      _
    $region59: #{_lambda_.9} parent=1 // pred_check_branch
      %388 = sbr.rel (0) target = $region61
    $region60: #{_lambda_.9} parent=1 // pred_region
      %390 = dma.done [#allocation4], 128
    $region61: #{_lambda_.9} parent=1 // pred_fallthru
      _
    %391 = vsyncpa [#allocation4], 1

</llo_original>
